<compile_context>
chip_gen: v6e
topology: v6e:2x2x1
jax: 0.10.0
libtpu: 0.0.40
codegen_flags: <defaults>
</compile_context>

<pallas_src>
import jax
import jax.numpy as jnp
from jax.experimental import pallas as pl
from jax.experimental.pallas import tpu as pltpu  # noqa: F401  (kept for completeness)

NUM_LAYERS = 2
D_MODEL = 32
N_HEAD = 4
HEAD_DIM = D_MODEL // N_HEAD
DIM_FF = 64
LN_EPS = 1e-5


def _layer_norm(x, gamma, beta):
    mean = jnp.mean(x, axis=-1, keepdims=True)
    var = jnp.mean((x - mean) ** 2, axis=-1, keepdims=True)
    return (x - mean) * jax.lax.rsqrt(var + LN_EPS) * gamma + beta


def _make_encoder_stack_kernel(batch, seq):
    """Build the fused NUM_LAYERS post-norm encoder stack kernel for a (batch*seq, D) slab.

    Ref shapes:
      x_ref / pos_ref / out_ref : (B*S, D)
      wqk_ref : (L, D, 2D)   [wq*scale | wk]      bqk_ref : (L, 1, 2D)  [bq*scale | bk]
      wv_ref  : (L, D, D)                          bv_ref  : (L, 1, D)
      wo_ref  : (L, D, D)
      lnb_ref : (L, 6, D)    rows = [bo, b2, g1, be1, g2, be2]
      w1_ref  : (L, D, FF)   b1_ref : (L, 1, FF)   w2_ref  : (L, FF, D)
    """

    def kernel(x_ref, pos_ref, wqk_ref, bqk_ref, wv_ref, bv_ref, wo_ref,
               lnb_ref, w1_ref, b1_ref, w2_ref, out_ref):
        x = x_ref[...]          # (B*S, D)
        pos = pos_ref[...]      # (B*S, D)

        for l in range(NUM_LAYERS):               # static unroll: whole stack in one kernel
            qk_in = x + pos                       # pos added to q/k inputs only (DETR)

            # ---- fused projections (scale already folded into wq / bq) ----
            qk = jnp.dot(qk_in, wqk_ref[l],
                         preferred_element_type=jnp.float32) + bqk_ref[l]   # (B*S, 2D)
            v = jnp.dot(x, wv_ref[l],
                        preferred_element_type=jnp.float32) + bv_ref[l]     # (B*S, D)

            # ---- per-(batch, head) attention: scores + softmax + context ----
            ctx_rows = []
            for b in range(batch):
                r0 = b * seq
                ctx_heads = []
                for h in range(N_HEAD):
                    c0 = h * HEAD_DIM
                    q_h = qk[r0:r0 + seq, c0:c0 + HEAD_DIM]                       # (S, HD)
                    k_h = qk[r0:r0 + seq, D_MODEL + c0:D_MODEL + c0 + HEAD_DIM]   # (S, HD)
                    v_h = v[r0:r0 + seq, c0:c0 + HEAD_DIM]                        # (S, HD)

                    s = jnp.einsum('qd,kd->qk', q_h, k_h,
                                   preferred_element_type=jnp.float32)            # (S, S)
                    s = s - jnp.max(s, axis=-1, keepdims=True)
                    p = jnp.exp(s)
                    p = p / jnp.sum(p, axis=-1, keepdims=True)                    # exact softmax

                    ctx_heads.append(
                        jnp.dot(p, v_h, preferred_element_type=jnp.float32))      # (S, HD)
                ctx_rows.append(jnp.concatenate(ctx_heads, axis=-1))              # (S, D)
            ctx = jnp.concatenate(ctx_rows, axis=0)                               # (B*S, D)

            # ---- single output projection over all rows ----
            attn_o = jnp.dot(ctx, wo_ref[l],
                             preferred_element_type=jnp.float32) + lnb_ref[l, 0:1, :]  # + bo

            # ---- residual + LayerNorm 1 ----
            x1 = _layer_norm(x + attn_o, lnb_ref[l, 2:3, :], lnb_ref[l, 3:4, :])

            # ---- FFN: linear -> ReLU -> linear ----
            h1 = jnp.maximum(
                jnp.dot(x1, w1_ref[l], preferred_element_type=jnp.float32) + b1_ref[l],
                0.0)
            ffn = jnp.dot(h1, w2_ref[l],
                          preferred_element_type=jnp.float32) + lnb_ref[l, 1:2, :]     # + b2

            # ---- residual + LayerNorm 2 ----
            x = _layer_norm(x1 + ffn, lnb_ref[l, 4:5, :], lnb_ref[l, 5:6, :])

        out_ref[...] = x

    return kernel


def _pack_params(layer_params):
    """Pack per-layer params into layer-stacked slabs; all splitting/scaling done here (free)."""
    D = D_MODEL
    scale = 1.0 / (HEAD_DIM ** 0.5)
    wqk, bqk, wv, bv, wo, lnb, w1, b1, w2 = [], [], [], [], [], [], [], [], []
    for p in layer_params:
        wqk.append(jnp.concatenate([p['wq'] * scale, p['wk']], axis=-1))   # (D, 2D)
        bqk.append(jnp.concatenate([p['bq'] * scale, p['bk']], axis=-1))   # (1, 2D)
        wv.append(p['wv'])                                                 # (D, D)
        bv.append(p['bv'])                                                 # (1, D)
        wo.append(p['wo'])                                                 # (D, D)
        lnb.append(jnp.stack([
            p['bo'].reshape(D), p['b2'].reshape(D),
            p['g1'].reshape(D), p['be1'].reshape(D),
            p['g2'].reshape(D), p['be2'].reshape(D),
        ]))                                                                # (6, D)
        w1.append(p['w1'])                                                 # (D, FF)
        b1.append(p['b1'])                                                 # (1, FF)
        w2.append(p['w2'])                                                 # (FF, D)
    return tuple(jnp.stack(a) for a in (wqk, bqk, wv, bv, wo, lnb, w1, b1, w2))


def transformer_encoder(src, pos, layer_params, norm=None):
    """Mirrors TransformerEncoder.forward: fused layer stack in one pallas_call, optional final norm."""
    B, S, D = src.shape
    assert D == D_MODEL and len(layer_params) == NUM_LAYERS

    params = _pack_params(layer_params)

    x_flat = src.reshape(B * S, D)       # collapse (B, S) in the wrapper (free)
    pos_flat = pos.reshape(B * S, D)

    kernel = _make_encoder_stack_kernel(B, S)

    # Single program, whole arrays resident in VMEM (~70 KiB of weights + 4 KiB activations):
    # no grid, no per-step overhead, one DMA burst for the weight slabs.
    out_flat = pl.pallas_call(
        kernel,
        out_shape=jax.ShapeDtypeStruct((B * S, D), jnp.float32),
    )(x_flat, pos_flat, *params)

    out = out_flat.reshape(B, S, D)
    if norm is not None:
        out = _layer_norm(out, norm['g'], norm['b'])
    return out


# ---------------- pure-JAX reference (canonical MHA math, no Pallas) ----------------
def encoder_layer_ref(x, pos, p):
    B, S, D = x.shape
    qk_in = x + pos
    q = jnp.einsum('bsd,de->bse', qk_in, p['wq']) + p['bq']
    k = jnp.einsum('bsd,de->bse', qk_in, p['wk']) + p['bk']
    v = jnp.einsum('bsd,de->bse', x, p['wv']) + p['bv']
    qh = q.reshape(B, S, N_HEAD, HEAD_DIM)
    kh = k.reshape(B, S, N_HEAD, HEAD_DIM)
    vh = v.reshape(B, S, N_HEAD, HEAD_DIM)
    s = jnp.einsum('bqhd,bkhd->bhqk', qh, kh) / (HEAD_DIM ** 0.5)
    pmat = jax.nn.softmax(s, axis=-1)
    ctx = jnp.einsum('bhqk,bkhd->bqhd', pmat, vh).reshape(B, S, D)
    attn_o = jnp.einsum('bsd,de->bse', ctx, p['wo']) + p['bo']
    x1 = _layer_norm(x + attn_o, p['g1'], p['be1'])
    h1 = jnp.maximum(jnp.einsum('bsd,df->bsf', x1, p['w1']) + p['b1'], 0.0)
    ffn = jnp.einsum('bsf,fd->bsd', h1, p['w2']) + p['b2']
    return _layer_norm(x1 + ffn, p['g2'], p['be2'])


# ---------------- deterministic parameter init ----------------
def init_layer_params(key):
    ks = jax.random.split(key, 12)
    s = 0.05
    f32 = jnp.float32
    return {
        'wq': jax.random.normal(ks[0], (D_MODEL, D_MODEL), f32) * s,
        'bq': jax.random.normal(ks[1], (1, D_MODEL), f32) * s,
        'wk': jax.random.normal(ks[2], (D_MODEL, D_MODEL), f32) * s,
        'bk': jax.random.normal(ks[3], (1, D_MODEL), f32) * s,
        'wv': jax.random.normal(ks[4], (D_MODEL, D_MODEL), f32) * s,
        'bv': jax.random.normal(ks[5], (1, D_MODEL), f32) * s,
        'wo': jax.random.normal(ks[6], (D_MODEL, D_MODEL), f32) * s,
        'bo': jax.random.normal(ks[7], (1, D_MODEL), f32) * s,
        'g1': jnp.ones((1, D_MODEL), f32),
        'be1': jnp.zeros((1, D_MODEL), f32),
        'w1': jax.random.normal(ks[8], (D_MODEL, DIM_FF), f32) * s,
        'b1': jax.random.normal(ks[9], (1, DIM_FF), f32) * s,
        'w2': jax.random.normal(ks[10], (DIM_FF, D_MODEL), f32) * s,
        'b2': jax.random.normal(ks[11], (1, D_MODEL), f32) * s,
        'g2': jnp.ones((1, D_MODEL), f32),
        'be2': jnp.zeros((1, D_MODEL), f32),
    }


if __name__ == "__main__":
    key = jax.random.PRNGKey(0)
    kx, kp, *lkeys = jax.random.split(key, 2 + NUM_LAYERS)

    B, S = 2, 8
    x = jax.random.normal(kx, (B, S, D_MODEL), jnp.float32)
    pos = jax.random.normal(kp, (B, S, D_MODEL), jnp.float32)
    layers = [init_layer_params(k) for k in lkeys]

    out = transformer_encoder(x, pos, layers, norm=None)
    out = jax.block_until_ready(out)

    ref = x
    for p in layers:
        ref = encoder_layer_ref(ref, pos, p)

    assert out.shape == (B, S, D_MODEL)
    # Tolerance covers MXU default-precision differences between kernel and XLA reference paths.
    assert jnp.allclose(out, ref, atol=2e-3, rtol=2e-3), "mismatch vs pure-JAX ref"
    print("KERNEL_OK")
</pallas_src>

<mosaic_0001>
module attributes {stable_mosaic.version = 11 : i64} {
  func.func @kernel(%arg0: memref<16x32xf32, #tpu.memory_space<vmem>>, %arg1: memref<16x32xf32, #tpu.memory_space<vmem>>, %arg2: memref<2x32x64xf32, #tpu.memory_space<vmem>>, %arg3: memref<2x1x64xf32, #tpu.memory_space<vmem>>, %arg4: memref<2x32x32xf32, #tpu.memory_space<vmem>>, %arg5: memref<2x1x32xf32, #tpu.memory_space<vmem>>, %arg6: memref<2x32x32xf32, #tpu.memory_space<vmem>>, %arg7: memref<2x6x32xf32, #tpu.memory_space<vmem>>, %arg8: memref<2x32x64xf32, #tpu.memory_space<vmem>>, %arg9: memref<2x1x64xf32, #tpu.memory_space<vmem>>, %arg10: memref<2x64x32xf32, #tpu.memory_space<vmem>>, %arg11: memref<16x32xf32, #tpu.memory_space<vmem>>) attributes {dimension_semantics = [], scalar_prefetch = 0 : i64, scratch_operands = 0 : i64, tpu.core_type = #tpu.core_type<tc>} {
    %c0 = arith.constant 0 : index
    %c0_0 = arith.constant 0 : index
    %0 = vector.load %arg0[%c0, %c0_0] : memref<16x32xf32, #tpu.memory_space<vmem>>, vector<16x32xf32>
    %c0_1 = arith.constant 0 : index
    %c0_2 = arith.constant 0 : index
    %1 = vector.load %arg1[%c0_1, %c0_2] : memref<16x32xf32, #tpu.memory_space<vmem>>, vector<16x32xf32>
    %2 = arith.addf %0, %1 : vector<16x32xf32>
    %c0_3 = arith.constant 0 : index
    %c0_4 = arith.constant 0 : index
    %c0_5 = arith.constant 0 : index
    %3 = vector.load %arg2[%c0_3, %c0_4, %c0_5] : memref<2x32x64xf32, #tpu.memory_space<vmem>>, vector<1x32x64xf32>
    %4 = vector.shape_cast %3 : vector<1x32x64xf32> to vector<32x64xf32>
    %cst = arith.constant dense<0.000000e+00> : vector<16x64xf32>
    %5 = tpu.matmul %2, %4, %cst {dimension_numbers = #tpu.dot_dimension_numbers<[1], [0], [0], [1], [0, 0, 1, 1], [], []>} : vector<16x32xf32>, vector<32x64xf32>, vector<16x64xf32> -> vector<16x64xf32>
    %c0_6 = arith.constant 0 : index
    %c0_7 = arith.constant 0 : index
    %c0_8 = arith.constant 0 : index
    %6 = vector.load %arg3[%c0_6, %c0_7, %c0_8] : memref<2x1x64xf32, #tpu.memory_space<vmem>>, vector<1x1x64xf32>
    %7 = vector.shape_cast %6 : vector<1x1x64xf32> to vector<1x64xf32>
    %8 = vector.broadcast %7 : vector<1x64xf32> to vector<16x64xf32>
    %9 = arith.addf %5, %8 : vector<16x64xf32>
    %c0_9 = arith.constant 0 : index
    %c0_10 = arith.constant 0 : index
    %c0_11 = arith.constant 0 : index
    %10 = vector.load %arg4[%c0_9, %c0_10, %c0_11] : memref<2x32x32xf32, #tpu.memory_space<vmem>>, vector<1x32x32xf32>
    %11 = vector.shape_cast %10 : vector<1x32x32xf32> to vector<32x32xf32>
    %cst_12 = arith.constant dense<0.000000e+00> : vector<16x32xf32>
    %12 = tpu.matmul %0, %11, %cst_12 {dimension_numbers = #tpu.dot_dimension_numbers<[1], [0], [0], [1], [0, 0, 1, 1], [], []>} : vector<16x32xf32>, vector<32x32xf32>, vector<16x32xf32> -> vector<16x32xf32>
    %c0_13 = arith.constant 0 : index
    %c0_14 = arith.constant 0 : index
    %c0_15 = arith.constant 0 : index
    %13 = vector.load %arg5[%c0_13, %c0_14, %c0_15] : memref<2x1x32xf32, #tpu.memory_space<vmem>>, vector<1x1x32xf32>
    %14 = vector.shape_cast %13 : vector<1x1x32xf32> to vector<1x32xf32>
    %15 = vector.broadcast %14 : vector<1x32xf32> to vector<16x32xf32>
    %16 = arith.addf %12, %15 : vector<16x32xf32>
    %17 = vector.extract_strided_slice %9 {offsets = [0, 0], sizes = [8, 8], strides = [1, 1]} : vector<16x64xf32> to vector<8x8xf32>
    %18 = vector.extract_strided_slice %9 {offsets = [0, 32], sizes = [8, 8], strides = [1, 1]} : vector<16x64xf32> to vector<8x8xf32>
    %19 = vector.extract_strided_slice %16 {offsets = [0, 0], sizes = [8, 8], strides = [1, 1]} : vector<16x32xf32> to vector<8x8xf32>
    "tpu.trace_start"() <{level = 10 : i32, message = "qd,kd->qk"}> : () -> ()
    %cst_16 = arith.constant dense<0.000000e+00> : vector<8x8xf32>
    %20 = tpu.matmul %17, %18, %cst_16 {dimension_numbers = #tpu.dot_dimension_numbers<[1], [1], [0], [0], [0, 0, 1, 0], [], []>} : vector<8x8xf32>, vector<8x8xf32>, vector<8x8xf32> -> vector<8x8xf32>
    "tpu.trace_stop"() : () -> ()
    %cst_17 = arith.constant dense<0xFF800000> : vector<8xf32>
    %21 = vector.multi_reduction <maximumf>, %20, %cst_17 [1] : vector<8x8xf32> to vector<8xf32>
    %22 = vector.shape_cast %21 : vector<8xf32> to vector<8x1xf32>
    %23 = vector.broadcast %22 : vector<8x1xf32> to vector<8x8xf32>
    %24 = arith.subf %20, %23 : vector<8x8xf32>
    %25 = math.exp %24 : vector<8x8xf32>
    %cst_18 = arith.constant dense<0.000000e+00> : vector<8xf32>
    %26 = vector.multi_reduction <add>, %25, %cst_18 [1] : vector<8x8xf32> to vector<8xf32>
    %27 = vector.shape_cast %26 : vector<8xf32> to vector<8x1xf32>
    %28 = vector.broadcast %27 : vector<8x1xf32> to vector<8x8xf32>
    %29 = arith.divf %25, %28 : vector<8x8xf32>
    %cst_19 = arith.constant dense<0.000000e+00> : vector<8x8xf32>
    %30 = tpu.matmul %29, %19, %cst_19 {dimension_numbers = #tpu.dot_dimension_numbers<[1], [0], [0], [1], [0, 0, 1, 1], [], []>} : vector<8x8xf32>, vector<8x8xf32>, vector<8x8xf32> -> vector<8x8xf32>
    %31 = vector.extract_strided_slice %9 {offsets = [0, 8], sizes = [8, 8], strides = [1, 1]} : vector<16x64xf32> to vector<8x8xf32>
    %32 = vector.extract_strided_slice %9 {offsets = [0, 40], sizes = [8, 8], strides = [1, 1]} : vector<16x64xf32> to vector<8x8xf32>
    %33 = vector.extract_strided_slice %16 {offsets = [0, 8], sizes = [8, 8], strides = [1, 1]} : vector<16x32xf32> to vector<8x8xf32>
    "tpu.trace_start"() <{level = 10 : i32, message = "qd,kd->qk"}> : () -> ()
    %cst_20 = arith.constant dense<0.000000e+00> : vector<8x8xf32>
    %34 = tpu.matmul %31, %32, %cst_20 {dimension_numbers = #tpu.dot_dimension_numbers<[1], [1], [0], [0], [0, 0, 1, 0], [], []>} : vector<8x8xf32>, vector<8x8xf32>, vector<8x8xf32> -> vector<8x8xf32>
    "tpu.trace_stop"() : () -> ()
    %cst_21 = arith.constant dense<0xFF800000> : vector<8xf32>
    %35 = vector.multi_reduction <maximumf>, %34, %cst_21 [1] : vector<8x8xf32> to vector<8xf32>
    %36 = vector.shape_cast %35 : vector<8xf32> to vector<8x1xf32>
    %37 = vector.broadcast %36 : vector<8x1xf32> to vector<8x8xf32>
    %38 = arith.subf %34, %37 : vector<8x8xf32>
    %39 = math.exp %38 : vector<8x8xf32>
    %cst_22 = arith.constant dense<0.000000e+00> : vector<8xf32>
    %40 = vector.multi_reduction <add>, %39, %cst_22 [1] : vector<8x8xf32> to vector<8xf32>
    %41 = vector.shape_cast %40 : vector<8xf32> to vector<8x1xf32>
    %42 = vector.broadcast %41 : vector<8x1xf32> to vector<8x8xf32>
    %43 = arith.divf %39, %42 : vector<8x8xf32>
    %cst_23 = arith.constant dense<0.000000e+00> : vector<8x8xf32>
    %44 = tpu.matmul %43, %33, %cst_23 {dimension_numbers = #tpu.dot_dimension_numbers<[1], [0], [0], [1], [0, 0, 1, 1], [], []>} : vector<8x8xf32>, vector<8x8xf32>, vector<8x8xf32> -> vector<8x8xf32>
    %45 = vector.extract_strided_slice %9 {offsets = [0, 16], sizes = [8, 8], strides = [1, 1]} : vector<16x64xf32> to vector<8x8xf32>
    %46 = vector.extract_strided_slice %9 {offsets = [0, 48], sizes = [8, 8], strides = [1, 1]} : vector<16x64xf32> to vector<8x8xf32>
    %47 = vector.extract_strided_slice %16 {offsets = [0, 16], sizes = [8, 8], strides = [1, 1]} : vector<16x32xf32> to vector<8x8xf32>
    "tpu.trace_start"() <{level = 10 : i32, message = "qd,kd->qk"}> : () -> ()
    %cst_24 = arith.constant dense<0.000000e+00> : vector<8x8xf32>
    %48 = tpu.matmul %45, %46, %cst_24 {dimension_numbers = #tpu.dot_dimension_numbers<[1], [1], [0], [0], [0, 0, 1, 0], [], []>} : vector<8x8xf32>, vector<8x8xf32>, vector<8x8xf32> -> vector<8x8xf32>
    "tpu.trace_stop"() : () -> ()
    %cst_25 = arith.constant dense<0xFF800000> : vector<8xf32>
    %49 = vector.multi_reduction <maximumf>, %48, %cst_25 [1] : vector<8x8xf32> to vector<8xf32>
    %50 = vector.shape_cast %49 : vector<8xf32> to vector<8x1xf32>
    %51 = vector.broadcast %50 : vector<8x1xf32> to vector<8x8xf32>
    %52 = arith.subf %48, %51 : vector<8x8xf32>
    %53 = math.exp %52 : vector<8x8xf32>
    %cst_26 = arith.constant dense<0.000000e+00> : vector<8xf32>
    %54 = vector.multi_reduction <add>, %53, %cst_26 [1] : vector<8x8xf32> to vector<8xf32>
    %55 = vector.shape_cast %54 : vector<8xf32> to vector<8x1xf32>
    %56 = vector.broadcast %55 : vector<8x1xf32> to vector<8x8xf32>
    %57 = arith.divf %53, %56 : vector<8x8xf32>
    %cst_27 = arith.constant dense<0.000000e+00> : vector<8x8xf32>
    %58 = tpu.matmul %57, %47, %cst_27 {dimension_numbers = #tpu.dot_dimension_numbers<[1], [0], [0], [1], [0, 0, 1, 1], [], []>} : vector<8x8xf32>, vector<8x8xf32>, vector<8x8xf32> -> vector<8x8xf32>
    %59 = vector.extract_strided_slice %9 {offsets = [0, 24], sizes = [8, 8], strides = [1, 1]} : vector<16x64xf32> to vector<8x8xf32>
    %60 = vector.extract_strided_slice %9 {offsets = [0, 56], sizes = [8, 8], strides = [1, 1]} : vector<16x64xf32> to vector<8x8xf32>
    %61 = vector.extract_strided_slice %16 {offsets = [0, 24], sizes = [8, 8], strides = [1, 1]} : vector<16x32xf32> to vector<8x8xf32>
    "tpu.trace_start"() <{level = 10 : i32, message = "qd,kd->qk"}> : () -> ()
    %cst_28 = arith.constant dense<0.000000e+00> : vector<8x8xf32>
    %62 = tpu.matmul %59, %60, %cst_28 {dimension_numbers = #tpu.dot_dimension_numbers<[1], [1], [0], [0], [0, 0, 1, 0], [], []>} : vector<8x8xf32>, vector<8x8xf32>, vector<8x8xf32> -> vector<8x8xf32>
    "tpu.trace_stop"() : () -> ()
    %cst_29 = arith.constant dense<0xFF800000> : vector<8xf32>
    %63 = vector.multi_reduction <maximumf>, %62, %cst_29 [1] : vector<8x8xf32> to vector<8xf32>
    %64 = vector.shape_cast %63 : vector<8xf32> to vector<8x1xf32>
    %65 = vector.broadcast %64 : vector<8x1xf32> to vector<8x8xf32>
    %66 = arith.subf %62, %65 : vector<8x8xf32>
    %67 = math.exp %66 : vector<8x8xf32>
    %cst_30 = arith.constant dense<0.000000e+00> : vector<8xf32>
    %68 = vector.multi_reduction <add>, %67, %cst_30 [1] : vector<8x8xf32> to vector<8xf32>
    %69 = vector.shape_cast %68 : vector<8xf32> to vector<8x1xf32>
    %70 = vector.broadcast %69 : vector<8x1xf32> to vector<8x8xf32>
    %71 = arith.divf %67, %70 : vector<8x8xf32>
    %cst_31 = arith.constant dense<0.000000e+00> : vector<8x8xf32>
    %72 = tpu.matmul %71, %61, %cst_31 {dimension_numbers = #tpu.dot_dimension_numbers<[1], [0], [0], [1], [0, 0, 1, 1], [], []>} : vector<8x8xf32>, vector<8x8xf32>, vector<8x8xf32> -> vector<8x8xf32>
    %73 = tpu.concatenate %30, %44, %58, %72 in 1 : vector<8x8xf32>, vector<8x8xf32>, vector<8x8xf32>, vector<8x8xf32> -> vector<8x32xf32>
    %74 = vector.extract_strided_slice %9 {offsets = [8, 0], sizes = [8, 8], strides = [1, 1]} : vector<16x64xf32> to vector<8x8xf32>
    %75 = vector.extract_strided_slice %9 {offsets = [8, 32], sizes = [8, 8], strides = [1, 1]} : vector<16x64xf32> to vector<8x8xf32>
    %76 = vector.extract_strided_slice %16 {offsets = [8, 0], sizes = [8, 8], strides = [1, 1]} : vector<16x32xf32> to vector<8x8xf32>
    "tpu.trace_start"() <{level = 10 : i32, message = "qd,kd->qk"}> : () -> ()
    %cst_32 = arith.constant dense<0.000000e+00> : vector<8x8xf32>
    %77 = tpu.matmul %74, %75, %cst_32 {dimension_numbers = #tpu.dot_dimension_numbers<[1], [1], [0], [0], [0, 0, 1, 0], [], []>} : vector<8x8xf32>, vector<8x8xf32>, vector<8x8xf32> -> vector<8x8xf32>
    "tpu.trace_stop"() : () -> ()
    %cst_33 = arith.constant dense<0xFF800000> : vector<8xf32>
    %78 = vector.multi_reduction <maximumf>, %77, %cst_33 [1] : vector<8x8xf32> to vector<8xf32>
    %79 = vector.shape_cast %78 : vector<8xf32> to vector<8x1xf32>
    %80 = vector.broadcast %79 : vector<8x1xf32> to vector<8x8xf32>
    %81 = arith.subf %77, %80 : vector<8x8xf32>
    %82 = math.exp %81 : vector<8x8xf32>
    %cst_34 = arith.constant dense<0.000000e+00> : vector<8xf32>
    %83 = vector.multi_reduction <add>, %82, %cst_34 [1] : vector<8x8xf32> to vector<8xf32>
    %84 = vector.shape_cast %83 : vector<8xf32> to vector<8x1xf32>
    %85 = vector.broadcast %84 : vector<8x1xf32> to vector<8x8xf32>
    %86 = arith.divf %82, %85 : vector<8x8xf32>
    %cst_35 = arith.constant dense<0.000000e+00> : vector<8x8xf32>
    %87 = tpu.matmul %86, %76, %cst_35 {dimension_numbers = #tpu.dot_dimension_numbers<[1], [0], [0], [1], [0, 0, 1, 1], [], []>} : vector<8x8xf32>, vector<8x8xf32>, vector<8x8xf32> -> vector<8x8xf32>
    %88 = vector.extract_strided_slice %9 {offsets = [8, 8], sizes = [8, 8], strides = [1, 1]} : vector<16x64xf32> to vector<8x8xf32>
    %89 = vector.extract_strided_slice %9 {offsets = [8, 40], sizes = [8, 8], strides = [1, 1]} : vector<16x64xf32> to vector<8x8xf32>
    %90 = vector.extract_strided_slice %16 {offsets = [8, 8], sizes = [8, 8], strides = [1, 1]} : vector<16x32xf32> to vector<8x8xf32>
    "tpu.trace_start"() <{level = 10 : i32, message = "qd,kd->qk"}> : () -> ()
    %cst_36 = arith.constant dense<0.000000e+00> : vector<8x8xf32>
    %91 = tpu.matmul %88, %89, %cst_36 {dimension_numbers = #tpu.dot_dimension_numbers<[1], [1], [0], [0], [0, 0, 1, 0], [], []>} : vector<8x8xf32>, vector<8x8xf32>, vector<8x8xf32> -> vector<8x8xf32>
    "tpu.trace_stop"() : () -> ()
    %cst_37 = arith.constant dense<0xFF800000> : vector<8xf32>
    %92 = vector.multi_reduction <maximumf>, %91, %cst_37 [1] : vector<8x8xf32> to vector<8xf32>
    %93 = vector.shape_cast %92 : vector<8xf32> to vector<8x1xf32>
    %94 = vector.broadcast %93 : vector<8x1xf32> to vector<8x8xf32>
    %95 = arith.subf %91, %94 : vector<8x8xf32>
    %96 = math.exp %95 : vector<8x8xf32>
    %cst_38 = arith.constant dense<0.000000e+00> : vector<8xf32>
    %97 = vector.multi_reduction <add>, %96, %cst_38 [1] : vector<8x8xf32> to vector<8xf32>
    %98 = vector.shape_cast %97 : vector<8xf32> to vector<8x1xf32>
    %99 = vector.broadcast %98 : vector<8x1xf32> to vector<8x8xf32>
    %100 = arith.divf %96, %99 : vector<8x8xf32>
    %cst_39 = arith.constant dense<0.000000e+00> : vector<8x8xf32>
    %101 = tpu.matmul %100, %90, %cst_39 {dimension_numbers = #tpu.dot_dimension_numbers<[1], [0], [0], [1], [0, 0, 1, 1], [], []>} : vector<8x8xf32>, vector<8x8xf32>, vector<8x8xf32> -> vector<8x8xf32>
    %102 = vector.extract_strided_slice %9 {offsets = [8, 16], sizes = [8, 8], strides = [1, 1]} : vector<16x64xf32> to vector<8x8xf32>
    %103 = vector.extract_strided_slice %9 {offsets = [8, 48], sizes = [8, 8], strides = [1, 1]} : vector<16x64xf32> to vector<8x8xf32>
    %104 = vector.extract_strided_slice %16 {offsets = [8, 16], sizes = [8, 8], strides = [1, 1]} : vector<16x32xf32> to vector<8x8xf32>
    "tpu.trace_start"() <{level = 10 : i32, message = "qd,kd->qk"}> : () -> ()
    %cst_40 = arith.constant dense<0.000000e+00> : vector<8x8xf32>
    %105 = tpu.matmul %102, %103, %cst_40 {dimension_numbers = #tpu.dot_dimension_numbers<[1], [1], [0], [0], [0, 0, 1, 0], [], []>} : vector<8x8xf32>, vector<8x8xf32>, vector<8x8xf32> -> vector<8x8xf32>
    "tpu.trace_stop"() : () -> ()
    %cst_41 = arith.constant dense<0xFF800000> : vector<8xf32>
    %106 = vector.multi_reduction <maximumf>, %105, %cst_41 [1] : vector<8x8xf32> to vector<8xf32>
    %107 = vector.shape_cast %106 : vector<8xf32> to vector<8x1xf32>
    %108 = vector.broadcast %107 : vector<8x1xf32> to vector<8x8xf32>
    %109 = arith.subf %105, %108 : vector<8x8xf32>
    %110 = math.exp %109 : vector<8x8xf32>
    %cst_42 = arith.constant dense<0.000000e+00> : vector<8xf32>
    %111 = vector.multi_reduction <add>, %110, %cst_42 [1] : vector<8x8xf32> to vector<8xf32>
    %112 = vector.shape_cast %111 : vector<8xf32> to vector<8x1xf32>
    %113 = vector.broadcast %112 : vector<8x1xf32> to vector<8x8xf32>
    %114 = arith.divf %110, %113 : vector<8x8xf32>
    %cst_43 = arith.constant dense<0.000000e+00> : vector<8x8xf32>
    %115 = tpu.matmul %114, %104, %cst_43 {dimension_numbers = #tpu.dot_dimension_numbers<[1], [0], [0], [1], [0, 0, 1, 1], [], []>} : vector<8x8xf32>, vector<8x8xf32>, vector<8x8xf32> -> vector<8x8xf32>
    %116 = vector.extract_strided_slice %9 {offsets = [8, 24], sizes = [8, 8], strides = [1, 1]} : vector<16x64xf32> to vector<8x8xf32>
    %117 = vector.extract_strided_slice %9 {offsets = [8, 56], sizes = [8, 8], strides = [1, 1]} : vector<16x64xf32> to vector<8x8xf32>
    %118 = vector.extract_strided_slice %16 {offsets = [8, 24], sizes = [8, 8], strides = [1, 1]} : vector<16x32xf32> to vector<8x8xf32>
    "tpu.trace_start"() <{level = 10 : i32, message = "qd,kd->qk"}> : () -> ()
    %cst_44 = arith.constant dense<0.000000e+00> : vector<8x8xf32>
    %119 = tpu.matmul %116, %117, %cst_44 {dimension_numbers = #tpu.dot_dimension_numbers<[1], [1], [0], [0], [0, 0, 1, 0], [], []>} : vector<8x8xf32>, vector<8x8xf32>, vector<8x8xf32> -> vector<8x8xf32>
    "tpu.trace_stop"() : () -> ()
    %cst_45 = arith.constant dense<0xFF800000> : vector<8xf32>
    %120 = vector.multi_reduction <maximumf>, %119, %cst_45 [1] : vector<8x8xf32> to vector<8xf32>
    %121 = vector.shape_cast %120 : vector<8xf32> to vector<8x1xf32>
    %122 = vector.broadcast %121 : vector<8x1xf32> to vector<8x8xf32>
    %123 = arith.subf %119, %122 : vector<8x8xf32>
    %124 = math.exp %123 : vector<8x8xf32>
    %cst_46 = arith.constant dense<0.000000e+00> : vector<8xf32>
    %125 = vector.multi_reduction <add>, %124, %cst_46 [1] : vector<8x8xf32> to vector<8xf32>
    %126 = vector.shape_cast %125 : vector<8xf32> to vector<8x1xf32>
    %127 = vector.broadcast %126 : vector<8x1xf32> to vector<8x8xf32>
    %128 = arith.divf %124, %127 : vector<8x8xf32>
    %cst_47 = arith.constant dense<0.000000e+00> : vector<8x8xf32>
    %129 = tpu.matmul %128, %118, %cst_47 {dimension_numbers = #tpu.dot_dimension_numbers<[1], [0], [0], [1], [0, 0, 1, 1], [], []>} : vector<8x8xf32>, vector<8x8xf32>, vector<8x8xf32> -> vector<8x8xf32>
    %130 = tpu.concatenate %87, %101, %115, %129 in 1 : vector<8x8xf32>, vector<8x8xf32>, vector<8x8xf32>, vector<8x8xf32> -> vector<8x32xf32>
    %131 = tpu.concatenate %73, %130 in 0 : vector<8x32xf32>, vector<8x32xf32> -> vector<16x32xf32>
    %c0_48 = arith.constant 0 : index
    %c0_49 = arith.constant 0 : index
    %c0_50 = arith.constant 0 : index
    %132 = vector.load %arg6[%c0_48, %c0_49, %c0_50] : memref<2x32x32xf32, #tpu.memory_space<vmem>>, vector<1x32x32xf32>
    %133 = vector.shape_cast %132 : vector<1x32x32xf32> to vector<32x32xf32>
    %cst_51 = arith.constant dense<0.000000e+00> : vector<16x32xf32>
    %134 = tpu.matmul %131, %133, %cst_51 {dimension_numbers = #tpu.dot_dimension_numbers<[1], [0], [0], [1], [0, 0, 1, 1], [], []>} : vector<16x32xf32>, vector<32x32xf32>, vector<16x32xf32> -> vector<16x32xf32>
    %c0_52 = arith.constant 0 : index
    %c0_53 = arith.constant 0 : index
    %c0_54 = arith.constant 0 : index
    %135 = vector.load %arg7[%c0_52, %c0_53, %c0_54] : memref<2x6x32xf32, #tpu.memory_space<vmem>>, vector<1x1x32xf32>
    %136 = vector.shape_cast %135 : vector<1x1x32xf32> to vector<1x32xf32>
    %137 = vector.broadcast %136 : vector<1x32xf32> to vector<16x32xf32>
    %138 = arith.addf %134, %137 : vector<16x32xf32>
    %139 = arith.addf %0, %138 : vector<16x32xf32>
    %c0_55 = arith.constant 0 : index
    %c2 = arith.constant 2 : index
    %c0_56 = arith.constant 0 : index
    %140 = vector.load %arg7[%c0_55, %c2, %c0_56] : memref<2x6x32xf32, #tpu.memory_space<vmem>>, vector<1x1x32xf32>
    %141 = vector.shape_cast %140 : vector<1x1x32xf32> to vector<1x32xf32>
    %c0_57 = arith.constant 0 : index
    %c3 = arith.constant 3 : index
    %c0_58 = arith.constant 0 : index
    %142 = vector.load %arg7[%c0_57, %c3, %c0_58] : memref<2x6x32xf32, #tpu.memory_space<vmem>>, vector<1x1x32xf32>
    %143 = vector.shape_cast %142 : vector<1x1x32xf32> to vector<1x32xf32>
    %cst_59 = arith.constant dense<0.000000e+00> : vector<16xf32>
    %144 = vector.multi_reduction <add>, %139, %cst_59 [1] : vector<16x32xf32> to vector<16xf32>
    %145 = vector.shape_cast %144 : vector<16xf32> to vector<16x1xf32>
    %cst_60 = arith.constant 3.200000e+01 : f32
    %146 = vector.broadcast %cst_60 : f32 to vector<16x1xf32>
    %147 = arith.divf %145, %146 : vector<16x1xf32>
    %148 = vector.broadcast %147 : vector<16x1xf32> to vector<16x32xf32>
    %149 = arith.subf %139, %148 : vector<16x32xf32>
    %150 = arith.mulf %149, %149 : vector<16x32xf32>
    %cst_61 = arith.constant dense<0.000000e+00> : vector<16xf32>
    %151 = vector.multi_reduction <add>, %150, %cst_61 [1] : vector<16x32xf32> to vector<16xf32>
    %152 = vector.shape_cast %151 : vector<16xf32> to vector<16x1xf32>
    %cst_62 = arith.constant 3.200000e+01 : f32
    %153 = vector.broadcast %cst_62 : f32 to vector<16x1xf32>
    %154 = arith.divf %152, %153 : vector<16x1xf32>
    %155 = vector.broadcast %147 : vector<16x1xf32> to vector<16x32xf32>
    %156 = arith.subf %139, %155 : vector<16x32xf32>
    %cst_63 = arith.constant 9.99999974E-6 : f32
    %157 = vector.broadcast %cst_63 : f32 to vector<16x1xf32>
    %158 = arith.addf %154, %157 : vector<16x1xf32>
    %159 = math.rsqrt %158 : vector<16x1xf32>
    %160 = vector.broadcast %159 : vector<16x1xf32> to vector<16x32xf32>
    %161 = arith.mulf %156, %160 : vector<16x32xf32>
    %162 = vector.broadcast %141 : vector<1x32xf32> to vector<16x32xf32>
    %163 = arith.mulf %161, %162 : vector<16x32xf32>
    %164 = vector.broadcast %143 : vector<1x32xf32> to vector<16x32xf32>
    %165 = arith.addf %163, %164 : vector<16x32xf32>
    %c0_64 = arith.constant 0 : index
    %c0_65 = arith.constant 0 : index
    %c0_66 = arith.constant 0 : index
    %166 = vector.load %arg8[%c0_64, %c0_65, %c0_66] : memref<2x32x64xf32, #tpu.memory_space<vmem>>, vector<1x32x64xf32>
    %167 = vector.shape_cast %166 : vector<1x32x64xf32> to vector<32x64xf32>
    %cst_67 = arith.constant dense<0.000000e+00> : vector<16x64xf32>
    %168 = tpu.matmul %165, %167, %cst_67 {dimension_numbers = #tpu.dot_dimension_numbers<[1], [0], [0], [1], [0, 0, 1, 1], [], []>} : vector<16x32xf32>, vector<32x64xf32>, vector<16x64xf32> -> vector<16x64xf32>
    %c0_68 = arith.constant 0 : index
    %c0_69 = arith.constant 0 : index
    %c0_70 = arith.constant 0 : index
    %169 = vector.load %arg9[%c0_68, %c0_69, %c0_70] : memref<2x1x64xf32, #tpu.memory_space<vmem>>, vector<1x1x64xf32>
    %170 = vector.shape_cast %169 : vector<1x1x64xf32> to vector<1x64xf32>
    %171 = vector.broadcast %170 : vector<1x64xf32> to vector<16x64xf32>
    %172 = arith.addf %168, %171 : vector<16x64xf32>
    %cst_71 = arith.constant 0.000000e+00 : f32
    %173 = vector.broadcast %cst_71 : f32 to vector<16x64xf32>
    %174 = arith.maximumf %172, %173 : vector<16x64xf32>
    %c0_72 = arith.constant 0 : index
    %c0_73 = arith.constant 0 : index
    %c0_74 = arith.constant 0 : index
    %175 = vector.load %arg10[%c0_72, %c0_73, %c0_74] : memref<2x64x32xf32, #tpu.memory_space<vmem>>, vector<1x64x32xf32>
    %176 = vector.shape_cast %175 : vector<1x64x32xf32> to vector<64x32xf32>
    %cst_75 = arith.constant dense<0.000000e+00> : vector<16x32xf32>
    %177 = tpu.matmul %174, %176, %cst_75 {dimension_numbers = #tpu.dot_dimension_numbers<[1], [0], [0], [1], [0, 0, 1, 1], [], []>} : vector<16x64xf32>, vector<64x32xf32>, vector<16x32xf32> -> vector<16x32xf32>
    %c0_76 = arith.constant 0 : index
    %c1 = arith.constant 1 : index
    %c0_77 = arith.constant 0 : index
    %178 = vector.load %arg7[%c0_76, %c1, %c0_77] : memref<2x6x32xf32, #tpu.memory_space<vmem>>, vector<1x1x32xf32>
    %179 = vector.shape_cast %178 : vector<1x1x32xf32> to vector<1x32xf32>
    %180 = vector.broadcast %179 : vector<1x32xf32> to vector<16x32xf32>
    %181 = arith.addf %177, %180 : vector<16x32xf32>
    %182 = arith.addf %165, %181 : vector<16x32xf32>
    %c0_78 = arith.constant 0 : index
    %c4 = arith.constant 4 : index
    %c0_79 = arith.constant 0 : index
    %183 = vector.load %arg7[%c0_78, %c4, %c0_79] : memref<2x6x32xf32, #tpu.memory_space<vmem>>, vector<1x1x32xf32>
    %184 = vector.shape_cast %183 : vector<1x1x32xf32> to vector<1x32xf32>
    %c0_80 = arith.constant 0 : index
    %c5 = arith.constant 5 : index
    %c0_81 = arith.constant 0 : index
    %185 = vector.load %arg7[%c0_80, %c5, %c0_81] : memref<2x6x32xf32, #tpu.memory_space<vmem>>, vector<1x1x32xf32>
    %186 = vector.shape_cast %185 : vector<1x1x32xf32> to vector<1x32xf32>
    %cst_82 = arith.constant dense<0.000000e+00> : vector<16xf32>
    %187 = vector.multi_reduction <add>, %182, %cst_82 [1] : vector<16x32xf32> to vector<16xf32>
    %188 = vector.shape_cast %187 : vector<16xf32> to vector<16x1xf32>
    %cst_83 = arith.constant 3.200000e+01 : f32
    %189 = vector.broadcast %cst_83 : f32 to vector<16x1xf32>
    %190 = arith.divf %188, %189 : vector<16x1xf32>
    %191 = vector.broadcast %190 : vector<16x1xf32> to vector<16x32xf32>
    %192 = arith.subf %182, %191 : vector<16x32xf32>
    %193 = arith.mulf %192, %192 : vector<16x32xf32>
    %cst_84 = arith.constant dense<0.000000e+00> : vector<16xf32>
    %194 = vector.multi_reduction <add>, %193, %cst_84 [1] : vector<16x32xf32> to vector<16xf32>
    %195 = vector.shape_cast %194 : vector<16xf32> to vector<16x1xf32>
    %cst_85 = arith.constant 3.200000e+01 : f32
    %196 = vector.broadcast %cst_85 : f32 to vector<16x1xf32>
    %197 = arith.divf %195, %196 : vector<16x1xf32>
    %198 = vector.broadcast %190 : vector<16x1xf32> to vector<16x32xf32>
    %199 = arith.subf %182, %198 : vector<16x32xf32>
    %cst_86 = arith.constant 9.99999974E-6 : f32
    %200 = vector.broadcast %cst_86 : f32 to vector<16x1xf32>
    %201 = arith.addf %197, %200 : vector<16x1xf32>
    %202 = math.rsqrt %201 : vector<16x1xf32>
    %203 = vector.broadcast %202 : vector<16x1xf32> to vector<16x32xf32>
    %204 = arith.mulf %199, %203 : vector<16x32xf32>
    %205 = vector.broadcast %184 : vector<1x32xf32> to vector<16x32xf32>
    %206 = arith.mulf %204, %205 : vector<16x32xf32>
    %207 = vector.broadcast %186 : vector<1x32xf32> to vector<16x32xf32>
    %208 = arith.addf %206, %207 : vector<16x32xf32>
    %209 = arith.addf %208, %1 : vector<16x32xf32>
    %c1_87 = arith.constant 1 : index
    %c0_88 = arith.constant 0 : index
    %c0_89 = arith.constant 0 : index
    %210 = vector.load %arg2[%c1_87, %c0_88, %c0_89] : memref<2x32x64xf32, #tpu.memory_space<vmem>>, vector<1x32x64xf32>
    %211 = vector.shape_cast %210 : vector<1x32x64xf32> to vector<32x64xf32>
    %cst_90 = arith.constant dense<0.000000e+00> : vector<16x64xf32>
    %212 = tpu.matmul %209, %211, %cst_90 {dimension_numbers = #tpu.dot_dimension_numbers<[1], [0], [0], [1], [0, 0, 1, 1], [], []>} : vector<16x32xf32>, vector<32x64xf32>, vector<16x64xf32> -> vector<16x64xf32>
    %c1_91 = arith.constant 1 : index
    %c0_92 = arith.constant 0 : index
    %c0_93 = arith.constant 0 : index
    %213 = vector.load %arg3[%c1_91, %c0_92, %c0_93] : memref<2x1x64xf32, #tpu.memory_space<vmem>>, vector<1x1x64xf32>
    %214 = vector.shape_cast %213 : vector<1x1x64xf32> to vector<1x64xf32>
    %215 = vector.broadcast %214 : vector<1x64xf32> to vector<16x64xf32>
    %216 = arith.addf %212, %215 : vector<16x64xf32>
    %c1_94 = arith.constant 1 : index
    %c0_95 = arith.constant 0 : index
    %c0_96 = arith.constant 0 : index
    %217 = vector.load %arg4[%c1_94, %c0_95, %c0_96] : memref<2x32x32xf32, #tpu.memory_space<vmem>>, vector<1x32x32xf32>
    %218 = vector.shape_cast %217 : vector<1x32x32xf32> to vector<32x32xf32>
    %cst_97 = arith.constant dense<0.000000e+00> : vector<16x32xf32>
    %219 = tpu.matmul %208, %218, %cst_97 {dimension_numbers = #tpu.dot_dimension_numbers<[1], [0], [0], [1], [0, 0, 1, 1], [], []>} : vector<16x32xf32>, vector<32x32xf32>, vector<16x32xf32> -> vector<16x32xf32>
    %c1_98 = arith.constant 1 : index
    %c0_99 = arith.constant 0 : index
    %c0_100 = arith.constant 0 : index
    %220 = vector.load %arg5[%c1_98, %c0_99, %c0_100] : memref<2x1x32xf32, #tpu.memory_space<vmem>>, vector<1x1x32xf32>
    %221 = vector.shape_cast %220 : vector<1x1x32xf32> to vector<1x32xf32>
    %222 = vector.broadcast %221 : vector<1x32xf32> to vector<16x32xf32>
    %223 = arith.addf %219, %222 : vector<16x32xf32>
    %224 = vector.extract_strided_slice %216 {offsets = [0, 0], sizes = [8, 8], strides = [1, 1]} : vector<16x64xf32> to vector<8x8xf32>
    %225 = vector.extract_strided_slice %216 {offsets = [0, 32], sizes = [8, 8], strides = [1, 1]} : vector<16x64xf32> to vector<8x8xf32>
    %226 = vector.extract_strided_slice %223 {offsets = [0, 0], sizes = [8, 8], strides = [1, 1]} : vector<16x32xf32> to vector<8x8xf32>
    "tpu.trace_start"() <{level = 10 : i32, message = "qd,kd->qk"}> : () -> ()
    %cst_101 = arith.constant dense<0.000000e+00> : vector<8x8xf32>
    %227 = tpu.matmul %224, %225, %cst_101 {dimension_numbers = #tpu.dot_dimension_numbers<[1], [1], [0], [0], [0, 0, 1, 0], [], []>} : vector<8x8xf32>, vector<8x8xf32>, vector<8x8xf32> -> vector<8x8xf32>
    "tpu.trace_stop"() : () -> ()
    %cst_102 = arith.constant dense<0xFF800000> : vector<8xf32>
    %228 = vector.multi_reduction <maximumf>, %227, %cst_102 [1] : vector<8x8xf32> to vector<8xf32>
    %229 = vector.shape_cast %228 : vector<8xf32> to vector<8x1xf32>
    %230 = vector.broadcast %229 : vector<8x1xf32> to vector<8x8xf32>
    %231 = arith.subf %227, %230 : vector<8x8xf32>
    %232 = math.exp %231 : vector<8x8xf32>
    %cst_103 = arith.constant dense<0.000000e+00> : vector<8xf32>
    %233 = vector.multi_reduction <add>, %232, %cst_103 [1] : vector<8x8xf32> to vector<8xf32>
    %234 = vector.shape_cast %233 : vector<8xf32> to vector<8x1xf32>
    %235 = vector.broadcast %234 : vector<8x1xf32> to vector<8x8xf32>
    %236 = arith.divf %232, %235 : vector<8x8xf32>
    %cst_104 = arith.constant dense<0.000000e+00> : vector<8x8xf32>
    %237 = tpu.matmul %236, %226, %cst_104 {dimension_numbers = #tpu.dot_dimension_numbers<[1], [0], [0], [1], [0, 0, 1, 1], [], []>} : vector<8x8xf32>, vector<8x8xf32>, vector<8x8xf32> -> vector<8x8xf32>
    %238 = vector.extract_strided_slice %216 {offsets = [0, 8], sizes = [8, 8], strides = [1, 1]} : vector<16x64xf32> to vector<8x8xf32>
    %239 = vector.extract_strided_slice %216 {offsets = [0, 40], sizes = [8, 8], strides = [1, 1]} : vector<16x64xf32> to vector<8x8xf32>
    %240 = vector.extract_strided_slice %223 {offsets = [0, 8], sizes = [8, 8], strides = [1, 1]} : vector<16x32xf32> to vector<8x8xf32>
    "tpu.trace_start"() <{level = 10 : i32, message = "qd,kd->qk"}> : () -> ()
    %cst_105 = arith.constant dense<0.000000e+00> : vector<8x8xf32>
    %241 = tpu.matmul %238, %239, %cst_105 {dimension_numbers = #tpu.dot_dimension_numbers<[1], [1], [0], [0], [0, 0, 1, 0], [], []>} : vector<8x8xf32>, vector<8x8xf32>, vector<8x8xf32> -> vector<8x8xf32>
    "tpu.trace_stop"() : () -> ()
    %cst_106 = arith.constant dense<0xFF800000> : vector<8xf32>
    %242 = vector.multi_reduction <maximumf>, %241, %cst_106 [1] : vector<8x8xf32> to vector<8xf32>
    %243 = vector.shape_cast %242 : vector<8xf32> to vector<8x1xf32>
    %244 = vector.broadcast %243 : vector<8x1xf32> to vector<8x8xf32>
    %245 = arith.subf %241, %244 : vector<8x8xf32>
    %246 = math.exp %245 : vector<8x8xf32>
    %cst_107 = arith.constant dense<0.000000e+00> : vector<8xf32>
    %247 = vector.multi_reduction <add>, %246, %cst_107 [1] : vector<8x8xf32> to vector<8xf32>
    %248 = vector.shape_cast %247 : vector<8xf32> to vector<8x1xf32>
    %249 = vector.broadcast %248 : vector<8x1xf32> to vector<8x8xf32>
    %250 = arith.divf %246, %249 : vector<8x8xf32>
    %cst_108 = arith.constant dense<0.000000e+00> : vector<8x8xf32>
    %251 = tpu.matmul %250, %240, %cst_108 {dimension_numbers = #tpu.dot_dimension_numbers<[1], [0], [0], [1], [0, 0, 1, 1], [], []>} : vector<8x8xf32>, vector<8x8xf32>, vector<8x8xf32> -> vector<8x8xf32>
    %252 = vector.extract_strided_slice %216 {offsets = [0, 16], sizes = [8, 8], strides = [1, 1]} : vector<16x64xf32> to vector<8x8xf32>
    %253 = vector.extract_strided_slice %216 {offsets = [0, 48], sizes = [8, 8], strides = [1, 1]} : vector<16x64xf32> to vector<8x8xf32>
    %254 = vector.extract_strided_slice %223 {offsets = [0, 16], sizes = [8, 8], strides = [1, 1]} : vector<16x32xf32> to vector<8x8xf32>
    "tpu.trace_start"() <{level = 10 : i32, message = "qd,kd->qk"}> : () -> ()
    %cst_109 = arith.constant dense<0.000000e+00> : vector<8x8xf32>
    %255 = tpu.matmul %252, %253, %cst_109 {dimension_numbers = #tpu.dot_dimension_numbers<[1], [1], [0], [0], [0, 0, 1, 0], [], []>} : vector<8x8xf32>, vector<8x8xf32>, vector<8x8xf32> -> vector<8x8xf32>
    "tpu.trace_stop"() : () -> ()
    %cst_110 = arith.constant dense<0xFF800000> : vector<8xf32>
    %256 = vector.multi_reduction <maximumf>, %255, %cst_110 [1] : vector<8x8xf32> to vector<8xf32>
    %257 = vector.shape_cast %256 : vector<8xf32> to vector<8x1xf32>
    %258 = vector.broadcast %257 : vector<8x1xf32> to vector<8x8xf32>
    %259 = arith.subf %255, %258 : vector<8x8xf32>
    %260 = math.exp %259 : vector<8x8xf32>
    %cst_111 = arith.constant dense<0.000000e+00> : vector<8xf32>
    %261 = vector.multi_reduction <add>, %260, %cst_111 [1] : vector<8x8xf32> to vector<8xf32>
    %262 = vector.shape_cast %261 : vector<8xf32> to vector<8x1xf32>
    %263 = vector.broadcast %262 : vector<8x1xf32> to vector<8x8xf32>
    %264 = arith.divf %260, %263 : vector<8x8xf32>
    %cst_112 = arith.constant dense<0.000000e+00> : vector<8x8xf32>
    %265 = tpu.matmul %264, %254, %cst_112 {dimension_numbers = #tpu.dot_dimension_numbers<[1], [0], [0], [1], [0, 0, 1, 1], [], []>} : vector<8x8xf32>, vector<8x8xf32>, vector<8x8xf32> -> vector<8x8xf32>
    %266 = vector.extract_strided_slice %216 {offsets = [0, 24], sizes = [8, 8], strides = [1, 1]} : vector<16x64xf32> to vector<8x8xf32>
    %267 = vector.extract_strided_slice %216 {offsets = [0, 56], sizes = [8, 8], strides = [1, 1]} : vector<16x64xf32> to vector<8x8xf32>
    %268 = vector.extract_strided_slice %223 {offsets = [0, 24], sizes = [8, 8], strides = [1, 1]} : vector<16x32xf32> to vector<8x8xf32>
    "tpu.trace_start"() <{level = 10 : i32, message = "qd,kd->qk"}> : () -> ()
    %cst_113 = arith.constant dense<0.000000e+00> : vector<8x8xf32>
    %269 = tpu.matmul %266, %267, %cst_113 {dimension_numbers = #tpu.dot_dimension_numbers<[1], [1], [0], [0], [0, 0, 1, 0], [], []>} : vector<8x8xf32>, vector<8x8xf32>, vector<8x8xf32> -> vector<8x8xf32>
    "tpu.trace_stop"() : () -> ()
    %cst_114 = arith.constant dense<0xFF800000> : vector<8xf32>
    %270 = vector.multi_reduction <maximumf>, %269, %cst_114 [1] : vector<8x8xf32> to vector<8xf32>
    %271 = vector.shape_cast %270 : vector<8xf32> to vector<8x1xf32>
    %272 = vector.broadcast %271 : vector<8x1xf32> to vector<8x8xf32>
    %273 = arith.subf %269, %272 : vector<8x8xf32>
    %274 = math.exp %273 : vector<8x8xf32>
    %cst_115 = arith.constant dense<0.000000e+00> : vector<8xf32>
    %275 = vector.multi_reduction <add>, %274, %cst_115 [1] : vector<8x8xf32> to vector<8xf32>
    %276 = vector.shape_cast %275 : vector<8xf32> to vector<8x1xf32>
    %277 = vector.broadcast %276 : vector<8x1xf32> to vector<8x8xf32>
    %278 = arith.divf %274, %277 : vector<8x8xf32>
    %cst_116 = arith.constant dense<0.000000e+00> : vector<8x8xf32>
    %279 = tpu.matmul %278, %268, %cst_116 {dimension_numbers = #tpu.dot_dimension_numbers<[1], [0], [0], [1], [0, 0, 1, 1], [], []>} : vector<8x8xf32>, vector<8x8xf32>, vector<8x8xf32> -> vector<8x8xf32>
    %280 = tpu.concatenate %237, %251, %265, %279 in 1 : vector<8x8xf32>, vector<8x8xf32>, vector<8x8xf32>, vector<8x8xf32> -> vector<8x32xf32>
    %281 = vector.extract_strided_slice %216 {offsets = [8, 0], sizes = [8, 8], strides = [1, 1]} : vector<16x64xf32> to vector<8x8xf32>
    %282 = vector.extract_strided_slice %216 {offsets = [8, 32], sizes = [8, 8], strides = [1, 1]} : vector<16x64xf32> to vector<8x8xf32>
    %283 = vector.extract_strided_slice %223 {offsets = [8, 0], sizes = [8, 8], strides = [1, 1]} : vector<16x32xf32> to vector<8x8xf32>
    "tpu.trace_start"() <{level = 10 : i32, message = "qd,kd->qk"}> : () -> ()
    %cst_117 = arith.constant dense<0.000000e+00> : vector<8x8xf32>
    %284 = tpu.matmul %281, %282, %cst_117 {dimension_numbers = #tpu.dot_dimension_numbers<[1], [1], [0], [0], [0, 0, 1, 0], [], []>} : vector<8x8xf32>, vector<8x8xf32>, vector<8x8xf32> -> vector<8x8xf32>
    "tpu.trace_stop"() : () -> ()
    %cst_118 = arith.constant dense<0xFF800000> : vector<8xf32>
    %285 = vector.multi_reduction <maximumf>, %284, %cst_118 [1] : vector<8x8xf32> to vector<8xf32>
    %286 = vector.shape_cast %285 : vector<8xf32> to vector<8x1xf32>
    %287 = vector.broadcast %286 : vector<8x1xf32> to vector<8x8xf32>
    %288 = arith.subf %284, %287 : vector<8x8xf32>
    %289 = math.exp %288 : vector<8x8xf32>
    %cst_119 = arith.constant dense<0.000000e+00> : vector<8xf32>
    %290 = vector.multi_reduction <add>, %289, %cst_119 [1] : vector<8x8xf32> to vector<8xf32>
    %291 = vector.shape_cast %290 : vector<8xf32> to vector<8x1xf32>
    %292 = vector.broadcast %291 : vector<8x1xf32> to vector<8x8xf32>
    %293 = arith.divf %289, %292 : vector<8x8xf32>
    %cst_120 = arith.constant dense<0.000000e+00> : vector<8x8xf32>
    %294 = tpu.matmul %293, %283, %cst_120 {dimension_numbers = #tpu.dot_dimension_numbers<[1], [0], [0], [1], [0, 0, 1, 1], [], []>} : vector<8x8xf32>, vector<8x8xf32>, vector<8x8xf32> -> vector<8x8xf32>
    %295 = vector.extract_strided_slice %216 {offsets = [8, 8], sizes = [8, 8], strides = [1, 1]} : vector<16x64xf32> to vector<8x8xf32>
    %296 = vector.extract_strided_slice %216 {offsets = [8, 40], sizes = [8, 8], strides = [1, 1]} : vector<16x64xf32> to vector<8x8xf32>
    %297 = vector.extract_strided_slice %223 {offsets = [8, 8], sizes = [8, 8], strides = [1, 1]} : vector<16x32xf32> to vector<8x8xf32>
    "tpu.trace_start"() <{level = 10 : i32, message = "qd,kd->qk"}> : () -> ()
    %cst_121 = arith.constant dense<0.000000e+00> : vector<8x8xf32>
    %298 = tpu.matmul %295, %296, %cst_121 {dimension_numbers = #tpu.dot_dimension_numbers<[1], [1], [0], [0], [0, 0, 1, 0], [], []>} : vector<8x8xf32>, vector<8x8xf32>, vector<8x8xf32> -> vector<8x8xf32>
    "tpu.trace_stop"() : () -> ()
    %cst_122 = arith.constant dense<0xFF800000> : vector<8xf32>
    %299 = vector.multi_reduction <maximumf>, %298, %cst_122 [1] : vector<8x8xf32> to vector<8xf32>
    %300 = vector.shape_cast %299 : vector<8xf32> to vector<8x1xf32>
    %301 = vector.broadcast %300 : vector<8x1xf32> to vector<8x8xf32>
    %302 = arith.subf %298, %301 : vector<8x8xf32>
    %303 = math.exp %302 : vector<8x8xf32>
    %cst_123 = arith.constant dense<0.000000e+00> : vector<8xf32>
    %304 = vector.multi_reduction <add>, %303, %cst_123 [1] : vector<8x8xf32> to vector<8xf32>
    %305 = vector.shape_cast %304 : vector<8xf32> to vector<8x1xf32>
    %306 = vector.broadcast %305 : vector<8x1xf32> to vector<8x8xf32>
    %307 = arith.divf %303, %306 : vector<8x8xf32>
    %cst_124 = arith.constant dense<0.000000e+00> : vector<8x8xf32>
    %308 = tpu.matmul %307, %297, %cst_124 {dimension_numbers = #tpu.dot_dimension_numbers<[1], [0], [0], [1], [0, 0, 1, 1], [], []>} : vector<8x8xf32>, vector<8x8xf32>, vector<8x8xf32> -> vector<8x8xf32>
    %309 = vector.extract_strided_slice %216 {offsets = [8, 16], sizes = [8, 8], strides = [1, 1]} : vector<16x64xf32> to vector<8x8xf32>
    %310 = vector.extract_strided_slice %216 {offsets = [8, 48], sizes = [8, 8], strides = [1, 1]} : vector<16x64xf32> to vector<8x8xf32>
    %311 = vector.extract_strided_slice %223 {offsets = [8, 16], sizes = [8, 8], strides = [1, 1]} : vector<16x32xf32> to vector<8x8xf32>
    "tpu.trace_start"() <{level = 10 : i32, message = "qd,kd->qk"}> : () -> ()
    %cst_125 = arith.constant dense<0.000000e+00> : vector<8x8xf32>
    %312 = tpu.matmul %309, %310, %cst_125 {dimension_numbers = #tpu.dot_dimension_numbers<[1], [1], [0], [0], [0, 0, 1, 0], [], []>} : vector<8x8xf32>, vector<8x8xf32>, vector<8x8xf32> -> vector<8x8xf32>
    "tpu.trace_stop"() : () -> ()
    %cst_126 = arith.constant dense<0xFF800000> : vector<8xf32>
    %313 = vector.multi_reduction <maximumf>, %312, %cst_126 [1] : vector<8x8xf32> to vector<8xf32>
    %314 = vector.shape_cast %313 : vector<8xf32> to vector<8x1xf32>
    %315 = vector.broadcast %314 : vector<8x1xf32> to vector<8x8xf32>
    %316 = arith.subf %312, %315 : vector<8x8xf32>
    %317 = math.exp %316 : vector<8x8xf32>
    %cst_127 = arith.constant dense<0.000000e+00> : vector<8xf32>
    %318 = vector.multi_reduction <add>, %317, %cst_127 [1] : vector<8x8xf32> to vector<8xf32>
    %319 = vector.shape_cast %318 : vector<8xf32> to vector<8x1xf32>
    %320 = vector.broadcast %319 : vector<8x1xf32> to vector<8x8xf32>
    %321 = arith.divf %317, %320 : vector<8x8xf32>
    %cst_128 = arith.constant dense<0.000000e+00> : vector<8x8xf32>
    %322 = tpu.matmul %321, %311, %cst_128 {dimension_numbers = #tpu.dot_dimension_numbers<[1], [0], [0], [1], [0, 0, 1, 1], [], []>} : vector<8x8xf32>, vector<8x8xf32>, vector<8x8xf32> -> vector<8x8xf32>
    %323 = vector.extract_strided_slice %216 {offsets = [8, 24], sizes = [8, 8], strides = [1, 1]} : vector<16x64xf32> to vector<8x8xf32>
    %324 = vector.extract_strided_slice %216 {offsets = [8, 56], sizes = [8, 8], strides = [1, 1]} : vector<16x64xf32> to vector<8x8xf32>
    %325 = vector.extract_strided_slice %223 {offsets = [8, 24], sizes = [8, 8], strides = [1, 1]} : vector<16x32xf32> to vector<8x8xf32>
    "tpu.trace_start"() <{level = 10 : i32, message = "qd,kd->qk"}> : () -> ()
    %cst_129 = arith.constant dense<0.000000e+00> : vector<8x8xf32>
    %326 = tpu.matmul %323, %324, %cst_129 {dimension_numbers = #tpu.dot_dimension_numbers<[1], [1], [0], [0], [0, 0, 1, 0], [], []>} : vector<8x8xf32>, vector<8x8xf32>, vector<8x8xf32> -> vector<8x8xf32>
    "tpu.trace_stop"() : () -> ()
    %cst_130 = arith.constant dense<0xFF800000> : vector<8xf32>
    %327 = vector.multi_reduction <maximumf>, %326, %cst_130 [1] : vector<8x8xf32> to vector<8xf32>
    %328 = vector.shape_cast %327 : vector<8xf32> to vector<8x1xf32>
    %329 = vector.broadcast %328 : vector<8x1xf32> to vector<8x8xf32>
    %330 = arith.subf %326, %329 : vector<8x8xf32>
    %331 = math.exp %330 : vector<8x8xf32>
    %cst_131 = arith.constant dense<0.000000e+00> : vector<8xf32>
    %332 = vector.multi_reduction <add>, %331, %cst_131 [1] : vector<8x8xf32> to vector<8xf32>
    %333 = vector.shape_cast %332 : vector<8xf32> to vector<8x1xf32>
    %334 = vector.broadcast %333 : vector<8x1xf32> to vector<8x8xf32>
    %335 = arith.divf %331, %334 : vector<8x8xf32>
    %cst_132 = arith.constant dense<0.000000e+00> : vector<8x8xf32>
    %336 = tpu.matmul %335, %325, %cst_132 {dimension_numbers = #tpu.dot_dimension_numbers<[1], [0], [0], [1], [0, 0, 1, 1], [], []>} : vector<8x8xf32>, vector<8x8xf32>, vector<8x8xf32> -> vector<8x8xf32>
    %337 = tpu.concatenate %294, %308, %322, %336 in 1 : vector<8x8xf32>, vector<8x8xf32>, vector<8x8xf32>, vector<8x8xf32> -> vector<8x32xf32>
    %338 = tpu.concatenate %280, %337 in 0 : vector<8x32xf32>, vector<8x32xf32> -> vector<16x32xf32>
    %c1_133 = arith.constant 1 : index
    %c0_134 = arith.constant 0 : index
    %c0_135 = arith.constant 0 : index
    %339 = vector.load %arg6[%c1_133, %c0_134, %c0_135] : memref<2x32x32xf32, #tpu.memory_space<vmem>>, vector<1x32x32xf32>
    %340 = vector.shape_cast %339 : vector<1x32x32xf32> to vector<32x32xf32>
    %cst_136 = arith.constant dense<0.000000e+00> : vector<16x32xf32>
    %341 = tpu.matmul %338, %340, %cst_136 {dimension_numbers = #tpu.dot_dimension_numbers<[1], [0], [0], [1], [0, 0, 1, 1], [], []>} : vector<16x32xf32>, vector<32x32xf32>, vector<16x32xf32> -> vector<16x32xf32>
    %c1_137 = arith.constant 1 : index
    %c0_138 = arith.constant 0 : index
    %c0_139 = arith.constant 0 : index
    %342 = vector.load %arg7[%c1_137, %c0_138, %c0_139] : memref<2x6x32xf32, #tpu.memory_space<vmem>>, vector<1x1x32xf32>
    %343 = vector.shape_cast %342 : vector<1x1x32xf32> to vector<1x32xf32>
    %344 = vector.broadcast %343 : vector<1x32xf32> to vector<16x32xf32>
    %345 = arith.addf %341, %344 : vector<16x32xf32>
    %346 = arith.addf %208, %345 : vector<16x32xf32>
    %c1_140 = arith.constant 1 : index
    %c2_141 = arith.constant 2 : index
    %c0_142 = arith.constant 0 : index
    %347 = vector.load %arg7[%c1_140, %c2_141, %c0_142] : memref<2x6x32xf32, #tpu.memory_space<vmem>>, vector<1x1x32xf32>
    %348 = vector.shape_cast %347 : vector<1x1x32xf32> to vector<1x32xf32>
    %c1_143 = arith.constant 1 : index
    %c3_144 = arith.constant 3 : index
    %c0_145 = arith.constant 0 : index
    %349 = vector.load %arg7[%c1_143, %c3_144, %c0_145] : memref<2x6x32xf32, #tpu.memory_space<vmem>>, vector<1x1x32xf32>
    %350 = vector.shape_cast %349 : vector<1x1x32xf32> to vector<1x32xf32>
    %cst_146 = arith.constant dense<0.000000e+00> : vector<16xf32>
    %351 = vector.multi_reduction <add>, %346, %cst_146 [1] : vector<16x32xf32> to vector<16xf32>
    %352 = vector.shape_cast %351 : vector<16xf32> to vector<16x1xf32>
    %cst_147 = arith.constant 3.200000e+01 : f32
    %353 = vector.broadcast %cst_147 : f32 to vector<16x1xf32>
    %354 = arith.divf %352, %353 : vector<16x1xf32>
    %355 = vector.broadcast %354 : vector<16x1xf32> to vector<16x32xf32>
    %356 = arith.subf %346, %355 : vector<16x32xf32>
    %357 = arith.mulf %356, %356 : vector<16x32xf32>
    %cst_148 = arith.constant dense<0.000000e+00> : vector<16xf32>
    %358 = vector.multi_reduction <add>, %357, %cst_148 [1] : vector<16x32xf32> to vector<16xf32>
    %359 = vector.shape_cast %358 : vector<16xf32> to vector<16x1xf32>
    %cst_149 = arith.constant 3.200000e+01 : f32
    %360 = vector.broadcast %cst_149 : f32 to vector<16x1xf32>
    %361 = arith.divf %359, %360 : vector<16x1xf32>
    %362 = vector.broadcast %354 : vector<16x1xf32> to vector<16x32xf32>
    %363 = arith.subf %346, %362 : vector<16x32xf32>
    %cst_150 = arith.constant 9.99999974E-6 : f32
    %364 = vector.broadcast %cst_150 : f32 to vector<16x1xf32>
    %365 = arith.addf %361, %364 : vector<16x1xf32>
    %366 = math.rsqrt %365 : vector<16x1xf32>
    %367 = vector.broadcast %366 : vector<16x1xf32> to vector<16x32xf32>
    %368 = arith.mulf %363, %367 : vector<16x32xf32>
    %369 = vector.broadcast %348 : vector<1x32xf32> to vector<16x32xf32>
    %370 = arith.mulf %368, %369 : vector<16x32xf32>
    %371 = vector.broadcast %350 : vector<1x32xf32> to vector<16x32xf32>
    %372 = arith.addf %370, %371 : vector<16x32xf32>
    %c1_151 = arith.constant 1 : index
    %c0_152 = arith.constant 0 : index
    %c0_153 = arith.constant 0 : index
    %373 = vector.load %arg8[%c1_151, %c0_152, %c0_153] : memref<2x32x64xf32, #tpu.memory_space<vmem>>, vector<1x32x64xf32>
    %374 = vector.shape_cast %373 : vector<1x32x64xf32> to vector<32x64xf32>
    %cst_154 = arith.constant dense<0.000000e+00> : vector<16x64xf32>
    %375 = tpu.matmul %372, %374, %cst_154 {dimension_numbers = #tpu.dot_dimension_numbers<[1], [0], [0], [1], [0, 0, 1, 1], [], []>} : vector<16x32xf32>, vector<32x64xf32>, vector<16x64xf32> -> vector<16x64xf32>
    %c1_155 = arith.constant 1 : index
    %c0_156 = arith.constant 0 : index
    %c0_157 = arith.constant 0 : index
    %376 = vector.load %arg9[%c1_155, %c0_156, %c0_157] : memref<2x1x64xf32, #tpu.memory_space<vmem>>, vector<1x1x64xf32>
    %377 = vector.shape_cast %376 : vector<1x1x64xf32> to vector<1x64xf32>
    %378 = vector.broadcast %377 : vector<1x64xf32> to vector<16x64xf32>
    %379 = arith.addf %375, %378 : vector<16x64xf32>
    %cst_158 = arith.constant 0.000000e+00 : f32
    %380 = vector.broadcast %cst_158 : f32 to vector<16x64xf32>
    %381 = arith.maximumf %379, %380 : vector<16x64xf32>
    %c1_159 = arith.constant 1 : index
    %c0_160 = arith.constant 0 : index
    %c0_161 = arith.constant 0 : index
    %382 = vector.load %arg10[%c1_159, %c0_160, %c0_161] : memref<2x64x32xf32, #tpu.memory_space<vmem>>, vector<1x64x32xf32>
    %383 = vector.shape_cast %382 : vector<1x64x32xf32> to vector<64x32xf32>
    %cst_162 = arith.constant dense<0.000000e+00> : vector<16x32xf32>
    %384 = tpu.matmul %381, %383, %cst_162 {dimension_numbers = #tpu.dot_dimension_numbers<[1], [0], [0], [1], [0, 0, 1, 1], [], []>} : vector<16x64xf32>, vector<64x32xf32>, vector<16x32xf32> -> vector<16x32xf32>
    %c1_163 = arith.constant 1 : index
    %c1_164 = arith.constant 1 : index
    %c0_165 = arith.constant 0 : index
    %385 = vector.load %arg7[%c1_163, %c1_164, %c0_165] : memref<2x6x32xf32, #tpu.memory_space<vmem>>, vector<1x1x32xf32>
    %386 = vector.shape_cast %385 : vector<1x1x32xf32> to vector<1x32xf32>
    %387 = vector.broadcast %386 : vector<1x32xf32> to vector<16x32xf32>
    %388 = arith.addf %384, %387 : vector<16x32xf32>
    %389 = arith.addf %372, %388 : vector<16x32xf32>
    %c1_166 = arith.constant 1 : index
    %c4_167 = arith.constant 4 : index
    %c0_168 = arith.constant 0 : index
    %390 = vector.load %arg7[%c1_166, %c4_167, %c0_168] : memref<2x6x32xf32, #tpu.memory_space<vmem>>, vector<1x1x32xf32>
    %391 = vector.shape_cast %390 : vector<1x1x32xf32> to vector<1x32xf32>
    %c1_169 = arith.constant 1 : index
    %c5_170 = arith.constant 5 : index
    %c0_171 = arith.constant 0 : index
    %392 = vector.load %arg7[%c1_169, %c5_170, %c0_171] : memref<2x6x32xf32, #tpu.memory_space<vmem>>, vector<1x1x32xf32>
    %393 = vector.shape_cast %392 : vector<1x1x32xf32> to vector<1x32xf32>
    %cst_172 = arith.constant dense<0.000000e+00> : vector<16xf32>
    %394 = vector.multi_reduction <add>, %389, %cst_172 [1] : vector<16x32xf32> to vector<16xf32>
    %395 = vector.shape_cast %394 : vector<16xf32> to vector<16x1xf32>
    %cst_173 = arith.constant 3.200000e+01 : f32
    %396 = vector.broadcast %cst_173 : f32 to vector<16x1xf32>
    %397 = arith.divf %395, %396 : vector<16x1xf32>
    %398 = vector.broadcast %397 : vector<16x1xf32> to vector<16x32xf32>
    %399 = arith.subf %389, %398 : vector<16x32xf32>
    %400 = arith.mulf %399, %399 : vector<16x32xf32>
    %cst_174 = arith.constant dense<0.000000e+00> : vector<16xf32>
    %401 = vector.multi_reduction <add>, %400, %cst_174 [1] : vector<16x32xf32> to vector<16xf32>
    %402 = vector.shape_cast %401 : vector<16xf32> to vector<16x1xf32>
    %cst_175 = arith.constant 3.200000e+01 : f32
    %403 = vector.broadcast %cst_175 : f32 to vector<16x1xf32>
    %404 = arith.divf %402, %403 : vector<16x1xf32>
    %405 = vector.broadcast %397 : vector<16x1xf32> to vector<16x32xf32>
    %406 = arith.subf %389, %405 : vector<16x32xf32>
    %cst_176 = arith.constant 9.99999974E-6 : f32
    %407 = vector.broadcast %cst_176 : f32 to vector<16x1xf32>
    %408 = arith.addf %404, %407 : vector<16x1xf32>
    %409 = math.rsqrt %408 : vector<16x1xf32>
    %410 = vector.broadcast %409 : vector<16x1xf32> to vector<16x32xf32>
    %411 = arith.mulf %406, %410 : vector<16x32xf32>
    %412 = vector.broadcast %391 : vector<1x32xf32> to vector<16x32xf32>
    %413 = arith.mulf %411, %412 : vector<16x32xf32>
    %414 = vector.broadcast %393 : vector<1x32xf32> to vector<16x32xf32>
    %415 = arith.addf %413, %414 : vector<16x32xf32>
    %c0_177 = arith.constant 0 : index
    %c0_178 = arith.constant 0 : index
    %416 = vector.load %arg11[%c0_177, %c0_178] : memref<16x32xf32, #tpu.memory_space<vmem>>, vector<16x32xf32>
    tpu.vector_store %arg11[%c0_177, %c0_178], %415 {strides = array<i32>} : memref<16x32xf32, #tpu.memory_space<vmem>>, vector<16x32xf32>,
    return
  }
}

</mosaic_0001>

<llo_original>
// kernel: tpu_custom_call.1
$region0: #{tpu_custom_call.1}
  #allocation0 [shape = 'u32[]', space=smem, size = 0x4, offset = 0x4, fixed_abs, tag = 'smem constant byte address 0x4 - core index']
  #allocation1 [shape = 'u32[144,128]{1,0:T(1,128)}', space=vmem, size = 0x12000, scoped, tag = 'internal scratch']
  %s0 = inlined_call_operand.vmem [shape: f32[16,32], index: 0, kind: input, shape index: {}]
  %s1 = inlined_call_operand.hbm [shape: f32[16,32], index: 1, kind: input, shape index: {}]
  %s2 = inlined_call_operand.vmem [shape: f32[2,32,64], index: 2, kind: input, shape index: {}]
  %s3 = inlined_call_operand.vmem [shape: f32[2,1,64], index: 3, kind: input, shape index: {}]
  %s4 = inlined_call_operand.vmem [shape: f32[2,32,32], index: 4, kind: input, shape index: {}]
  %s5 = inlined_call_operand.vmem [shape: f32[2,1,32], index: 5, kind: input, shape index: {}]
  %s6 = inlined_call_operand.vmem [shape: f32[2,32,32], index: 6, kind: input, shape index: {}]
  %s7 = inlined_call_operand.vmem [shape: f32[2,6,32], index: 7, kind: input, shape index: {}]
  %s8 = inlined_call_operand.hbm [shape: f32[2,32,64], index: 8, kind: input, shape index: {}]
  %s9 = inlined_call_operand.vmem [shape: f32[2,1,64], index: 9, kind: input, shape index: {}]
  %s10 = inlined_call_operand.vmem [shape: f32[2,64,32], index: 10, kind: input, shape index: {}]
  %s11 = inlined_call_operand.hbm [shape: f32[16,32], index: 11, kind: output, shape index: {}]
  %s12 = sld [smem:[#allocation0]]
  $region62: #{tpu_custom_call.1} parent=0
    _
  %s14 = ssub.s32 1, %s12
  %s15 = scalar_select 0, %s14, %s12
  $region1: #{tpu_custom_call.1} parent=0
    #allocation2 [shape = 'u8[8192]{0}', space=vmem, size = 0x2000, scoped, tag = 'input window, operand 1, single buffered']
    #allocation3 [shape = 's32[1]{0}', space=sflag, size = 0x4, scoped, tag = 'scoped memory for tpu_custom_call.1']
    #allocation4 [shape = 's32[1]{0}', space=sflag, size = 0x4, scoped, tag = 'scoped memory for tpu_custom_call.1']
    #allocation5 [shape = 'u8[32768]{0}', space=vmem, size = 0x8000, scoped, tag = 'input window, operand 8, single buffered']
    #allocation6 [shape = 's32[1]{0}', space=sflag, size = 0x4, scoped, tag = 'scoped memory for tpu_custom_call.1']
    #allocation7 [shape = 'u8[8192]{0}', space=vmem, size = 0x2000, scoped, tag = 'output window, operand 0, single buffered']
    %16 = vsyncpa [#allocation3], 0
    %17 = vsyncpa [#allocation6], 0
    %18 = vsyncpa [#allocation4], 0
    // Predicated region
    $region2: #{tpu_custom_call.1} parent=1 // pred_check
      _
    $region3: #{tpu_custom_call.1} parent=1 // pred_check_branch
      %20 = sbr.rel (0) target = $region5
    $region4: #{tpu_custom_call.1} parent=1 // pred_region
      _
    $region5: #{tpu_custom_call.1} parent=1 // pred_fallthru
      _
    // Predicated region
    $region6: #{tpu_custom_call.1} parent=1 // pred_check
      _
    $region7: #{tpu_custom_call.1} parent=1 // pred_check_branch
      %22 = sbr.rel (0) target = $region9
    $region8: #{tpu_custom_call.1} parent=1 // pred_region
      %s24 = ssub.s32 256, 256
      %25 = vsyncadd [#allocation3], %s24
      %s26 = sshll.u32 [#allocation2], 4
      %s27 = int_to_ptr.vmem [resolvable:$true] %s26
      %32 = dma.hbm_to_vmem [thread:$0]  %s1, 256, %s27, [#allocation3], 128, 128, 8
    $region9: #{tpu_custom_call.1} parent=1 // pred_fallthru
      _
    // Predicated region
    $region10: #{tpu_custom_call.1} parent=1 // pred_check
      _
    $region11: #{tpu_custom_call.1} parent=1 // pred_check_branch
      %34 = sbr.rel (0) target = $region13
    $region12: #{tpu_custom_call.1} parent=1 // pred_region
      _
    $region13: #{tpu_custom_call.1} parent=1 // pred_fallthru
      _
    // Predicated region
    $region14: #{tpu_custom_call.1} parent=1 // pred_check
      _
    $region15: #{tpu_custom_call.1} parent=1 // pred_check_branch
      %36 = sbr.rel (0) target = $region17
    $region16: #{tpu_custom_call.1} parent=1 // pred_region
      _
    $region17: #{tpu_custom_call.1} parent=1 // pred_fallthru
      _
    // Predicated region
    $region18: #{tpu_custom_call.1} parent=1 // pred_check
      _
    $region19: #{tpu_custom_call.1} parent=1 // pred_check_branch
      %38 = sbr.rel (0) target = $region21
    $region20: #{tpu_custom_call.1} parent=1 // pred_region
      _
    $region21: #{tpu_custom_call.1} parent=1 // pred_fallthru
      _
    // Predicated region
    $region22: #{tpu_custom_call.1} parent=1 // pred_check
      _
    $region23: #{tpu_custom_call.1} parent=1 // pred_check_branch
      %40 = sbr.rel (0) target = $region25
    $region24: #{tpu_custom_call.1} parent=1 // pred_region
      _
    $region25: #{tpu_custom_call.1} parent=1 // pred_fallthru
      _
    // Predicated region
    $region26: #{tpu_custom_call.1} parent=1 // pred_check
      _
    $region27: #{tpu_custom_call.1} parent=1 // pred_check_branch
      %42 = sbr.rel (0) target = $region29
    $region28: #{tpu_custom_call.1} parent=1 // pred_region
      _
    $region29: #{tpu_custom_call.1} parent=1 // pred_fallthru
      _
    // Predicated region
    $region30: #{tpu_custom_call.1} parent=1 // pred_check
      _
    $region31: #{tpu_custom_call.1} parent=1 // pred_check_branch
      %44 = sbr.rel (0) target = $region33
    $region32: #{tpu_custom_call.1} parent=1 // pred_region
      _
    $region33: #{tpu_custom_call.1} parent=1 // pred_fallthru
      _
    // Predicated region
    $region34: #{tpu_custom_call.1} parent=1 // pred_check
      _
    $region35: #{tpu_custom_call.1} parent=1 // pred_check_branch
      %46 = sbr.rel (0) target = $region37
    $region36: #{tpu_custom_call.1} parent=1 // pred_region
      %s48 = ssub.s32 1024, 1024
      %49 = vsyncadd [#allocation6], %s48
      %s50 = sshll.u32 [#allocation5], 4
      %s51 = int_to_ptr.vmem [resolvable:$true] %s50
      %56 = dma.hbm_to_vmem [thread:$0]  %s8, 1024, %s51, [#allocation6], 128, 128, 8
    $region37: #{tpu_custom_call.1} parent=1 // pred_fallthru
      _
    // Predicated region
    $region38: #{tpu_custom_call.1} parent=1 // pred_check
      _
    $region39: #{tpu_custom_call.1} parent=1 // pred_check_branch
      %58 = sbr.rel (0) target = $region41
    $region40: #{tpu_custom_call.1} parent=1 // pred_region
      _
    $region41: #{tpu_custom_call.1} parent=1 // pred_fallthru
      _
    // Predicated region
    $region42: #{tpu_custom_call.1} parent=1 // pred_check
      _
    $region43: #{tpu_custom_call.1} parent=1 // pred_check_branch
      %60 = sbr.rel (0) target = $region45
    $region44: #{tpu_custom_call.1} parent=1 // pred_region
      _
    $region45: #{tpu_custom_call.1} parent=1 // pred_fallthru
      _
    // Predicated region
    $region46: #{tpu_custom_call.1} parent=1 // pred_check
      _
    $region47: #{tpu_custom_call.1} parent=1 // pred_check_branch
      %62 = sbr.rel (0) target = $region49
    $region48: #{tpu_custom_call.1} parent=1 // pred_region
      %63 = dma.done [#allocation3], 256
    $region49: #{tpu_custom_call.1} parent=1 // pred_fallthru
      _
    // Predicated region
    $region50: #{tpu_custom_call.1} parent=1 // pred_check
      _
    $region51: #{tpu_custom_call.1} parent=1 // pred_check_branch
      %65 = sbr.rel (0) target = $region53
    $region52: #{tpu_custom_call.1} parent=1 // pred_region
      %66 = dma.done [#allocation6], 1024
    $region53: #{tpu_custom_call.1} parent=1 // pred_fallthru
      _
    %v67 = vld [vmem:[%s0] sm:$0xff]
    %v68 = vld [vmem:[%s0 + $0x8] sm:$0xff]
    %v69 = vld [vmem:[#allocation2] sm:$0xff]
    %v70 = vld [vmem:[#allocation2 + $0x8] sm:$0xff]
    %v71 = vadd.f32 %v67, %v69
    %v72 = vadd.f32 %v68, %v70
    %v73 = vld [vmem:[%s2] sm:$0xff]
    %v74 = vld [vmem:[%s2 + $0x8] sm:$0xff]
    %v75 = vld [vmem:[%s2 + $0x10] sm:$0xff]
    %v76 = vld [vmem:[%s2 + $0x18] sm:$0xff]
    %v77 = vld [vmem:[%s3] sm:$0x1]
    %v79 = vlaneseq
    %v80 = vshrl.u32 %v79, 7
    %v81 = vsub.s32 0, %v80
    %v82 = vrot.slane %v77, %v81
    %vm84 = vcmask 261120
    %v86 = vsel %vm84, %v71, 0
    %v89 = vsel %vm84, %v72, 0
    %91 = vmatprep.subr.mxu0 0.0
    %92 = vmatpush1.msra.mxu0 0.0
    %93 = vmatprep.subr.mxu0 0.0
    %94 = vmatpush1.msra.mxu0 0.0
    %95 = vmatprep.subr.mxu0 0.0
    %96 = vmatpush1.msra.mxu0 0.0
    %97 = vmatprep.subr.mxu0 0.0
    %98 = vmatpush1.msra.mxu0 0.0
    %99 = vmatprep.subr.mxu0 0.0
    %100 = vmatpush1.msra.mxu0 0.0
    %101 = vmatprep.subr.mxu0 0.0
    %102 = vmatpush1.msra.mxu0 0.0
    %103 = vmatprep.subr.mxu0 0.0
    %104 = vmatpush1.msra.mxu0 0.0
    %105 = vmatprep.subr.mxu0 0.0
    %106 = vmatpush1.msra.mxu0 0.0
    %107 = vmatprep.subr.mxu0 0.0
    %108 = vmatpush1.msra.mxu0 0.0
    %109 = vmatprep.subr.mxu0 0.0
    %110 = vmatpush1.msra.mxu0 0.0
    %111 = vmatprep.subr.mxu0 0.0
    %112 = vmatpush1.msra.mxu0 0.0
    %113 = vmatprep.subr.mxu0 0.0
    %114 = vmatpush1.msra.mxu0 0.0
    %115 = vmatprep.subr.mxu0 0.0
    %116 = vmatpush1.msra.mxu0 %v76
    %117 = vmatprep.subr.mxu0 0.0
    %118 = vmatpush1.msra.mxu0 %v75
    %119 = vmatprep.subr.mxu0 0.0
    %120 = vmatpush1.msra.mxu0 %v74
    %121 = vmatprep.subr.mxu0 0.0
    %122 = vmatpush1.msra.mxu0 %v73
    %123 = vmatprep.subr.mxu0 0.0
    %124 = vmatpush2.msra.mxu0 0.0
    %125 = vmatprep.subr.mxu0 0.0
    %126 = vmatpush2.msra.mxu0 0.0
    %127 = vmatprep.subr.mxu0 0.0
    %128 = vmatpush2.msra.mxu0 0.0
    %129 = vmatprep.subr.mxu0 0.0
    %130 = vmatpush2.msra.mxu0 0.0
    %131 = vmatprep.subr.mxu0 0.0
    %132 = vmatpush2.msra.mxu0 0.0
    %133 = vmatprep.subr.mxu0 0.0
    %134 = vmatpush2.msra.mxu0 0.0
    %135 = vmatprep.subr.mxu0 0.0
    %136 = vmatpush2.msra.mxu0 0.0
    %137 = vmatprep.subr.mxu0 0.0
    %138 = vmatpush2.msra.mxu0 0.0
    %139 = vmatprep.subr.mxu0 0.0
    %140 = vmatpush2.msra.mxu0 0.0
    %141 = vmatprep.subr.mxu0 0.0
    %142 = vmatpush2.msra.mxu0 0.0
    %143 = vmatprep.subr.mxu0 0.0
    %144 = vmatpush2.msra.mxu0 0.0
    %145 = vmatprep.subr.mxu0 0.0
    %146 = vmatpush2.msra.mxu0 0.0
    %147 = vmatprep.subr.mxu0 0.0
    %148 = vmatpush2.msra.mxu0 0.0
    %149 = vmatprep.subr.mxu0 0.0
    %150 = vmatpush2.msra.mxu0 0.0
    %151 = vmatprep.subr.mxu0 0.0
    %152 = vmatpush2.msra.mxu0 0.0
    %153 = vmatprep.subr.mxu0 0.0
    %154 = vmatpush2.msra.mxu0 0.0
    %155 = vmatprep.mubr.f32.mxu0 0.0
    %156 = vmatmul.mubr.f32.gmra.mxu0 %v86
    %v157 = vpop.f32.mrf.mxu0
    %v158 = vadd.f32 %v82, %v157
    %v159 = vpop.f32.mrf.mxu0
    %160 = vmatprep.mubr.f32.mxu0 0.0
    %161 = vmatmul.mubr.f32.gmra.mxu0 %v89
    %v162 = vpop.f32.mrf.mxu0
    %v163 = vadd.f32 %v82, %v162
    %v164 = vpop.f32.mrf.mxu0
    %165 = vdwg.mxu0
    %v166 = vld [vmem:[%s4] sm:$0xff]
    %v167 = vld [vmem:[%s4 + $0x8] sm:$0xff]
    %v168 = vld [vmem:[%s4 + $0x10] sm:$0xff]
    %v169 = vld [vmem:[%s4 + $0x18] sm:$0xff]
    %v170 = vld [vmem:[%s5] sm:$0x1]
    %v172 = vlaneseq
    %v173 = vshrl.u32 %v172, 7
    %v174 = vsub.s32 0, %v173
    %v175 = vrot.slane %v170, %v174
    %v178 = vsel %vm84, %v67, 0
    %v181 = vsel %vm84, %v68, 0
    %183 = vmatprep.subr.mxu0 0.0
    %184 = vmatpush1.msra.mxu0 0.0
    %185 = vmatprep.subr.mxu0 0.0
    %186 = vmatpush1.msra.mxu0 0.0
    %187 = vmatprep.subr.mxu0 0.0
    %188 = vmatpush1.msra.mxu0 0.0
    %189 = vmatprep.subr.mxu0 0.0
    %190 = vmatpush1.msra.mxu0 0.0
    %191 = vmatprep.subr.mxu0 0.0
    %192 = vmatpush1.msra.mxu0 0.0
    %193 = vmatprep.subr.mxu0 0.0
    %194 = vmatpush1.msra.mxu0 0.0
    %195 = vmatprep.subr.mxu0 0.0
    %196 = vmatpush1.msra.mxu0 0.0
    %197 = vmatprep.subr.mxu0 0.0
    %198 = vmatpush1.msra.mxu0 0.0
    %199 = vmatprep.subr.mxu0 0.0
    %200 = vmatpush1.msra.mxu0 0.0
    %201 = vmatprep.subr.mxu0 0.0
    %202 = vmatpush1.msra.mxu0 0.0
    %203 = vmatprep.subr.mxu0 0.0
    %204 = vmatpush1.msra.mxu0 0.0
    %205 = vmatprep.subr.mxu0 0.0
    %206 = vmatpush1.msra.mxu0 0.0
    %207 = vmatprep.subr.mxu0 0.0
    %208 = vmatpush1.msra.mxu0 %v169
    %209 = vmatprep.subr.mxu0 0.0
    %210 = vmatpush1.msra.mxu0 %v168
    %211 = vmatprep.subr.mxu0 0.0
    %212 = vmatpush1.msra.mxu0 %v167
    %213 = vmatprep.subr.mxu0 0.0
    %214 = vmatpush1.msra.mxu0 %v166
    %215 = vmatprep.subr.mxu0 0.0
    %216 = vmatpush2.msra.mxu0 0.0
    %217 = vmatprep.subr.mxu0 0.0
    %218 = vmatpush2.msra.mxu0 0.0
    %219 = vmatprep.subr.mxu0 0.0
    %220 = vmatpush2.msra.mxu0 0.0
    %221 = vmatprep.subr.mxu0 0.0
    %222 = vmatpush2.msra.mxu0 0.0
    %223 = vmatprep.subr.mxu0 0.0
    %224 = vmatpush2.msra.mxu0 0.0
    %225 = vmatprep.subr.mxu0 0.0
    %226 = vmatpush2.msra.mxu0 0.0
    %227 = vmatprep.subr.mxu0 0.0
    %228 = vmatpush2.msra.mxu0 0.0
    %229 = vmatprep.subr.mxu0 0.0
    %230 = vmatpush2.msra.mxu0 0.0
    %231 = vmatprep.subr.mxu0 0.0
    %232 = vmatpush2.msra.mxu0 0.0
    %233 = vmatprep.subr.mxu0 0.0
    %234 = vmatpush2.msra.mxu0 0.0
    %235 = vmatprep.subr.mxu0 0.0
    %236 = vmatpush2.msra.mxu0 0.0
    %237 = vmatprep.subr.mxu0 0.0
    %238 = vmatpush2.msra.mxu0 0.0
    %239 = vmatprep.subr.mxu0 0.0
    %240 = vmatpush2.msra.mxu0 0.0
    %241 = vmatprep.subr.mxu0 0.0
    %242 = vmatpush2.msra.mxu0 0.0
    %243 = vmatprep.subr.mxu0 0.0
    %244 = vmatpush2.msra.mxu0 0.0
    %245 = vmatprep.subr.mxu0 0.0
    %246 = vmatpush2.msra.mxu0 0.0
    %247 = vmatprep.mubr.f32.mxu0 0.0
    %248 = vmatmul.mubr.f32.gmra.mxu0 %v178
    %v249 = vpop.f32.mrf.mxu0
    %v250 = vadd.f32 %v175, %v249
    %v251 = vpop.f32.mrf.mxu0
    %252 = vmatprep.mubr.f32.mxu0 0.0
    %253 = vmatmul.mubr.f32.gmra.mxu0 %v181
    %v254 = vpop.f32.mrf.mxu0
    %v255 = vadd.f32 %v175, %v254
    %v256 = vpop.f32.mrf.mxu0
    %257 = vdwg.mxu0
    %259 = vrot.lane.b32.xlu0 %v158, 96
    %v260 = vpop.permute.xlu0 %259
    %vm261 = vcmask 64512
    %v262 = vsel %vm261, %v158, 0
    %v264 = vsel %vm261, %v260, 0
    %266 = vmatprep.subr.mxu0 0.0
    %267 = vmatpush1.xpose.msra.mxu0 0.0
    %268 = vmatprep.subr.mxu0 0.0
    %269 = vmatpush1.xpose.msra.mxu0 0.0
    %270 = vmatprep.subr.mxu0 0.0
    %271 = vmatpush1.xpose.msra.mxu0 0.0
    %272 = vmatprep.subr.mxu0 0.0
    %273 = vmatpush1.xpose.msra.mxu0 0.0
    %274 = vmatprep.subr.mxu0 0.0
    %275 = vmatpush1.xpose.msra.mxu0 0.0
    %276 = vmatprep.subr.mxu0 0.0
    %277 = vmatpush1.xpose.msra.mxu0 0.0
    %278 = vmatprep.subr.mxu0 0.0
    %279 = vmatpush1.xpose.msra.mxu0 0.0
    %280 = vmatprep.subr.mxu0 0.0
    %281 = vmatpush1.xpose.msra.mxu0 0.0
    %282 = vmatprep.subr.mxu0 0.0
    %283 = vmatpush1.xpose.msra.mxu0 0.0
    %284 = vmatprep.subr.mxu0 0.0
    %285 = vmatpush1.xpose.msra.mxu0 0.0
    %286 = vmatprep.subr.mxu0 0.0
    %287 = vmatpush1.xpose.msra.mxu0 0.0
    %288 = vmatprep.subr.mxu0 0.0
    %289 = vmatpush1.xpose.msra.mxu0 0.0
    %290 = vmatprep.subr.mxu0 0.0
    %291 = vmatpush1.xpose.msra.mxu0 0.0
    %292 = vmatprep.subr.mxu0 0.0
    %293 = vmatpush1.xpose.msra.mxu0 0.0
    %294 = vmatprep.subr.mxu0 0.0
    %295 = vmatpush1.xpose.msra.mxu0 0.0
    %296 = vmatprep.subr.mxu0 0.0
    %297 = vmatpush1.xpose.msra.mxu0 %v264
    %298 = vmatprep.subr.mxu0 0.0
    %299 = vmatpush2.xpose.msra.mxu0 0.0
    %300 = vmatprep.subr.mxu0 0.0
    %301 = vmatpush2.xpose.msra.mxu0 0.0
    %302 = vmatprep.subr.mxu0 0.0
    %303 = vmatpush2.xpose.msra.mxu0 0.0
    %304 = vmatprep.subr.mxu0 0.0
    %305 = vmatpush2.xpose.msra.mxu0 0.0
    %306 = vmatprep.subr.mxu0 0.0
    %307 = vmatpush2.xpose.msra.mxu0 0.0
    %308 = vmatprep.subr.mxu0 0.0
    %309 = vmatpush2.xpose.msra.mxu0 0.0
    %310 = vmatprep.subr.mxu0 0.0
    %311 = vmatpush2.xpose.msra.mxu0 0.0
    %312 = vmatprep.subr.mxu0 0.0
    %313 = vmatpush2.xpose.msra.mxu0 0.0
    %314 = vmatprep.subr.mxu0 0.0
    %315 = vmatpush2.xpose.msra.mxu0 0.0
    %316 = vmatprep.subr.mxu0 0.0
    %317 = vmatpush2.xpose.msra.mxu0 0.0
    %318 = vmatprep.subr.mxu0 0.0
    %319 = vmatpush2.xpose.msra.mxu0 0.0
    %320 = vmatprep.subr.mxu0 0.0
    %321 = vmatpush2.xpose.msra.mxu0 0.0
    %322 = vmatprep.subr.mxu0 0.0
    %323 = vmatpush2.xpose.msra.mxu0 0.0
    %324 = vmatprep.subr.mxu0 0.0
    %325 = vmatpush2.xpose.msra.mxu0 0.0
    %326 = vmatprep.subr.mxu0 0.0
    %327 = vmatpush2.xpose.msra.mxu0 0.0
    %328 = vmatprep.subr.mxu0 0.0
    %329 = vmatpush2.xpose.msra.mxu0 0.0
    %330 = vmatprep.mubr.f32.mxu0 0.0
    %331 = vmatmul.mubr.f32.gmra.mxu0 %v262
    %v332 = vpop.f32.mrf.mxu0
    %v333 = vadd.f32 0.0, %v332
    %v334 = vpop.f32.mrf.mxu0
    %335 = vdwg.mxu0
    %v336 = vsel %vm261, %v333, -inf
    %337 = vmax.xlane.f32.xlu0 %v336
    %v338 = vpop.xlane.xlu0 %337
    %v339 = vsub.f32 %v333, %v338
    %v340 = vmul.f32 %v339, 1.442695
    %v341 = vpow.pop %v340
    %v342 = vsel %vm261, %v341, 0.0
    %343 = vadd.xlane.f32.xlu0 %v342
    %v344 = vpop.xlane.xlu0 %343
    %v345 = vrcp.pop %v344
    %v346 = vmul.f32 %v341, %v345
    %v348 = vsel %vm261, %v346, 0
    %350 = vmatprep.subr.mxu0 0.0
    %351 = vmatpush1.msra.mxu0 0.0
    %352 = vmatprep.subr.mxu0 0.0
    %353 = vmatpush1.msra.mxu0 0.0
    %354 = vmatprep.subr.mxu0 0.0
    %355 = vmatpush1.msra.mxu0 0.0
    %356 = vmatprep.subr.mxu0 0.0
    %357 = vmatpush1.msra.mxu0 0.0
    %358 = vmatprep.subr.mxu0 0.0
    %359 = vmatpush1.msra.mxu0 0.0
    %360 = vmatprep.subr.mxu0 0.0
    %361 = vmatpush1.msra.mxu0 0.0
    %362 = vmatprep.subr.mxu0 0.0
    %363 = vmatpush1.msra.mxu0 0.0
    %364 = vmatprep.subr.mxu0 0.0
    %365 = vmatpush1.msra.mxu0 0.0
    %366 = vmatprep.subr.mxu0 0.0
    %367 = vmatpush1.msra.mxu0 0.0
    %368 = vmatprep.subr.mxu0 0.0
    %369 = vmatpush1.msra.mxu0 0.0
    %370 = vmatprep.subr.mxu0 0.0
    %371 = vmatpush1.msra.mxu0 0.0
    %372 = vmatprep.subr.mxu0 0.0
    %373 = vmatpush1.msra.mxu0 0.0
    %374 = vmatprep.subr.mxu0 0.0
    %375 = vmatpush1.msra.mxu0 0.0
    %376 = vmatprep.subr.mxu0 0.0
    %377 = vmatpush1.msra.mxu0 0.0
    %378 = vmatprep.subr.mxu0 0.0
    %379 = vmatpush1.msra.mxu0 0.0
    %380 = vmatprep.subr.mxu0 0.0
    %381 = vmatpush1.msra.mxu0 %v250
    %382 = vmatprep.subr.mxu0 0.0
    %383 = vmatpush2.msra.mxu0 0.0
    %384 = vmatprep.subr.mxu0 0.0
    %385 = vmatpush2.msra.mxu0 0.0
    %386 = vmatprep.subr.mxu0 0.0
    %387 = vmatpush2.msra.mxu0 0.0
    %388 = vmatprep.subr.mxu0 0.0
    %389 = vmatpush2.msra.mxu0 0.0
    %390 = vmatprep.subr.mxu0 0.0
    %391 = vmatpush2.msra.mxu0 0.0
    %392 = vmatprep.subr.mxu0 0.0
    %393 = vmatpush2.msra.mxu0 0.0
    %394 = vmatprep.subr.mxu0 0.0
    %395 = vmatpush2.msra.mxu0 0.0
    %396 = vmatprep.subr.mxu0 0.0
    %397 = vmatpush2.msra.mxu0 0.0
    %398 = vmatprep.subr.mxu0 0.0
    %399 = vmatpush2.msra.mxu0 0.0
    %400 = vmatprep.subr.mxu0 0.0
    %401 = vmatpush2.msra.mxu0 0.0
    %402 = vmatprep.subr.mxu0 0.0
    %403 = vmatpush2.msra.mxu0 0.0
    %404 = vmatprep.subr.mxu0 0.0
    %405 = vmatpush2.msra.mxu0 0.0
    %406 = vmatprep.subr.mxu0 0.0
    %407 = vmatpush2.msra.mxu0 0.0
    %408 = vmatprep.subr.mxu0 0.0
    %409 = vmatpush2.msra.mxu0 0.0
    %410 = vmatprep.subr.mxu0 0.0
    %411 = vmatpush2.msra.mxu0 0.0
    %412 = vmatprep.subr.mxu0 0.0
    %413 = vmatpush2.msra.mxu0 0.0
    %414 = vmatprep.mubr.f32.mxu0 0.0
    %415 = vmatmul.mubr.f32.gmra.mxu0 %v348
    %v416 = vpop.f32.mrf.mxu0
    %v417 = vadd.f32 0.0, %v416
    %v418 = vpop.f32.mrf.mxu0
    %419 = vdwg.mxu0
    %420 = vrot.lane.b32.xlu0 %v158, 120
    %v421 = vpop.permute.xlu0 %420
    %422 = vrot.lane.b32.xlu0 %v158, 88
    %v423 = vpop.permute.xlu0 %422
    %v424 = vsel %vm261, %v421, 0
    %v426 = vsel %vm261, %v423, 0
    %428 = vmatprep.subr.mxu0 0.0
    %429 = vmatpush1.xpose.msra.mxu0 0.0
    %430 = vmatprep.subr.mxu0 0.0
    %431 = vmatpush1.xpose.msra.mxu0 0.0
    %432 = vmatprep.subr.mxu0 0.0
    %433 = vmatpush1.xpose.msra.mxu0 0.0
    %434 = vmatprep.subr.mxu0 0.0
    %435 = vmatpush1.xpose.msra.mxu0 0.0
    %436 = vmatprep.subr.mxu0 0.0
    %437 = vmatpush1.xpose.msra.mxu0 0.0
    %438 = vmatprep.subr.mxu0 0.0
    %439 = vmatpush1.xpose.msra.mxu0 0.0
    %440 = vmatprep.subr.mxu0 0.0
    %441 = vmatpush1.xpose.msra.mxu0 0.0
    %442 = vmatprep.subr.mxu0 0.0
    %443 = vmatpush1.xpose.msra.mxu0 0.0
    %444 = vmatprep.subr.mxu0 0.0
    %445 = vmatpush1.xpose.msra.mxu0 0.0
    %446 = vmatprep.subr.mxu0 0.0
    %447 = vmatpush1.xpose.msra.mxu0 0.0
    %448 = vmatprep.subr.mxu0 0.0
    %449 = vmatpush1.xpose.msra.mxu0 0.0
    %450 = vmatprep.subr.mxu0 0.0
    %451 = vmatpush1.xpose.msra.mxu0 0.0
    %452 = vmatprep.subr.mxu0 0.0
    %453 = vmatpush1.xpose.msra.mxu0 0.0
    %454 = vmatprep.subr.mxu0 0.0
    %455 = vmatpush1.xpose.msra.mxu0 0.0
    %456 = vmatprep.subr.mxu0 0.0
    %457 = vmatpush1.xpose.msra.mxu0 0.0
    %458 = vmatprep.subr.mxu0 0.0
    %459 = vmatpush1.xpose.msra.mxu0 %v426
    %460 = vmatprep.subr.mxu0 0.0
    %461 = vmatpush2.xpose.msra.mxu0 0.0
    %462 = vmatprep.subr.mxu0 0.0
    %463 = vmatpush2.xpose.msra.mxu0 0.0
    %464 = vmatprep.subr.mxu0 0.0
    %465 = vmatpush2.xpose.msra.mxu0 0.0
    %466 = vmatprep.subr.mxu0 0.0
    %467 = vmatpush2.xpose.msra.mxu0 0.0
    %468 = vmatprep.subr.mxu0 0.0
    %469 = vmatpush2.xpose.msra.mxu0 0.0
    %470 = vmatprep.subr.mxu0 0.0
    %471 = vmatpush2.xpose.msra.mxu0 0.0
    %472 = vmatprep.subr.mxu0 0.0
    %473 = vmatpush2.xpose.msra.mxu0 0.0
    %474 = vmatprep.subr.mxu0 0.0
    %475 = vmatpush2.xpose.msra.mxu0 0.0
    %476 = vmatprep.subr.mxu0 0.0
    %477 = vmatpush2.xpose.msra.mxu0 0.0
    %478 = vmatprep.subr.mxu0 0.0
    %479 = vmatpush2.xpose.msra.mxu0 0.0
    %480 = vmatprep.subr.mxu0 0.0
    %481 = vmatpush2.xpose.msra.mxu0 0.0
    %482 = vmatprep.subr.mxu0 0.0
    %483 = vmatpush2.xpose.msra.mxu0 0.0
    %484 = vmatprep.subr.mxu0 0.0
    %485 = vmatpush2.xpose.msra.mxu0 0.0
    %486 = vmatprep.subr.mxu0 0.0
    %487 = vmatpush2.xpose.msra.mxu0 0.0
    %488 = vmatprep.subr.mxu0 0.0
    %489 = vmatpush2.xpose.msra.mxu0 0.0
    %490 = vmatprep.subr.mxu0 0.0
    %491 = vmatpush2.xpose.msra.mxu0 0.0
    %492 = vmatprep.mubr.f32.mxu0 0.0
    %493 = vmatmul.mubr.f32.gmra.mxu0 %v424
    %v494 = vpop.f32.mrf.mxu0
    %v495 = vadd.f32 0.0, %v494
    %v496 = vpop.f32.mrf.mxu0
    %497 = vdwg.mxu0
    %v498 = vsel %vm261, %v495, -inf
    %499 = vmax.xlane.f32.xlu0 %v498
    %v500 = vpop.xlane.xlu0 %499
    %v501 = vsub.f32 %v495, %v500
    %v502 = vmul.f32 %v501, 1.442695
    %v503 = vpow.pop %v502
    %v504 = vsel %vm261, %v503, 0.0
    %505 = vadd.xlane.f32.xlu0 %v504
    %v506 = vpop.xlane.xlu0 %505
    %v507 = vrcp.pop %v506
    %v508 = vmul.f32 %v503, %v507
    %510 = vrot.lane.b32.xlu0 %v250, 120
    %v511 = vpop.permute.xlu0 %510
    %v514 = vsel %vm261, %v508, 0
    %516 = vmatprep.subr.mxu0 0.0
    %517 = vmatpush1.msra.mxu0 0.0
    %518 = vmatprep.subr.mxu0 0.0
    %519 = vmatpush1.msra.mxu0 0.0
    %520 = vmatprep.subr.mxu0 0.0
    %521 = vmatpush1.msra.mxu0 0.0
    %522 = vmatprep.subr.mxu0 0.0
    %523 = vmatpush1.msra.mxu0 0.0
    %524 = vmatprep.subr.mxu0 0.0
    %525 = vmatpush1.msra.mxu0 0.0
    %526 = vmatprep.subr.mxu0 0.0
    %527 = vmatpush1.msra.mxu0 0.0
    %528 = vmatprep.subr.mxu0 0.0
    %529 = vmatpush1.msra.mxu0 0.0
    %530 = vmatprep.subr.mxu0 0.0
    %531 = vmatpush1.msra.mxu0 0.0
    %532 = vmatprep.subr.mxu0 0.0
    %533 = vmatpush1.msra.mxu0 0.0
    %534 = vmatprep.subr.mxu0 0.0
    %535 = vmatpush1.msra.mxu0 0.0
    %536 = vmatprep.subr.mxu0 0.0
    %537 = vmatpush1.msra.mxu0 0.0
    %538 = vmatprep.subr.mxu0 0.0
    %539 = vmatpush1.msra.mxu0 0.0
    %540 = vmatprep.subr.mxu0 0.0
    %541 = vmatpush1.msra.mxu0 0.0
    %542 = vmatprep.subr.mxu0 0.0
    %543 = vmatpush1.msra.mxu0 0.0
    %544 = vmatprep.subr.mxu0 0.0
    %545 = vmatpush1.msra.mxu0 0.0
    %546 = vmatprep.subr.mxu0 0.0
    %547 = vmatpush1.msra.mxu0 %v511
    %548 = vmatprep.subr.mxu0 0.0
    %549 = vmatpush2.msra.mxu0 0.0
    %550 = vmatprep.subr.mxu0 0.0
    %551 = vmatpush2.msra.mxu0 0.0
    %552 = vmatprep.subr.mxu0 0.0
    %553 = vmatpush2.msra.mxu0 0.0
    %554 = vmatprep.subr.mxu0 0.0
    %555 = vmatpush2.msra.mxu0 0.0
    %556 = vmatprep.subr.mxu0 0.0
    %557 = vmatpush2.msra.mxu0 0.0
    %558 = vmatprep.subr.mxu0 0.0
    %559 = vmatpush2.msra.mxu0 0.0
    %560 = vmatprep.subr.mxu0 0.0
    %561 = vmatpush2.msra.mxu0 0.0
    %562 = vmatprep.subr.mxu0 0.0
    %563 = vmatpush2.msra.mxu0 0.0
    %564 = vmatprep.subr.mxu0 0.0
    %565 = vmatpush2.msra.mxu0 0.0
    %566 = vmatprep.subr.mxu0 0.0
    %567 = vmatpush2.msra.mxu0 0.0
    %568 = vmatprep.subr.mxu0 0.0
    %569 = vmatpush2.msra.mxu0 0.0
    %570 = vmatprep.subr.mxu0 0.0
    %571 = vmatpush2.msra.mxu0 0.0
    %572 = vmatprep.subr.mxu0 0.0
    %573 = vmatpush2.msra.mxu0 0.0
    %574 = vmatprep.subr.mxu0 0.0
    %575 = vmatpush2.msra.mxu0 0.0
    %576 = vmatprep.subr.mxu0 0.0
    %577 = vmatpush2.msra.mxu0 0.0
    %578 = vmatprep.subr.mxu0 0.0
    %579 = vmatpush2.msra.mxu0 0.0
    %580 = vmatprep.mubr.f32.mxu0 0.0
    %581 = vmatmul.mubr.f32.gmra.mxu0 %v514
    %v582 = vpop.f32.mrf.mxu0
    %v583 = vadd.f32 0.0, %v582
    %v584 = vpop.f32.mrf.mxu0
    %585 = vdwg.mxu0
    %586 = vrot.lane.b32.xlu0 %v158, 112
    %v587 = vpop.permute.xlu0 %586
    %588 = vrot.lane.b32.xlu0 %v158, 80
    %v589 = vpop.permute.xlu0 %588
    %v590 = vsel %vm261, %v587, 0
    %v592 = vsel %vm261, %v589, 0
    %594 = vmatprep.subr.mxu0 0.0
    %595 = vmatpush1.xpose.msra.mxu0 0.0
    %596 = vmatprep.subr.mxu0 0.0
    %597 = vmatpush1.xpose.msra.mxu0 0.0
    %598 = vmatprep.subr.mxu0 0.0
    %599 = vmatpush1.xpose.msra.mxu0 0.0
    %600 = vmatprep.subr.mxu0 0.0
    %601 = vmatpush1.xpose.msra.mxu0 0.0
    %602 = vmatprep.subr.mxu0 0.0
    %603 = vmatpush1.xpose.msra.mxu0 0.0
    %604 = vmatprep.subr.mxu0 0.0
    %605 = vmatpush1.xpose.msra.mxu0 0.0
    %606 = vmatprep.subr.mxu0 0.0
    %607 = vmatpush1.xpose.msra.mxu0 0.0
    %608 = vmatprep.subr.mxu0 0.0
    %609 = vmatpush1.xpose.msra.mxu0 0.0
    %610 = vmatprep.subr.mxu0 0.0
    %611 = vmatpush1.xpose.msra.mxu0 0.0
    %612 = vmatprep.subr.mxu0 0.0
    %613 = vmatpush1.xpose.msra.mxu0 0.0
    %614 = vmatprep.subr.mxu0 0.0
    %615 = vmatpush1.xpose.msra.mxu0 0.0
    %616 = vmatprep.subr.mxu0 0.0
    %617 = vmatpush1.xpose.msra.mxu0 0.0
    %618 = vmatprep.subr.mxu0 0.0
    %619 = vmatpush1.xpose.msra.mxu0 0.0
    %620 = vmatprep.subr.mxu0 0.0
    %621 = vmatpush1.xpose.msra.mxu0 0.0
    %622 = vmatprep.subr.mxu0 0.0
    %623 = vmatpush1.xpose.msra.mxu0 0.0
    %624 = vmatprep.subr.mxu0 0.0
    %625 = vmatpush1.xpose.msra.mxu0 %v592
    %626 = vmatprep.subr.mxu0 0.0
    %627 = vmatpush2.xpose.msra.mxu0 0.0
    %628 = vmatprep.subr.mxu0 0.0
    %629 = vmatpush2.xpose.msra.mxu0 0.0
    %630 = vmatprep.subr.mxu0 0.0
    %631 = vmatpush2.xpose.msra.mxu0 0.0
    %632 = vmatprep.subr.mxu0 0.0
    %633 = vmatpush2.xpose.msra.mxu0 0.0
    %634 = vmatprep.subr.mxu0 0.0
    %635 = vmatpush2.xpose.msra.mxu0 0.0
    %636 = vmatprep.subr.mxu0 0.0
    %637 = vmatpush2.xpose.msra.mxu0 0.0
    %638 = vmatprep.subr.mxu0 0.0
    %639 = vmatpush2.xpose.msra.mxu0 0.0
    %640 = vmatprep.subr.mxu0 0.0
    %641 = vmatpush2.xpose.msra.mxu0 0.0
    %642 = vmatprep.subr.mxu0 0.0
    %643 = vmatpush2.xpose.msra.mxu0 0.0
    %644 = vmatprep.subr.mxu0 0.0
    %645 = vmatpush2.xpose.msra.mxu0 0.0
    %646 = vmatprep.subr.mxu0 0.0
    %647 = vmatpush2.xpose.msra.mxu0 0.0
    %648 = vmatprep.subr.mxu0 0.0
    %649 = vmatpush2.xpose.msra.mxu0 0.0
    %650 = vmatprep.subr.mxu0 0.0
    %651 = vmatpush2.xpose.msra.mxu0 0.0
    %652 = vmatprep.subr.mxu0 0.0
    %653 = vmatpush2.xpose.msra.mxu0 0.0
    %654 = vmatprep.subr.mxu0 0.0
    %655 = vmatpush2.xpose.msra.mxu0 0.0
    %656 = vmatprep.subr.mxu0 0.0
    %657 = vmatpush2.xpose.msra.mxu0 0.0
    %658 = vmatprep.mubr.f32.mxu0 0.0
    %659 = vmatmul.mubr.f32.gmra.mxu0 %v590
    %v660 = vpop.f32.mrf.mxu0
    %v661 = vadd.f32 0.0, %v660
    %v662 = vpop.f32.mrf.mxu0
    %663 = vdwg.mxu0
    %v664 = vsel %vm261, %v661, -inf
    %665 = vmax.xlane.f32.xlu0 %v664
    %v666 = vpop.xlane.xlu0 %665
    %v667 = vsub.f32 %v661, %v666
    %v668 = vmul.f32 %v667, 1.442695
    %v669 = vpow.pop %v668
    %v670 = vsel %vm261, %v669, 0.0
    %671 = vadd.xlane.f32.xlu0 %v670
    %v672 = vpop.xlane.xlu0 %671
    %v673 = vrcp.pop %v672
    %v674 = vmul.f32 %v669, %v673
    %675 = vrot.lane.b32.xlu0 %v250, 112
    %v676 = vpop.permute.xlu0 %675
    %v679 = vsel %vm261, %v674, 0
    %681 = vmatprep.subr.mxu0 0.0
    %682 = vmatpush1.msra.mxu0 0.0
    %683 = vmatprep.subr.mxu0 0.0
    %684 = vmatpush1.msra.mxu0 0.0
    %685 = vmatprep.subr.mxu0 0.0
    %686 = vmatpush1.msra.mxu0 0.0
    %687 = vmatprep.subr.mxu0 0.0
    %688 = vmatpush1.msra.mxu0 0.0
    %689 = vmatprep.subr.mxu0 0.0
    %690 = vmatpush1.msra.mxu0 0.0
    %691 = vmatprep.subr.mxu0 0.0
    %692 = vmatpush1.msra.mxu0 0.0
    %693 = vmatprep.subr.mxu0 0.0
    %694 = vmatpush1.msra.mxu0 0.0
    %695 = vmatprep.subr.mxu0 0.0
    %696 = vmatpush1.msra.mxu0 0.0
    %697 = vmatprep.subr.mxu0 0.0
    %698 = vmatpush1.msra.mxu0 0.0
    %699 = vmatprep.subr.mxu0 0.0
    %700 = vmatpush1.msra.mxu0 0.0
    %701 = vmatprep.subr.mxu0 0.0
    %702 = vmatpush1.msra.mxu0 0.0
    %703 = vmatprep.subr.mxu0 0.0
    %704 = vmatpush1.msra.mxu0 0.0
    %705 = vmatprep.subr.mxu0 0.0
    %706 = vmatpush1.msra.mxu0 0.0
    %707 = vmatprep.subr.mxu0 0.0
    %708 = vmatpush1.msra.mxu0 0.0
    %709 = vmatprep.subr.mxu0 0.0
    %710 = vmatpush1.msra.mxu0 0.0
    %711 = vmatprep.subr.mxu0 0.0
    %712 = vmatpush1.msra.mxu0 %v676
    %713 = vmatprep.subr.mxu0 0.0
    %714 = vmatpush2.msra.mxu0 0.0
    %715 = vmatprep.subr.mxu0 0.0
    %716 = vmatpush2.msra.mxu0 0.0
    %717 = vmatprep.subr.mxu0 0.0
    %718 = vmatpush2.msra.mxu0 0.0
    %719 = vmatprep.subr.mxu0 0.0
    %720 = vmatpush2.msra.mxu0 0.0
    %721 = vmatprep.subr.mxu0 0.0
    %722 = vmatpush2.msra.mxu0 0.0
    %723 = vmatprep.subr.mxu0 0.0
    %724 = vmatpush2.msra.mxu0 0.0
    %725 = vmatprep.subr.mxu0 0.0
    %726 = vmatpush2.msra.mxu0 0.0
    %727 = vmatprep.subr.mxu0 0.0
    %728 = vmatpush2.msra.mxu0 0.0
    %729 = vmatprep.subr.mxu0 0.0
    %730 = vmatpush2.msra.mxu0 0.0
    %731 = vmatprep.subr.mxu0 0.0
    %732 = vmatpush2.msra.mxu0 0.0
    %733 = vmatprep.subr.mxu0 0.0
    %734 = vmatpush2.msra.mxu0 0.0
    %735 = vmatprep.subr.mxu0 0.0
    %736 = vmatpush2.msra.mxu0 0.0
    %737 = vmatprep.subr.mxu0 0.0
    %738 = vmatpush2.msra.mxu0 0.0
    %739 = vmatprep.subr.mxu0 0.0
    %740 = vmatpush2.msra.mxu0 0.0
    %741 = vmatprep.subr.mxu0 0.0
    %742 = vmatpush2.msra.mxu0 0.0
    %743 = vmatprep.subr.mxu0 0.0
    %744 = vmatpush2.msra.mxu0 0.0
    %745 = vmatprep.mubr.f32.mxu0 0.0
    %746 = vmatmul.mubr.f32.gmra.mxu0 %v679
    %v747 = vpop.f32.mrf.mxu0
    %v748 = vadd.f32 0.0, %v747
    %v749 = vpop.f32.mrf.mxu0
    %750 = vdwg.mxu0
    %751 = vrot.lane.b32.xlu0 %v158, 104
    %v752 = vpop.permute.xlu0 %751
    %753 = vrot.lane.b32.xlu0 %v158, 72
    %v754 = vpop.permute.xlu0 %753
    %v755 = vsel %vm261, %v752, 0
    %v757 = vsel %vm261, %v754, 0
    %759 = vmatprep.subr.mxu0 0.0
    %760 = vmatpush1.xpose.msra.mxu0 0.0
    %761 = vmatprep.subr.mxu0 0.0
    %762 = vmatpush1.xpose.msra.mxu0 0.0
    %763 = vmatprep.subr.mxu0 0.0
    %764 = vmatpush1.xpose.msra.mxu0 0.0
    %765 = vmatprep.subr.mxu0 0.0
    %766 = vmatpush1.xpose.msra.mxu0 0.0
    %767 = vmatprep.subr.mxu0 0.0
    %768 = vmatpush1.xpose.msra.mxu0 0.0
    %769 = vmatprep.subr.mxu0 0.0
    %770 = vmatpush1.xpose.msra.mxu0 0.0
    %771 = vmatprep.subr.mxu0 0.0
    %772 = vmatpush1.xpose.msra.mxu0 0.0
    %773 = vmatprep.subr.mxu0 0.0
    %774 = vmatpush1.xpose.msra.mxu0 0.0
    %775 = vmatprep.subr.mxu0 0.0
    %776 = vmatpush1.xpose.msra.mxu0 0.0
    %777 = vmatprep.subr.mxu0 0.0
    %778 = vmatpush1.xpose.msra.mxu0 0.0
    %779 = vmatprep.subr.mxu0 0.0
    %780 = vmatpush1.xpose.msra.mxu0 0.0
    %781 = vmatprep.subr.mxu0 0.0
    %782 = vmatpush1.xpose.msra.mxu0 0.0
    %783 = vmatprep.subr.mxu0 0.0
    %784 = vmatpush1.xpose.msra.mxu0 0.0
    %785 = vmatprep.subr.mxu0 0.0
    %786 = vmatpush1.xpose.msra.mxu0 0.0
    %787 = vmatprep.subr.mxu0 0.0
    %788 = vmatpush1.xpose.msra.mxu0 0.0
    %789 = vmatprep.subr.mxu0 0.0
    %790 = vmatpush1.xpose.msra.mxu0 %v757
    %791 = vmatprep.subr.mxu0 0.0
    %792 = vmatpush2.xpose.msra.mxu0 0.0
    %793 = vmatprep.subr.mxu0 0.0
    %794 = vmatpush2.xpose.msra.mxu0 0.0
    %795 = vmatprep.subr.mxu0 0.0
    %796 = vmatpush2.xpose.msra.mxu0 0.0
    %797 = vmatprep.subr.mxu0 0.0
    %798 = vmatpush2.xpose.msra.mxu0 0.0
    %799 = vmatprep.subr.mxu0 0.0
    %800 = vmatpush2.xpose.msra.mxu0 0.0
    %801 = vmatprep.subr.mxu0 0.0
    %802 = vmatpush2.xpose.msra.mxu0 0.0
    %803 = vmatprep.subr.mxu0 0.0
    %804 = vmatpush2.xpose.msra.mxu0 0.0
    %805 = vmatprep.subr.mxu0 0.0
    %806 = vmatpush2.xpose.msra.mxu0 0.0
    %807 = vmatprep.subr.mxu0 0.0
    %808 = vmatpush2.xpose.msra.mxu0 0.0
    %809 = vmatprep.subr.mxu0 0.0
    %810 = vmatpush2.xpose.msra.mxu0 0.0
    %811 = vmatprep.subr.mxu0 0.0
    %812 = vmatpush2.xpose.msra.mxu0 0.0
    %813 = vmatprep.subr.mxu0 0.0
    %814 = vmatpush2.xpose.msra.mxu0 0.0
    %815 = vmatprep.subr.mxu0 0.0
    %816 = vmatpush2.xpose.msra.mxu0 0.0
    %817 = vmatprep.subr.mxu0 0.0
    %818 = vmatpush2.xpose.msra.mxu0 0.0
    %819 = vmatprep.subr.mxu0 0.0
    %820 = vmatpush2.xpose.msra.mxu0 0.0
    %821 = vmatprep.subr.mxu0 0.0
    %822 = vmatpush2.xpose.msra.mxu0 0.0
    %823 = vmatprep.mubr.f32.mxu0 0.0
    %824 = vmatmul.mubr.f32.gmra.mxu0 %v755
    %v825 = vpop.f32.mrf.mxu0
    %v826 = vadd.f32 0.0, %v825
    %v827 = vpop.f32.mrf.mxu0
    %828 = vdwg.mxu0
    %v829 = vsel %vm261, %v826, -inf
    %830 = vmax.xlane.f32.xlu0 %v829
    %v831 = vpop.xlane.xlu0 %830
    %v832 = vsub.f32 %v826, %v831
    %v833 = vmul.f32 %v832, 1.442695
    %v834 = vpow.pop %v833
    %v835 = vsel %vm261, %v834, 0.0
    %836 = vadd.xlane.f32.xlu0 %v835
    %v837 = vpop.xlane.xlu0 %836
    %v838 = vrcp.pop %v837
    %v839 = vmul.f32 %v834, %v838
    %840 = vrot.lane.b32.xlu0 %v250, 104
    %v841 = vpop.permute.xlu0 %840
    %v844 = vsel %vm261, %v839, 0
    %846 = vmatprep.subr.mxu0 0.0
    %847 = vmatpush1.msra.mxu0 0.0
    %848 = vmatprep.subr.mxu0 0.0
    %849 = vmatpush1.msra.mxu0 0.0
    %850 = vmatprep.subr.mxu0 0.0
    %851 = vmatpush1.msra.mxu0 0.0
    %852 = vmatprep.subr.mxu0 0.0
    %853 = vmatpush1.msra.mxu0 0.0
    %854 = vmatprep.subr.mxu0 0.0
    %855 = vmatpush1.msra.mxu0 0.0
    %856 = vmatprep.subr.mxu0 0.0
    %857 = vmatpush1.msra.mxu0 0.0
    %858 = vmatprep.subr.mxu0 0.0
    %859 = vmatpush1.msra.mxu0 0.0
    %860 = vmatprep.subr.mxu0 0.0
    %861 = vmatpush1.msra.mxu0 0.0
    %862 = vmatprep.subr.mxu0 0.0
    %863 = vmatpush1.msra.mxu0 0.0
    %864 = vmatprep.subr.mxu0 0.0
    %865 = vmatpush1.msra.mxu0 0.0
    %866 = vmatprep.subr.mxu0 0.0
    %867 = vmatpush1.msra.mxu0 0.0
    %868 = vmatprep.subr.mxu0 0.0
    %869 = vmatpush1.msra.mxu0 0.0
    %870 = vmatprep.subr.mxu0 0.0
    %871 = vmatpush1.msra.mxu0 0.0
    %872 = vmatprep.subr.mxu0 0.0
    %873 = vmatpush1.msra.mxu0 0.0
    %874 = vmatprep.subr.mxu0 0.0
    %875 = vmatpush1.msra.mxu0 0.0
    %876 = vmatprep.subr.mxu0 0.0
    %877 = vmatpush1.msra.mxu0 %v841
    %878 = vmatprep.subr.mxu0 0.0
    %879 = vmatpush2.msra.mxu0 0.0
    %880 = vmatprep.subr.mxu0 0.0
    %881 = vmatpush2.msra.mxu0 0.0
    %882 = vmatprep.subr.mxu0 0.0
    %883 = vmatpush2.msra.mxu0 0.0
    %884 = vmatprep.subr.mxu0 0.0
    %885 = vmatpush2.msra.mxu0 0.0
    %886 = vmatprep.subr.mxu0 0.0
    %887 = vmatpush2.msra.mxu0 0.0
    %888 = vmatprep.subr.mxu0 0.0
    %889 = vmatpush2.msra.mxu0 0.0
    %890 = vmatprep.subr.mxu0 0.0
    %891 = vmatpush2.msra.mxu0 0.0
    %892 = vmatprep.subr.mxu0 0.0
    %893 = vmatpush2.msra.mxu0 0.0
    %894 = vmatprep.subr.mxu0 0.0
    %895 = vmatpush2.msra.mxu0 0.0
    %896 = vmatprep.subr.mxu0 0.0
    %897 = vmatpush2.msra.mxu0 0.0
    %898 = vmatprep.subr.mxu0 0.0
    %899 = vmatpush2.msra.mxu0 0.0
    %900 = vmatprep.subr.mxu0 0.0
    %901 = vmatpush2.msra.mxu0 0.0
    %902 = vmatprep.subr.mxu0 0.0
    %903 = vmatpush2.msra.mxu0 0.0
    %904 = vmatprep.subr.mxu0 0.0
    %905 = vmatpush2.msra.mxu0 0.0
    %906 = vmatprep.subr.mxu0 0.0
    %907 = vmatpush2.msra.mxu0 0.0
    %908 = vmatprep.subr.mxu0 0.0
    %909 = vmatpush2.msra.mxu0 0.0
    %910 = vmatprep.mubr.f32.mxu0 0.0
    %911 = vmatmul.mubr.f32.gmra.mxu0 %v844
    %v912 = vpop.f32.mrf.mxu0
    %v913 = vadd.f32 0.0, %v912
    %v914 = vpop.f32.mrf.mxu0
    %915 = vdwg.mxu0
    %917 = vrot.lane.b32.xlu0 %v583, 8
    %v918 = vpop.permute.xlu0 %917
    %921 = vrot.lane.b32.xlu0 %v748, 16
    %v922 = vpop.permute.xlu0 %921
    %925 = vrot.lane.b32.xlu0 %v913, 24
    %v926 = vpop.permute.xlu0 %925
    %v928 = vsel %vm261, %v417, %v918
    %vm929 = vcmask 130048
    %v930 = vsel %vm929, %v928, %v922
    %vm931 = vcmask 195584
    %v932 = vsel %vm931, %v930, %v926
    %934 = vrot.lane.b32.xlu0 %v163, 96
    %v935 = vpop.permute.xlu0 %934
    %v936 = vsel %vm261, %v163, 0
    %v938 = vsel %vm261, %v935, 0
    %940 = vmatprep.subr.mxu0 0.0
    %941 = vmatpush1.xpose.msra.mxu0 0.0
    %942 = vmatprep.subr.mxu0 0.0
    %943 = vmatpush1.xpose.msra.mxu0 0.0
    %944 = vmatprep.subr.mxu0 0.0
    %945 = vmatpush1.xpose.msra.mxu0 0.0
    %946 = vmatprep.subr.mxu0 0.0
    %947 = vmatpush1.xpose.msra.mxu0 0.0
    %948 = vmatprep.subr.mxu0 0.0
    %949 = vmatpush1.xpose.msra.mxu0 0.0
    %950 = vmatprep.subr.mxu0 0.0
    %951 = vmatpush1.xpose.msra.mxu0 0.0
    %952 = vmatprep.subr.mxu0 0.0
    %953 = vmatpush1.xpose.msra.mxu0 0.0
    %954 = vmatprep.subr.mxu0 0.0
    %955 = vmatpush1.xpose.msra.mxu0 0.0
    %956 = vmatprep.subr.mxu0 0.0
    %957 = vmatpush1.xpose.msra.mxu0 0.0
    %958 = vmatprep.subr.mxu0 0.0
    %959 = vmatpush1.xpose.msra.mxu0 0.0
    %960 = vmatprep.subr.mxu0 0.0
    %961 = vmatpush1.xpose.msra.mxu0 0.0
    %962 = vmatprep.subr.mxu0 0.0
    %963 = vmatpush1.xpose.msra.mxu0 0.0
    %964 = vmatprep.subr.mxu0 0.0
    %965 = vmatpush1.xpose.msra.mxu0 0.0
    %966 = vmatprep.subr.mxu0 0.0
    %967 = vmatpush1.xpose.msra.mxu0 0.0
    %968 = vmatprep.subr.mxu0 0.0
    %969 = vmatpush1.xpose.msra.mxu0 0.0
    %970 = vmatprep.subr.mxu0 0.0
    %971 = vmatpush1.xpose.msra.mxu0 %v938
    %972 = vmatprep.subr.mxu0 0.0
    %973 = vmatpush2.xpose.msra.mxu0 0.0
    %974 = vmatprep.subr.mxu0 0.0
    %975 = vmatpush2.xpose.msra.mxu0 0.0
    %976 = vmatprep.subr.mxu0 0.0
    %977 = vmatpush2.xpose.msra.mxu0 0.0
    %978 = vmatprep.subr.mxu0 0.0
    %979 = vmatpush2.xpose.msra.mxu0 0.0
    %980 = vmatprep.subr.mxu0 0.0
    %981 = vmatpush2.xpose.msra.mxu0 0.0
    %982 = vmatprep.subr.mxu0 0.0
    %983 = vmatpush2.xpose.msra.mxu0 0.0
    %984 = vmatprep.subr.mxu0 0.0
    %985 = vmatpush2.xpose.msra.mxu0 0.0
    %986 = vmatprep.subr.mxu0 0.0
    %987 = vmatpush2.xpose.msra.mxu0 0.0
    %988 = vmatprep.subr.mxu0 0.0
    %989 = vmatpush2.xpose.msra.mxu0 0.0
    %990 = vmatprep.subr.mxu0 0.0
    %991 = vmatpush2.xpose.msra.mxu0 0.0
    %992 = vmatprep.subr.mxu0 0.0
    %993 = vmatpush2.xpose.msra.mxu0 0.0
    %994 = vmatprep.subr.mxu0 0.0
    %995 = vmatpush2.xpose.msra.mxu0 0.0
    %996 = vmatprep.subr.mxu0 0.0
    %997 = vmatpush2.xpose.msra.mxu0 0.0
    %998 = vmatprep.subr.mxu0 0.0
    %999 = vmatpush2.xpose.msra.mxu0 0.0
    %1000 = vmatprep.subr.mxu0 0.0
    %1001 = vmatpush2.xpose.msra.mxu0 0.0
    %1002 = vmatprep.subr.mxu0 0.0
    %1003 = vmatpush2.xpose.msra.mxu0 0.0
    %1004 = vmatprep.mubr.f32.mxu0 0.0
    %1005 = vmatmul.mubr.f32.gmra.mxu0 %v936
    %v1006 = vpop.f32.mrf.mxu0
    %v1007 = vadd.f32 0.0, %v1006
    %v1008 = vpop.f32.mrf.mxu0
    %1009 = vdwg.mxu0
    %v1010 = vsel %vm261, %v1007, -inf
    %1011 = vmax.xlane.f32.xlu0 %v1010
    %v1012 = vpop.xlane.xlu0 %1011
    %v1013 = vsub.f32 %v1007, %v1012
    %v1014 = vmul.f32 %v1013, 1.442695
    %v1015 = vpow.pop %v1014
    %v1016 = vsel %vm261, %v1015, 0.0
    %1017 = vadd.xlane.f32.xlu0 %v1016
    %v1018 = vpop.xlane.xlu0 %1017
    %v1019 = vrcp.pop %v1018
    %v1020 = vmul.f32 %v1015, %v1019
    %v1022 = vsel %vm261, %v1020, 0
    %1024 = vmatprep.subr.mxu0 0.0
    %1025 = vmatpush1.msra.mxu0 0.0
    %1026 = vmatprep.subr.mxu0 0.0
    %1027 = vmatpush1.msra.mxu0 0.0
    %1028 = vmatprep.subr.mxu0 0.0
    %1029 = vmatpush1.msra.mxu0 0.0
    %1030 = vmatprep.subr.mxu0 0.0
    %1031 = vmatpush1.msra.mxu0 0.0
    %1032 = vmatprep.subr.mxu0 0.0
    %1033 = vmatpush1.msra.mxu0 0.0
    %1034 = vmatprep.subr.mxu0 0.0
    %1035 = vmatpush1.msra.mxu0 0.0
    %1036 = vmatprep.subr.mxu0 0.0
    %1037 = vmatpush1.msra.mxu0 0.0
    %1038 = vmatprep.subr.mxu0 0.0
    %1039 = vmatpush1.msra.mxu0 0.0
    %1040 = vmatprep.subr.mxu0 0.0
    %1041 = vmatpush1.msra.mxu0 0.0
    %1042 = vmatprep.subr.mxu0 0.0
    %1043 = vmatpush1.msra.mxu0 0.0
    %1044 = vmatprep.subr.mxu0 0.0
    %1045 = vmatpush1.msra.mxu0 0.0
    %1046 = vmatprep.subr.mxu0 0.0
    %1047 = vmatpush1.msra.mxu0 0.0
    %1048 = vmatprep.subr.mxu0 0.0
    %1049 = vmatpush1.msra.mxu0 0.0
    %1050 = vmatprep.subr.mxu0 0.0
    %1051 = vmatpush1.msra.mxu0 0.0
    %1052 = vmatprep.subr.mxu0 0.0
    %1053 = vmatpush1.msra.mxu0 0.0
    %1054 = vmatprep.subr.mxu0 0.0
    %1055 = vmatpush1.msra.mxu0 %v255
    %1056 = vmatprep.subr.mxu0 0.0
    %1057 = vmatpush2.msra.mxu0 0.0
    %1058 = vmatprep.subr.mxu0 0.0
    %1059 = vmatpush2.msra.mxu0 0.0
    %1060 = vmatprep.subr.mxu0 0.0
    %1061 = vmatpush2.msra.mxu0 0.0
    %1062 = vmatprep.subr.mxu0 0.0
    %1063 = vmatpush2.msra.mxu0 0.0
    %1064 = vmatprep.subr.mxu0 0.0
    %1065 = vmatpush2.msra.mxu0 0.0
    %1066 = vmatprep.subr.mxu0 0.0
    %1067 = vmatpush2.msra.mxu0 0.0
    %1068 = vmatprep.subr.mxu0 0.0
    %1069 = vmatpush2.msra.mxu0 0.0
    %1070 = vmatprep.subr.mxu0 0.0
    %1071 = vmatpush2.msra.mxu0 0.0
    %1072 = vmatprep.subr.mxu0 0.0
    %1073 = vmatpush2.msra.mxu0 0.0
    %1074 = vmatprep.subr.mxu0 0.0
    %1075 = vmatpush2.msra.mxu0 0.0
    %1076 = vmatprep.subr.mxu0 0.0
    %1077 = vmatpush2.msra.mxu0 0.0
    %1078 = vmatprep.subr.mxu0 0.0
    %1079 = vmatpush2.msra.mxu0 0.0
    %1080 = vmatprep.subr.mxu0 0.0
    %1081 = vmatpush2.msra.mxu0 0.0
    %1082 = vmatprep.subr.mxu0 0.0
    %1083 = vmatpush2.msra.mxu0 0.0
    %1084 = vmatprep.subr.mxu0 0.0
    %1085 = vmatpush2.msra.mxu0 0.0
    %1086 = vmatprep.subr.mxu0 0.0
    %1087 = vmatpush2.msra.mxu0 0.0
    %1088 = vmatprep.mubr.f32.mxu0 0.0
    %1089 = vmatmul.mubr.f32.gmra.mxu0 %v1022
    %v1090 = vpop.f32.mrf.mxu0
    %v1091 = vadd.f32 0.0, %v1090
    %v1092 = vpop.f32.mrf.mxu0
    %1093 = vdwg.mxu0
    %1094 = vrot.lane.b32.xlu0 %v163, 120
    %v1095 = vpop.permute.xlu0 %1094
    %1096 = vrot.lane.b32.xlu0 %v163, 88
    %v1097 = vpop.permute.xlu0 %1096
    %v1098 = vsel %vm261, %v1095, 0
    %v1100 = vsel %vm261, %v1097, 0
    %1102 = vmatprep.subr.mxu0 0.0
    %1103 = vmatpush1.xpose.msra.mxu0 0.0
    %1104 = vmatprep.subr.mxu0 0.0
    %1105 = vmatpush1.xpose.msra.mxu0 0.0
    %1106 = vmatprep.subr.mxu0 0.0
    %1107 = vmatpush1.xpose.msra.mxu0 0.0
    %1108 = vmatprep.subr.mxu0 0.0
    %1109 = vmatpush1.xpose.msra.mxu0 0.0
    %1110 = vmatprep.subr.mxu0 0.0
    %1111 = vmatpush1.xpose.msra.mxu0 0.0
    %1112 = vmatprep.subr.mxu0 0.0
    %1113 = vmatpush1.xpose.msra.mxu0 0.0
    %1114 = vmatprep.subr.mxu0 0.0
    %1115 = vmatpush1.xpose.msra.mxu0 0.0
    %1116 = vmatprep.subr.mxu0 0.0
    %1117 = vmatpush1.xpose.msra.mxu0 0.0
    %1118 = vmatprep.subr.mxu0 0.0
    %1119 = vmatpush1.xpose.msra.mxu0 0.0
    %1120 = vmatprep.subr.mxu0 0.0
    %1121 = vmatpush1.xpose.msra.mxu0 0.0
    %1122 = vmatprep.subr.mxu0 0.0
    %1123 = vmatpush1.xpose.msra.mxu0 0.0
    %1124 = vmatprep.subr.mxu0 0.0
    %1125 = vmatpush1.xpose.msra.mxu0 0.0
    %1126 = vmatprep.subr.mxu0 0.0
    %1127 = vmatpush1.xpose.msra.mxu0 0.0
    %1128 = vmatprep.subr.mxu0 0.0
    %1129 = vmatpush1.xpose.msra.mxu0 0.0
    %1130 = vmatprep.subr.mxu0 0.0
    %1131 = vmatpush1.xpose.msra.mxu0 0.0
    %1132 = vmatprep.subr.mxu0 0.0
    %1133 = vmatpush1.xpose.msra.mxu0 %v1100
    %1134 = vmatprep.subr.mxu0 0.0
    %1135 = vmatpush2.xpose.msra.mxu0 0.0
    %1136 = vmatprep.subr.mxu0 0.0
    %1137 = vmatpush2.xpose.msra.mxu0 0.0
    %1138 = vmatprep.subr.mxu0 0.0
    %1139 = vmatpush2.xpose.msra.mxu0 0.0
    %1140 = vmatprep.subr.mxu0 0.0
    %1141 = vmatpush2.xpose.msra.mxu0 0.0
    %1142 = vmatprep.subr.mxu0 0.0
    %1143 = vmatpush2.xpose.msra.mxu0 0.0
    %1144 = vmatprep.subr.mxu0 0.0
    %1145 = vmatpush2.xpose.msra.mxu0 0.0
    %1146 = vmatprep.subr.mxu0 0.0
    %1147 = vmatpush2.xpose.msra.mxu0 0.0
    %1148 = vmatprep.subr.mxu0 0.0
    %1149 = vmatpush2.xpose.msra.mxu0 0.0
    %1150 = vmatprep.subr.mxu0 0.0
    %1151 = vmatpush2.xpose.msra.mxu0 0.0
    %1152 = vmatprep.subr.mxu0 0.0
    %1153 = vmatpush2.xpose.msra.mxu0 0.0
    %1154 = vmatprep.subr.mxu0 0.0
    %1155 = vmatpush2.xpose.msra.mxu0 0.0
    %1156 = vmatprep.subr.mxu0 0.0
    %1157 = vmatpush2.xpose.msra.mxu0 0.0
    %1158 = vmatprep.subr.mxu0 0.0
    %1159 = vmatpush2.xpose.msra.mxu0 0.0
    %1160 = vmatprep.subr.mxu0 0.0
    %1161 = vmatpush2.xpose.msra.mxu0 0.0
    %1162 = vmatprep.subr.mxu0 0.0
    %1163 = vmatpush2.xpose.msra.mxu0 0.0
    %1164 = vmatprep.subr.mxu0 0.0
    %1165 = vmatpush2.xpose.msra.mxu0 0.0
    %1166 = vmatprep.mubr.f32.mxu0 0.0
    %1167 = vmatmul.mubr.f32.gmra.mxu0 %v1098
    %v1168 = vpop.f32.mrf.mxu0
    %v1169 = vadd.f32 0.0, %v1168
    %v1170 = vpop.f32.mrf.mxu0
    %1171 = vdwg.mxu0
    %v1172 = vsel %vm261, %v1169, -inf
    %1173 = vmax.xlane.f32.xlu0 %v1172
    %v1174 = vpop.xlane.xlu0 %1173
    %v1175 = vsub.f32 %v1169, %v1174
    %v1176 = vmul.f32 %v1175, 1.442695
    %v1177 = vpow.pop %v1176
    %v1178 = vsel %vm261, %v1177, 0.0
    %1179 = vadd.xlane.f32.xlu0 %v1178
    %v1180 = vpop.xlane.xlu0 %1179
    %v1181 = vrcp.pop %v1180
    %v1182 = vmul.f32 %v1177, %v1181
    %1184 = vrot.lane.b32.xlu0 %v255, 120
    %v1185 = vpop.permute.xlu0 %1184
    %v1188 = vsel %vm261, %v1182, 0
    %1190 = vmatprep.subr.mxu0 0.0
    %1191 = vmatpush1.msra.mxu0 0.0
    %1192 = vmatprep.subr.mxu0 0.0
    %1193 = vmatpush1.msra.mxu0 0.0
    %1194 = vmatprep.subr.mxu0 0.0
    %1195 = vmatpush1.msra.mxu0 0.0
    %1196 = vmatprep.subr.mxu0 0.0
    %1197 = vmatpush1.msra.mxu0 0.0
    %1198 = vmatprep.subr.mxu0 0.0
    %1199 = vmatpush1.msra.mxu0 0.0
    %1200 = vmatprep.subr.mxu0 0.0
    %1201 = vmatpush1.msra.mxu0 0.0
    %1202 = vmatprep.subr.mxu0 0.0
    %1203 = vmatpush1.msra.mxu0 0.0
    %1204 = vmatprep.subr.mxu0 0.0
    %1205 = vmatpush1.msra.mxu0 0.0
    %1206 = vmatprep.subr.mxu0 0.0
    %1207 = vmatpush1.msra.mxu0 0.0
    %1208 = vmatprep.subr.mxu0 0.0
    %1209 = vmatpush1.msra.mxu0 0.0
    %1210 = vmatprep.subr.mxu0 0.0
    %1211 = vmatpush1.msra.mxu0 0.0
    %1212 = vmatprep.subr.mxu0 0.0
    %1213 = vmatpush1.msra.mxu0 0.0
    %1214 = vmatprep.subr.mxu0 0.0
    %1215 = vmatpush1.msra.mxu0 0.0
    %1216 = vmatprep.subr.mxu0 0.0
    %1217 = vmatpush1.msra.mxu0 0.0
    %1218 = vmatprep.subr.mxu0 0.0
    %1219 = vmatpush1.msra.mxu0 0.0
    %1220 = vmatprep.subr.mxu0 0.0
    %1221 = vmatpush1.msra.mxu0 %v1185
    %1222 = vmatprep.subr.mxu0 0.0
    %1223 = vmatpush2.msra.mxu0 0.0
    %1224 = vmatprep.subr.mxu0 0.0
    %1225 = vmatpush2.msra.mxu0 0.0
    %1226 = vmatprep.subr.mxu0 0.0
    %1227 = vmatpush2.msra.mxu0 0.0
    %1228 = vmatprep.subr.mxu0 0.0
    %1229 = vmatpush2.msra.mxu0 0.0
    %1230 = vmatprep.subr.mxu0 0.0
    %1231 = vmatpush2.msra.mxu0 0.0
    %1232 = vmatprep.subr.mxu0 0.0
    %1233 = vmatpush2.msra.mxu0 0.0
    %1234 = vmatprep.subr.mxu0 0.0
    %1235 = vmatpush2.msra.mxu0 0.0
    %1236 = vmatprep.subr.mxu0 0.0
    %1237 = vmatpush2.msra.mxu0 0.0
    %1238 = vmatprep.subr.mxu0 0.0
    %1239 = vmatpush2.msra.mxu0 0.0
    %1240 = vmatprep.subr.mxu0 0.0
    %1241 = vmatpush2.msra.mxu0 0.0
    %1242 = vmatprep.subr.mxu0 0.0
    %1243 = vmatpush2.msra.mxu0 0.0
    %1244 = vmatprep.subr.mxu0 0.0
    %1245 = vmatpush2.msra.mxu0 0.0
    %1246 = vmatprep.subr.mxu0 0.0
    %1247 = vmatpush2.msra.mxu0 0.0
    %1248 = vmatprep.subr.mxu0 0.0
    %1249 = vmatpush2.msra.mxu0 0.0
    %1250 = vmatprep.subr.mxu0 0.0
    %1251 = vmatpush2.msra.mxu0 0.0
    %1252 = vmatprep.subr.mxu0 0.0
    %1253 = vmatpush2.msra.mxu0 0.0
    %1254 = vmatprep.mubr.f32.mxu0 0.0
    %1255 = vmatmul.mubr.f32.gmra.mxu0 %v1188
    %v1256 = vpop.f32.mrf.mxu0
    %v1257 = vadd.f32 0.0, %v1256
    %v1258 = vpop.f32.mrf.mxu0
    %1259 = vdwg.mxu0
    %1260 = vrot.lane.b32.xlu0 %v163, 112
    %v1261 = vpop.permute.xlu0 %1260
    %1262 = vrot.lane.b32.xlu0 %v163, 80
    %v1263 = vpop.permute.xlu0 %1262
    %v1264 = vsel %vm261, %v1261, 0
    %v1266 = vsel %vm261, %v1263, 0
    %1268 = vmatprep.subr.mxu0 0.0
    %1269 = vmatpush1.xpose.msra.mxu0 0.0
    %1270 = vmatprep.subr.mxu0 0.0
    %1271 = vmatpush1.xpose.msra.mxu0 0.0
    %1272 = vmatprep.subr.mxu0 0.0
    %1273 = vmatpush1.xpose.msra.mxu0 0.0
    %1274 = vmatprep.subr.mxu0 0.0
    %1275 = vmatpush1.xpose.msra.mxu0 0.0
    %1276 = vmatprep.subr.mxu0 0.0
    %1277 = vmatpush1.xpose.msra.mxu0 0.0
    %1278 = vmatprep.subr.mxu0 0.0
    %1279 = vmatpush1.xpose.msra.mxu0 0.0
    %1280 = vmatprep.subr.mxu0 0.0
    %1281 = vmatpush1.xpose.msra.mxu0 0.0
    %1282 = vmatprep.subr.mxu0 0.0
    %1283 = vmatpush1.xpose.msra.mxu0 0.0
    %1284 = vmatprep.subr.mxu0 0.0
    %1285 = vmatpush1.xpose.msra.mxu0 0.0
    %1286 = vmatprep.subr.mxu0 0.0
    %1287 = vmatpush1.xpose.msra.mxu0 0.0
    %1288 = vmatprep.subr.mxu0 0.0
    %1289 = vmatpush1.xpose.msra.mxu0 0.0
    %1290 = vmatprep.subr.mxu0 0.0
    %1291 = vmatpush1.xpose.msra.mxu0 0.0
    %1292 = vmatprep.subr.mxu0 0.0
    %1293 = vmatpush1.xpose.msra.mxu0 0.0
    %1294 = vmatprep.subr.mxu0 0.0
    %1295 = vmatpush1.xpose.msra.mxu0 0.0
    %1296 = vmatprep.subr.mxu0 0.0
    %1297 = vmatpush1.xpose.msra.mxu0 0.0
    %1298 = vmatprep.subr.mxu0 0.0
    %1299 = vmatpush1.xpose.msra.mxu0 %v1266
    %1300 = vmatprep.subr.mxu0 0.0
    %1301 = vmatpush2.xpose.msra.mxu0 0.0
    %1302 = vmatprep.subr.mxu0 0.0
    %1303 = vmatpush2.xpose.msra.mxu0 0.0
    %1304 = vmatprep.subr.mxu0 0.0
    %1305 = vmatpush2.xpose.msra.mxu0 0.0
    %1306 = vmatprep.subr.mxu0 0.0
    %1307 = vmatpush2.xpose.msra.mxu0 0.0
    %1308 = vmatprep.subr.mxu0 0.0
    %1309 = vmatpush2.xpose.msra.mxu0 0.0
    %1310 = vmatprep.subr.mxu0 0.0
    %1311 = vmatpush2.xpose.msra.mxu0 0.0
    %1312 = vmatprep.subr.mxu0 0.0
    %1313 = vmatpush2.xpose.msra.mxu0 0.0
    %1314 = vmatprep.subr.mxu0 0.0
    %1315 = vmatpush2.xpose.msra.mxu0 0.0
    %1316 = vmatprep.subr.mxu0 0.0
    %1317 = vmatpush2.xpose.msra.mxu0 0.0
    %1318 = vmatprep.subr.mxu0 0.0
    %1319 = vmatpush2.xpose.msra.mxu0 0.0
    %1320 = vmatprep.subr.mxu0 0.0
    %1321 = vmatpush2.xpose.msra.mxu0 0.0
    %1322 = vmatprep.subr.mxu0 0.0
    %1323 = vmatpush2.xpose.msra.mxu0 0.0
    %1324 = vmatprep.subr.mxu0 0.0
    %1325 = vmatpush2.xpose.msra.mxu0 0.0
    %1326 = vmatprep.subr.mxu0 0.0
    %1327 = vmatpush2.xpose.msra.mxu0 0.0
    %1328 = vmatprep.subr.mxu0 0.0
    %1329 = vmatpush2.xpose.msra.mxu0 0.0
    %1330 = vmatprep.subr.mxu0 0.0
    %1331 = vmatpush2.xpose.msra.mxu0 0.0
    %1332 = vmatprep.mubr.f32.mxu0 0.0
    %1333 = vmatmul.mubr.f32.gmra.mxu0 %v1264
    %v1334 = vpop.f32.mrf.mxu0
    %v1335 = vadd.f32 0.0, %v1334
    %v1336 = vpop.f32.mrf.mxu0
    %1337 = vdwg.mxu0
    %v1338 = vsel %vm261, %v1335, -inf
    %1339 = vmax.xlane.f32.xlu0 %v1338
    %v1340 = vpop.xlane.xlu0 %1339
    %v1341 = vsub.f32 %v1335, %v1340
    %v1342 = vmul.f32 %v1341, 1.442695
    %v1343 = vpow.pop %v1342
    %v1344 = vsel %vm261, %v1343, 0.0
    %1345 = vadd.xlane.f32.xlu0 %v1344
    %v1346 = vpop.xlane.xlu0 %1345
    %v1347 = vrcp.pop %v1346
    %v1348 = vmul.f32 %v1343, %v1347
    %1349 = vrot.lane.b32.xlu0 %v255, 112
    %v1350 = vpop.permute.xlu0 %1349
    %v1353 = vsel %vm261, %v1348, 0
    %1355 = vmatprep.subr.mxu0 0.0
    %1356 = vmatpush1.msra.mxu0 0.0
    %1357 = vmatprep.subr.mxu0 0.0
    %1358 = vmatpush1.msra.mxu0 0.0
    %1359 = vmatprep.subr.mxu0 0.0
    %1360 = vmatpush1.msra.mxu0 0.0
    %1361 = vmatprep.subr.mxu0 0.0
    %1362 = vmatpush1.msra.mxu0 0.0
    %1363 = vmatprep.subr.mxu0 0.0
    %1364 = vmatpush1.msra.mxu0 0.0
    %1365 = vmatprep.subr.mxu0 0.0
    %1366 = vmatpush1.msra.mxu0 0.0
    %1367 = vmatprep.subr.mxu0 0.0
    %1368 = vmatpush1.msra.mxu0 0.0
    %1369 = vmatprep.subr.mxu0 0.0
    %1370 = vmatpush1.msra.mxu0 0.0
    %1371 = vmatprep.subr.mxu0 0.0
    %1372 = vmatpush1.msra.mxu0 0.0
    %1373 = vmatprep.subr.mxu0 0.0
    %1374 = vmatpush1.msra.mxu0 0.0
    %1375 = vmatprep.subr.mxu0 0.0
    %1376 = vmatpush1.msra.mxu0 0.0
    %1377 = vmatprep.subr.mxu0 0.0
    %1378 = vmatpush1.msra.mxu0 0.0
    %1379 = vmatprep.subr.mxu0 0.0
    %1380 = vmatpush1.msra.mxu0 0.0
    %1381 = vmatprep.subr.mxu0 0.0
    %1382 = vmatpush1.msra.mxu0 0.0
    %1383 = vmatprep.subr.mxu0 0.0
    %1384 = vmatpush1.msra.mxu0 0.0
    %1385 = vmatprep.subr.mxu0 0.0
    %1386 = vmatpush1.msra.mxu0 %v1350
    %1387 = vmatprep.subr.mxu0 0.0
    %1388 = vmatpush2.msra.mxu0 0.0
    %1389 = vmatprep.subr.mxu0 0.0
    %1390 = vmatpush2.msra.mxu0 0.0
    %1391 = vmatprep.subr.mxu0 0.0
    %1392 = vmatpush2.msra.mxu0 0.0
    %1393 = vmatprep.subr.mxu0 0.0
    %1394 = vmatpush2.msra.mxu0 0.0
    %1395 = vmatprep.subr.mxu0 0.0
    %1396 = vmatpush2.msra.mxu0 0.0
    %1397 = vmatprep.subr.mxu0 0.0
    %1398 = vmatpush2.msra.mxu0 0.0
    %1399 = vmatprep.subr.mxu0 0.0
    %1400 = vmatpush2.msra.mxu0 0.0
    %1401 = vmatprep.subr.mxu0 0.0
    %1402 = vmatpush2.msra.mxu0 0.0
    %1403 = vmatprep.subr.mxu0 0.0
    %1404 = vmatpush2.msra.mxu0 0.0
    %1405 = vmatprep.subr.mxu0 0.0
    %1406 = vmatpush2.msra.mxu0 0.0
    %1407 = vmatprep.subr.mxu0 0.0
    %1408 = vmatpush2.msra.mxu0 0.0
    %1409 = vmatprep.subr.mxu0 0.0
    %1410 = vmatpush2.msra.mxu0 0.0
    %1411 = vmatprep.subr.mxu0 0.0
    %1412 = vmatpush2.msra.mxu0 0.0
    %1413 = vmatprep.subr.mxu0 0.0
    %1414 = vmatpush2.msra.mxu0 0.0
    %1415 = vmatprep.subr.mxu0 0.0
    %1416 = vmatpush2.msra.mxu0 0.0
    %1417 = vmatprep.subr.mxu0 0.0
    %1418 = vmatpush2.msra.mxu0 0.0
    %1419 = vmatprep.mubr.f32.mxu0 0.0
    %1420 = vmatmul.mubr.f32.gmra.mxu0 %v1353
    %v1421 = vpop.f32.mrf.mxu0
    %v1422 = vadd.f32 0.0, %v1421
    %v1423 = vpop.f32.mrf.mxu0
    %1424 = vdwg.mxu0
    %1425 = vrot.lane.b32.xlu0 %v163, 104
    %v1426 = vpop.permute.xlu0 %1425
    %1427 = vrot.lane.b32.xlu0 %v163, 72
    %v1428 = vpop.permute.xlu0 %1427
    %v1429 = vsel %vm261, %v1426, 0
    %v1431 = vsel %vm261, %v1428, 0
    %1433 = vmatprep.subr.mxu0 0.0
    %1434 = vmatpush1.xpose.msra.mxu0 0.0
    %1435 = vmatprep.subr.mxu0 0.0
    %1436 = vmatpush1.xpose.msra.mxu0 0.0
    %1437 = vmatprep.subr.mxu0 0.0
    %1438 = vmatpush1.xpose.msra.mxu0 0.0
    %1439 = vmatprep.subr.mxu0 0.0
    %1440 = vmatpush1.xpose.msra.mxu0 0.0
    %1441 = vmatprep.subr.mxu0 0.0
    %1442 = vmatpush1.xpose.msra.mxu0 0.0
    %1443 = vmatprep.subr.mxu0 0.0
    %1444 = vmatpush1.xpose.msra.mxu0 0.0
    %1445 = vmatprep.subr.mxu0 0.0
    %1446 = vmatpush1.xpose.msra.mxu0 0.0
    %1447 = vmatprep.subr.mxu0 0.0
    %1448 = vmatpush1.xpose.msra.mxu0 0.0
    %1449 = vmatprep.subr.mxu0 0.0
    %1450 = vmatpush1.xpose.msra.mxu0 0.0
    %1451 = vmatprep.subr.mxu0 0.0
    %1452 = vmatpush1.xpose.msra.mxu0 0.0
    %1453 = vmatprep.subr.mxu0 0.0
    %1454 = vmatpush1.xpose.msra.mxu0 0.0
    %1455 = vmatprep.subr.mxu0 0.0
    %1456 = vmatpush1.xpose.msra.mxu0 0.0
    %1457 = vmatprep.subr.mxu0 0.0
    %1458 = vmatpush1.xpose.msra.mxu0 0.0
    %1459 = vmatprep.subr.mxu0 0.0
    %1460 = vmatpush1.xpose.msra.mxu0 0.0
    %1461 = vmatprep.subr.mxu0 0.0
    %1462 = vmatpush1.xpose.msra.mxu0 0.0
    %1463 = vmatprep.subr.mxu0 0.0
    %1464 = vmatpush1.xpose.msra.mxu0 %v1431
    %1465 = vmatprep.subr.mxu0 0.0
    %1466 = vmatpush2.xpose.msra.mxu0 0.0
    %1467 = vmatprep.subr.mxu0 0.0
    %1468 = vmatpush2.xpose.msra.mxu0 0.0
    %1469 = vmatprep.subr.mxu0 0.0
    %1470 = vmatpush2.xpose.msra.mxu0 0.0
    %1471 = vmatprep.subr.mxu0 0.0
    %1472 = vmatpush2.xpose.msra.mxu0 0.0
    %1473 = vmatprep.subr.mxu0 0.0
    %1474 = vmatpush2.xpose.msra.mxu0 0.0
    %1475 = vmatprep.subr.mxu0 0.0
    %1476 = vmatpush2.xpose.msra.mxu0 0.0
    %1477 = vmatprep.subr.mxu0 0.0
    %1478 = vmatpush2.xpose.msra.mxu0 0.0
    %1479 = vmatprep.subr.mxu0 0.0
    %1480 = vmatpush2.xpose.msra.mxu0 0.0
    %1481 = vmatprep.subr.mxu0 0.0
    %1482 = vmatpush2.xpose.msra.mxu0 0.0
    %1483 = vmatprep.subr.mxu0 0.0
    %1484 = vmatpush2.xpose.msra.mxu0 0.0
    %1485 = vmatprep.subr.mxu0 0.0
    %1486 = vmatpush2.xpose.msra.mxu0 0.0
    %1487 = vmatprep.subr.mxu0 0.0
    %1488 = vmatpush2.xpose.msra.mxu0 0.0
    %1489 = vmatprep.subr.mxu0 0.0
    %1490 = vmatpush2.xpose.msra.mxu0 0.0
    %1491 = vmatprep.subr.mxu0 0.0
    %1492 = vmatpush2.xpose.msra.mxu0 0.0
    %1493 = vmatprep.subr.mxu0 0.0
    %1494 = vmatpush2.xpose.msra.mxu0 0.0
    %1495 = vmatprep.subr.mxu0 0.0
    %1496 = vmatpush2.xpose.msra.mxu0 0.0
    %1497 = vmatprep.mubr.f32.mxu0 0.0
    %1498 = vmatmul.mubr.f32.gmra.mxu0 %v1429
    %v1499 = vpop.f32.mrf.mxu0
    %v1500 = vadd.f32 0.0, %v1499
    %v1501 = vpop.f32.mrf.mxu0
    %1502 = vdwg.mxu0
    %v1503 = vsel %vm261, %v1500, -inf
    %1504 = vmax.xlane.f32.xlu0 %v1503
    %v1505 = vpop.xlane.xlu0 %1504
    %v1506 = vsub.f32 %v1500, %v1505
    %v1507 = vmul.f32 %v1506, 1.442695
    %v1508 = vpow.pop %v1507
    %v1509 = vsel %vm261, %v1508, 0.0
    %1510 = vadd.xlane.f32.xlu0 %v1509
    %v1511 = vpop.xlane.xlu0 %1510
    %v1512 = vrcp.pop %v1511
    %v1513 = vmul.f32 %v1508, %v1512
    %1514 = vrot.lane.b32.xlu0 %v255, 104
    %v1515 = vpop.permute.xlu0 %1514
    %v1518 = vsel %vm261, %v1513, 0
    %1520 = vmatprep.subr.mxu0 0.0
    %1521 = vmatpush1.msra.mxu0 0.0
    %1522 = vmatprep.subr.mxu0 0.0
    %1523 = vmatpush1.msra.mxu0 0.0
    %1524 = vmatprep.subr.mxu0 0.0
    %1525 = vmatpush1.msra.mxu0 0.0
    %1526 = vmatprep.subr.mxu0 0.0
    %1527 = vmatpush1.msra.mxu0 0.0
    %1528 = vmatprep.subr.mxu0 0.0
    %1529 = vmatpush1.msra.mxu0 0.0
    %1530 = vmatprep.subr.mxu0 0.0
    %1531 = vmatpush1.msra.mxu0 0.0
    %1532 = vmatprep.subr.mxu0 0.0
    %1533 = vmatpush1.msra.mxu0 0.0
    %1534 = vmatprep.subr.mxu0 0.0
    %1535 = vmatpush1.msra.mxu0 0.0
    %1536 = vmatprep.subr.mxu0 0.0
    %1537 = vmatpush1.msra.mxu0 0.0
    %1538 = vmatprep.subr.mxu0 0.0
    %1539 = vmatpush1.msra.mxu0 0.0
    %1540 = vmatprep.subr.mxu0 0.0
    %1541 = vmatpush1.msra.mxu0 0.0
    %1542 = vmatprep.subr.mxu0 0.0
    %1543 = vmatpush1.msra.mxu0 0.0
    %1544 = vmatprep.subr.mxu0 0.0
    %1545 = vmatpush1.msra.mxu0 0.0
    %1546 = vmatprep.subr.mxu0 0.0
    %1547 = vmatpush1.msra.mxu0 0.0
    %1548 = vmatprep.subr.mxu0 0.0
    %1549 = vmatpush1.msra.mxu0 0.0
    %1550 = vmatprep.subr.mxu0 0.0
    %1551 = vmatpush1.msra.mxu0 %v1515
    %1552 = vmatprep.subr.mxu0 0.0
    %1553 = vmatpush2.msra.mxu0 0.0
    %1554 = vmatprep.subr.mxu0 0.0
    %1555 = vmatpush2.msra.mxu0 0.0
    %1556 = vmatprep.subr.mxu0 0.0
    %1557 = vmatpush2.msra.mxu0 0.0
    %1558 = vmatprep.subr.mxu0 0.0
    %1559 = vmatpush2.msra.mxu0 0.0
    %1560 = vmatprep.subr.mxu0 0.0
    %1561 = vmatpush2.msra.mxu0 0.0
    %1562 = vmatprep.subr.mxu0 0.0
    %1563 = vmatpush2.msra.mxu0 0.0
    %1564 = vmatprep.subr.mxu0 0.0
    %1565 = vmatpush2.msra.mxu0 0.0
    %1566 = vmatprep.subr.mxu0 0.0
    %1567 = vmatpush2.msra.mxu0 0.0
    %1568 = vmatprep.subr.mxu0 0.0
    %1569 = vmatpush2.msra.mxu0 0.0
    %1570 = vmatprep.subr.mxu0 0.0
    %1571 = vmatpush2.msra.mxu0 0.0
    %1572 = vmatprep.subr.mxu0 0.0
    %1573 = vmatpush2.msra.mxu0 0.0
    %1574 = vmatprep.subr.mxu0 0.0
    %1575 = vmatpush2.msra.mxu0 0.0
    %1576 = vmatprep.subr.mxu0 0.0
    %1577 = vmatpush2.msra.mxu0 0.0
    %1578 = vmatprep.subr.mxu0 0.0
    %1579 = vmatpush2.msra.mxu0 0.0
    %1580 = vmatprep.subr.mxu0 0.0
    %1581 = vmatpush2.msra.mxu0 0.0
    %1582 = vmatprep.subr.mxu0 0.0
    %1583 = vmatpush2.msra.mxu0 0.0
    %1584 = vmatprep.mubr.f32.mxu0 0.0
    %1585 = vmatmul.mubr.f32.gmra.mxu0 %v1518
    %v1586 = vpop.f32.mrf.mxu0
    %v1587 = vadd.f32 0.0, %v1586
    %v1588 = vpop.f32.mrf.mxu0
    %1589 = vdwg.mxu0
    %1591 = vrot.lane.b32.xlu0 %v1257, 8
    %v1592 = vpop.permute.xlu0 %1591
    %1595 = vrot.lane.b32.xlu0 %v1422, 16
    %v1596 = vpop.permute.xlu0 %1595
    %1599 = vrot.lane.b32.xlu0 %v1587, 24
    %v1600 = vpop.permute.xlu0 %1599
    %v1602 = vsel %vm261, %v1091, %v1592
    %v1603 = vsel %vm929, %v1602, %v1596
    %v1604 = vsel %vm931, %v1603, %v1600
    %v1605 = vld [vmem:[%s6] sm:$0xff]
    %v1606 = vld [vmem:[%s6 + $0x8] sm:$0xff]
    %v1607 = vld [vmem:[%s6 + $0x10] sm:$0xff]
    %v1608 = vld [vmem:[%s6 + $0x18] sm:$0xff]
    %v1609 = vld [vmem:[%s7] sm:$0x1]
    %v1610 = vlaneseq
    %v1611 = vshrl.u32 %v1610, 7
    %v1612 = vsub.s32 0, %v1611
    %v1613 = vrot.slane %v1609, %v1612
    %v1615 = vsel %vm84, %v932, 0
    %v1618 = vsel %vm84, %v1604, 0
    %1620 = vmatprep.subr.mxu0 0.0
    %1621 = vmatpush1.msra.mxu0 0.0
    %1622 = vmatprep.subr.mxu0 0.0
    %1623 = vmatpush1.msra.mxu0 0.0
    %1624 = vmatprep.subr.mxu0 0.0
    %1625 = vmatpush1.msra.mxu0 0.0
    %1626 = vmatprep.subr.mxu0 0.0
    %1627 = vmatpush1.msra.mxu0 0.0
    %1628 = vmatprep.subr.mxu0 0.0
    %1629 = vmatpush1.msra.mxu0 0.0
    %1630 = vmatprep.subr.mxu0 0.0
    %1631 = vmatpush1.msra.mxu0 0.0
    %1632 = vmatprep.subr.mxu0 0.0
    %1633 = vmatpush1.msra.mxu0 0.0
    %1634 = vmatprep.subr.mxu0 0.0
    %1635 = vmatpush1.msra.mxu0 0.0
    %1636 = vmatprep.subr.mxu0 0.0
    %1637 = vmatpush1.msra.mxu0 0.0
    %1638 = vmatprep.subr.mxu0 0.0
    %1639 = vmatpush1.msra.mxu0 0.0
    %1640 = vmatprep.subr.mxu0 0.0
    %1641 = vmatpush1.msra.mxu0 0.0
    %1642 = vmatprep.subr.mxu0 0.0
    %1643 = vmatpush1.msra.mxu0 0.0
    %1644 = vmatprep.subr.mxu0 0.0
    %1645 = vmatpush1.msra.mxu0 %v1608
    %1646 = vmatprep.subr.mxu0 0.0
    %1647 = vmatpush1.msra.mxu0 %v1607
    %1648 = vmatprep.subr.mxu0 0.0
    %1649 = vmatpush1.msra.mxu0 %v1606
    %1650 = vmatprep.subr.mxu0 0.0
    %1651 = vmatpush1.msra.mxu0 %v1605
    %1652 = vmatprep.subr.mxu0 0.0
    %1653 = vmatpush2.msra.mxu0 0.0
    %1654 = vmatprep.subr.mxu0 0.0
    %1655 = vmatpush2.msra.mxu0 0.0
    %1656 = vmatprep.subr.mxu0 0.0
    %1657 = vmatpush2.msra.mxu0 0.0
    %1658 = vmatprep.subr.mxu0 0.0
    %1659 = vmatpush2.msra.mxu0 0.0
    %1660 = vmatprep.subr.mxu0 0.0
    %1661 = vmatpush2.msra.mxu0 0.0
    %1662 = vmatprep.subr.mxu0 0.0
    %1663 = vmatpush2.msra.mxu0 0.0
    %1664 = vmatprep.subr.mxu0 0.0
    %1665 = vmatpush2.msra.mxu0 0.0
    %1666 = vmatprep.subr.mxu0 0.0
    %1667 = vmatpush2.msra.mxu0 0.0
    %1668 = vmatprep.subr.mxu0 0.0
    %1669 = vmatpush2.msra.mxu0 0.0
    %1670 = vmatprep.subr.mxu0 0.0
    %1671 = vmatpush2.msra.mxu0 0.0
    %1672 = vmatprep.subr.mxu0 0.0
    %1673 = vmatpush2.msra.mxu0 0.0
    %1674 = vmatprep.subr.mxu0 0.0
    %1675 = vmatpush2.msra.mxu0 0.0
    %1676 = vmatprep.subr.mxu0 0.0
    %1677 = vmatpush2.msra.mxu0 0.0
    %1678 = vmatprep.subr.mxu0 0.0
    %1679 = vmatpush2.msra.mxu0 0.0
    %1680 = vmatprep.subr.mxu0 0.0
    %1681 = vmatpush2.msra.mxu0 0.0
    %1682 = vmatprep.subr.mxu0 0.0
    %1683 = vmatpush2.msra.mxu0 0.0
    %1684 = vmatprep.mubr.f32.mxu0 0.0
    %1685 = vmatmul.mubr.f32.gmra.mxu0 %v1615
    %v1686 = vpop.f32.mrf.mxu0
    %v1687 = vadd.f32 %v1613, %v1686
    %v1688 = vpop.f32.mrf.mxu0
    %1689 = vmatprep.mubr.f32.mxu0 0.0
    %1690 = vmatmul.mubr.f32.gmra.mxu0 %v1618
    %v1691 = vpop.f32.mrf.mxu0
    %v1692 = vadd.f32 %v1613, %v1691
    %v1693 = vpop.f32.mrf.mxu0
    %1694 = vdwg.mxu0
    %v1695 = vadd.f32 %v67, %v1687
    %v1696 = vadd.f32 %v68, %v1692
    %v1697 = vld [vmem:[%s7 + $0x2] sm:$0x1]
    %v1698 = vld [vmem:[%s7 + $0x3] sm:$0x1]
    %v1699 = vsel %vm84, %v1695, 0.0
    %1700 = vadd.xlane.f32.xlu0 %v1699
    %v1701 = vpop.xlane.xlu0 %1700
    %v1702 = vsel %vm84, %v1696, 0.0
    %1703 = vadd.xlane.f32.xlu0 %v1702
    %v1704 = vpop.xlane.xlu0 %1703
    %v1705 = vrcp.pop 32.0
    %v1706 = vmul.f32 %v1701, %v1705
    %v1707 = vmul.f32 %v1704, %v1705
    %v1708 = vsub.f32 %v1695, %v1706
    %v1709 = vsub.f32 %v1696, %v1707
    %v1710 = vmul.f32 %v1708, %v1708
    %v1711 = vmul.f32 %v1709, %v1709
    %v1712 = vsel %vm84, %v1710, 0.0
    %1713 = vadd.xlane.f32.xlu0 %v1712
    %v1714 = vpop.xlane.xlu0 %1713
    %v1715 = vsel %vm84, %v1711, 0.0
    %1716 = vadd.xlane.f32.xlu0 %v1715
    %v1717 = vpop.xlane.xlu0 %1716
    %v1718 = vmul.f32 %v1714, %v1705
    %v1719 = vmul.f32 %v1717, %v1705
    %v1720 = vadd.f32 %v1718, 1e-05
    %v1721 = vadd.f32 %v1719, 1e-05
    %v1722 = vrsqrt.pop %v1720
    %v1723 = vrsqrt.pop %v1721
    %v1724 = vmul.f32 %v1708, %v1722
    %v1725 = vmul.f32 %v1709, %v1723
    %v1726 = vlaneseq
    %v1727 = vshrl.u32 %v1726, 7
    %v1728 = vsub.s32 0, %v1727
    %v1729 = vrot.slane %v1697, %v1728
    %v1730 = vmul.f32 %v1724, %v1729
    %v1731 = vmul.f32 %v1725, %v1729
    %v1732 = vlaneseq
    %v1733 = vshrl.u32 %v1732, 7
    %v1734 = vsub.s32 0, %v1733
    %v1735 = vrot.slane %v1698, %v1734
    %v1736 = vadd.f32 %v1730, %v1735
    %v1737 = vadd.f32 %v1731, %v1735
    %v1738 = vld [vmem:[#allocation5] sm:$0xff]
    %v1739 = vld [vmem:[#allocation5 + $0x8] sm:$0xff]
    %v1740 = vld [vmem:[#allocation5 + $0x10] sm:$0xff]
    %v1741 = vld [vmem:[#allocation5 + $0x18] sm:$0xff]
    %v1742 = vld [vmem:[%s9] sm:$0x1]
    %v1744 = vlaneseq
    %v1745 = vshrl.u32 %v1744, 7
    %v1746 = vsub.s32 0, %v1745
    %v1747 = vrot.slane %v1742, %v1746
    %v1750 = vsel %vm84, %v1736, 0
    %v1753 = vsel %vm84, %v1737, 0
    %1755 = vmatprep.subr.mxu0 0.0
    %1756 = vmatpush1.msra.mxu0 0.0
    %1757 = vmatprep.subr.mxu0 0.0
    %1758 = vmatpush1.msra.mxu0 0.0
    %1759 = vmatprep.subr.mxu0 0.0
    %1760 = vmatpush1.msra.mxu0 0.0
    %1761 = vmatprep.subr.mxu0 0.0
    %1762 = vmatpush1.msra.mxu0 0.0
    %1763 = vmatprep.subr.mxu0 0.0
    %1764 = vmatpush1.msra.mxu0 0.0
    %1765 = vmatprep.subr.mxu0 0.0
    %1766 = vmatpush1.msra.mxu0 0.0
    %1767 = vmatprep.subr.mxu0 0.0
    %1768 = vmatpush1.msra.mxu0 0.0
    %1769 = vmatprep.subr.mxu0 0.0
    %1770 = vmatpush1.msra.mxu0 0.0
    %1771 = vmatprep.subr.mxu0 0.0
    %1772 = vmatpush1.msra.mxu0 0.0
    %1773 = vmatprep.subr.mxu0 0.0
    %1774 = vmatpush1.msra.mxu0 0.0
    %1775 = vmatprep.subr.mxu0 0.0
    %1776 = vmatpush1.msra.mxu0 0.0
    %1777 = vmatprep.subr.mxu0 0.0
    %1778 = vmatpush1.msra.mxu0 0.0
    %1779 = vmatprep.subr.mxu0 0.0
    %1780 = vmatpush1.msra.mxu0 %v1741
    %1781 = vmatprep.subr.mxu0 0.0
    %1782 = vmatpush1.msra.mxu0 %v1740
    %1783 = vmatprep.subr.mxu0 0.0
    %1784 = vmatpush1.msra.mxu0 %v1739
    %1785 = vmatprep.subr.mxu0 0.0
    %1786 = vmatpush1.msra.mxu0 %v1738
    %1787 = vmatprep.subr.mxu0 0.0
    %1788 = vmatpush2.msra.mxu0 0.0
    %1789 = vmatprep.subr.mxu0 0.0
    %1790 = vmatpush2.msra.mxu0 0.0
    %1791 = vmatprep.subr.mxu0 0.0
    %1792 = vmatpush2.msra.mxu0 0.0
    %1793 = vmatprep.subr.mxu0 0.0
    %1794 = vmatpush2.msra.mxu0 0.0
    %1795 = vmatprep.subr.mxu0 0.0
    %1796 = vmatpush2.msra.mxu0 0.0
    %1797 = vmatprep.subr.mxu0 0.0
    %1798 = vmatpush2.msra.mxu0 0.0
    %1799 = vmatprep.subr.mxu0 0.0
    %1800 = vmatpush2.msra.mxu0 0.0
    %1801 = vmatprep.subr.mxu0 0.0
    %1802 = vmatpush2.msra.mxu0 0.0
    %1803 = vmatprep.subr.mxu0 0.0
    %1804 = vmatpush2.msra.mxu0 0.0
    %1805 = vmatprep.subr.mxu0 0.0
    %1806 = vmatpush2.msra.mxu0 0.0
    %1807 = vmatprep.subr.mxu0 0.0
    %1808 = vmatpush2.msra.mxu0 0.0
    %1809 = vmatprep.subr.mxu0 0.0
    %1810 = vmatpush2.msra.mxu0 0.0
    %1811 = vmatprep.subr.mxu0 0.0
    %1812 = vmatpush2.msra.mxu0 0.0
    %1813 = vmatprep.subr.mxu0 0.0
    %1814 = vmatpush2.msra.mxu0 0.0
    %1815 = vmatprep.subr.mxu0 0.0
    %1816 = vmatpush2.msra.mxu0 0.0
    %1817 = vmatprep.subr.mxu0 0.0
    %1818 = vmatpush2.msra.mxu0 0.0
    %1819 = vmatprep.mubr.f32.mxu0 0.0
    %1820 = vmatmul.mubr.f32.gmra.mxu0 %v1750
    %v1821 = vpop.f32.mrf.mxu0
    %v1822 = vadd.f32 %v1747, %v1821
    %v1823 = vpop.f32.mrf.mxu0
    %1824 = vmatprep.mubr.f32.mxu0 0.0
    %1825 = vmatmul.mubr.f32.gmra.mxu0 %v1753
    %v1826 = vpop.f32.mrf.mxu0
    %v1827 = vadd.f32 %v1747, %v1826
    %v1828 = vpop.f32.mrf.mxu0
    %1829 = vdwg.mxu0
    %v1830 = vmax.f32 %v1822, 0.0
    %v1831 = vmax.f32 %v1827, 0.0
    %v1832 = vld [vmem:[%s10] sm:$0xff]
    %v1833 = vld [vmem:[%s10 + $0x8] sm:$0xff]
    %v1834 = vld [vmem:[%s10 + $0x10] sm:$0xff]
    %v1835 = vld [vmem:[%s10 + $0x18] sm:$0xff]
    %v1836 = vld [vmem:[%s10 + $0x20] sm:$0xff]
    %v1837 = vld [vmem:[%s10 + $0x28] sm:$0xff]
    %v1838 = vld [vmem:[%s10 + $0x30] sm:$0xff]
    %v1839 = vld [vmem:[%s10 + $0x38] sm:$0xff]
    %v1840 = vld [vmem:[%s7 + $0x1] sm:$0x1]
    %v1841 = vlaneseq
    %v1842 = vshrl.u32 %v1841, 7
    %v1843 = vsub.s32 0, %v1842
    %v1844 = vrot.slane %v1840, %v1843
    %vm1845 = vcmask 523264
    %v1847 = vsel %vm1845, %v1830, 0
    %v1850 = vsel %vm1845, %v1831, 0
    %1852 = vmatprep.subr.mxu0 0.0
    %1853 = vmatpush1.msra.mxu0 0.0
    %1854 = vmatprep.subr.mxu0 0.0
    %1855 = vmatpush1.msra.mxu0 0.0
    %1856 = vmatprep.subr.mxu0 0.0
    %1857 = vmatpush1.msra.mxu0 0.0
    %1858 = vmatprep.subr.mxu0 0.0
    %1859 = vmatpush1.msra.mxu0 0.0
    %1860 = vmatprep.subr.mxu0 0.0
    %1861 = vmatpush1.msra.mxu0 0.0
    %1862 = vmatprep.subr.mxu0 0.0
    %1863 = vmatpush1.msra.mxu0 0.0
    %1864 = vmatprep.subr.mxu0 0.0
    %1865 = vmatpush1.msra.mxu0 0.0
    %1866 = vmatprep.subr.mxu0 0.0
    %1867 = vmatpush1.msra.mxu0 0.0
    %1868 = vmatprep.subr.mxu0 0.0
    %1869 = vmatpush1.msra.mxu0 %v1839
    %1870 = vmatprep.subr.mxu0 0.0
    %1871 = vmatpush1.msra.mxu0 %v1838
    %1872 = vmatprep.subr.mxu0 0.0
    %1873 = vmatpush1.msra.mxu0 %v1837
    %1874 = vmatprep.subr.mxu0 0.0
    %1875 = vmatpush1.msra.mxu0 %v1836
    %1876 = vmatprep.subr.mxu0 0.0
    %1877 = vmatpush1.msra.mxu0 %v1835
    %1878 = vmatprep.subr.mxu0 0.0
    %1879 = vmatpush1.msra.mxu0 %v1834
    %1880 = vmatprep.subr.mxu0 0.0
    %1881 = vmatpush1.msra.mxu0 %v1833
    %1882 = vmatprep.subr.mxu0 0.0
    %1883 = vmatpush1.msra.mxu0 %v1832
    %1884 = vmatprep.subr.mxu0 0.0
    %1885 = vmatpush2.msra.mxu0 0.0
    %1886 = vmatprep.subr.mxu0 0.0
    %1887 = vmatpush2.msra.mxu0 0.0
    %1888 = vmatprep.subr.mxu0 0.0
    %1889 = vmatpush2.msra.mxu0 0.0
    %1890 = vmatprep.subr.mxu0 0.0
    %1891 = vmatpush2.msra.mxu0 0.0
    %1892 = vmatprep.subr.mxu0 0.0
    %1893 = vmatpush2.msra.mxu0 0.0
    %1894 = vmatprep.subr.mxu0 0.0
    %1895 = vmatpush2.msra.mxu0 0.0
    %1896 = vmatprep.subr.mxu0 0.0
    %1897 = vmatpush2.msra.mxu0 0.0
    %1898 = vmatprep.subr.mxu0 0.0
    %1899 = vmatpush2.msra.mxu0 0.0
    %1900 = vmatprep.subr.mxu0 0.0
    %1901 = vmatpush2.msra.mxu0 0.0
    %1902 = vmatprep.subr.mxu0 0.0
    %1903 = vmatpush2.msra.mxu0 0.0
    %1904 = vmatprep.subr.mxu0 0.0
    %1905 = vmatpush2.msra.mxu0 0.0
    %1906 = vmatprep.subr.mxu0 0.0
    %1907 = vmatpush2.msra.mxu0 0.0
    %1908 = vmatprep.subr.mxu0 0.0
    %1909 = vmatpush2.msra.mxu0 0.0
    %1910 = vmatprep.subr.mxu0 0.0
    %1911 = vmatpush2.msra.mxu0 0.0
    %1912 = vmatprep.subr.mxu0 0.0
    %1913 = vmatpush2.msra.mxu0 0.0
    %1914 = vmatprep.subr.mxu0 0.0
    %1915 = vmatpush2.msra.mxu0 0.0
    %1916 = vmatprep.mubr.f32.mxu0 0.0
    %1917 = vmatmul.mubr.f32.gmra.mxu0 %v1847
    %v1918 = vpop.f32.mrf.mxu0
    %v1919 = vadd.f32 %v1844, %v1918
    %v1920 = vpop.f32.mrf.mxu0
    %1921 = vmatprep.mubr.f32.mxu0 0.0
    %1922 = vmatmul.mubr.f32.gmra.mxu0 %v1850
    %v1923 = vpop.f32.mrf.mxu0
    %v1924 = vadd.f32 %v1844, %v1923
    %v1925 = vpop.f32.mrf.mxu0
    %1926 = vdwg.mxu0
    %v1927 = vadd.f32 %v1736, %v1919
    %v1928 = vadd.f32 %v1737, %v1924
    %v1929 = vld [vmem:[%s7 + $0x4] sm:$0x1]
    %v1930 = vld [vmem:[%s7 + $0x5] sm:$0x1]
    %v1931 = vsel %vm84, %v1927, 0.0
    %1932 = vadd.xlane.f32.xlu0 %v1931
    %v1933 = vpop.xlane.xlu0 %1932
    %v1934 = vsel %vm84, %v1928, 0.0
    %1935 = vadd.xlane.f32.xlu0 %v1934
    %v1936 = vpop.xlane.xlu0 %1935
    %v1937 = vmul.f32 %v1933, %v1705
    %v1938 = vmul.f32 %v1936, %v1705
    %v1939 = vsub.f32 %v1927, %v1937
    %v1940 = vsub.f32 %v1928, %v1938
    %v1941 = vmul.f32 %v1939, %v1939
    %v1942 = vmul.f32 %v1940, %v1940
    %v1943 = vsel %vm84, %v1941, 0.0
    %1944 = vadd.xlane.f32.xlu0 %v1943
    %v1945 = vpop.xlane.xlu0 %1944
    %v1946 = vsel %vm84, %v1942, 0.0
    %1947 = vadd.xlane.f32.xlu0 %v1946
    %v1948 = vpop.xlane.xlu0 %1947
    %v1949 = vmul.f32 %v1945, %v1705
    %v1950 = vmul.f32 %v1948, %v1705
    %v1951 = vadd.f32 %v1949, 1e-05
    %v1952 = vadd.f32 %v1950, 1e-05
    %v1953 = vrsqrt.pop %v1951
    %v1954 = vrsqrt.pop %v1952
    %v1955 = vmul.f32 %v1939, %v1953
    %v1956 = vmul.f32 %v1940, %v1954
    %v1957 = vlaneseq
    %v1958 = vshrl.u32 %v1957, 7
    %v1959 = vsub.s32 0, %v1958
    %v1960 = vrot.slane %v1929, %v1959
    %v1961 = vmul.f32 %v1955, %v1960
    %v1962 = vmul.f32 %v1956, %v1960
    %v1963 = vlaneseq
    %v1964 = vshrl.u32 %v1963, 7
    %v1965 = vsub.s32 0, %v1964
    %v1966 = vrot.slane %v1930, %v1965
    %v1967 = vadd.f32 %v1961, %v1966
    %v1968 = vadd.f32 %v1962, %v1966
    %v1969 = vadd.f32 %v1967, %v69
    %v1970 = vadd.f32 %v1968, %v70
    %s1971 = scalar_lea.vmem %s2, 32
    %v1972 = vld [vmem:[%s1971] sm:$0xff]
    %v1973 = vld [vmem:[%s1971 + $0x8] sm:$0xff]
    %v1974 = vld [vmem:[%s1971 + $0x10] sm:$0xff]
    %v1975 = vld [vmem:[%s1971 + $0x18] sm:$0xff]
    %s1976 = scalar_lea.vmem %s3, 1
    %v1977 = vld [vmem:[%s1976] sm:$0x1]
    %v1979 = vlaneseq
    %v1980 = vshrl.u32 %v1979, 7
    %v1981 = vsub.s32 0, %v1980
    %v1982 = vrot.slane %v1977, %v1981
    %v1985 = vsel %vm84, %v1969, 0
    %v1988 = vsel %vm84, %v1970, 0
    %1990 = vmatprep.subr.mxu0 0.0
    %1991 = vmatpush1.msra.mxu0 0.0
    %1992 = vmatprep.subr.mxu0 0.0
    %1993 = vmatpush1.msra.mxu0 0.0
    %1994 = vmatprep.subr.mxu0 0.0
    %1995 = vmatpush1.msra.mxu0 0.0
    %1996 = vmatprep.subr.mxu0 0.0
    %1997 = vmatpush1.msra.mxu0 0.0
    %1998 = vmatprep.subr.mxu0 0.0
    %1999 = vmatpush1.msra.mxu0 0.0
    %2000 = vmatprep.subr.mxu0 0.0
    %2001 = vmatpush1.msra.mxu0 0.0
    %2002 = vmatprep.subr.mxu0 0.0
    %2003 = vmatpush1.msra.mxu0 0.0
    %2004 = vmatprep.subr.mxu0 0.0
    %2005 = vmatpush1.msra.mxu0 0.0
    %2006 = vmatprep.subr.mxu0 0.0
    %2007 = vmatpush1.msra.mxu0 0.0
    %2008 = vmatprep.subr.mxu0 0.0
    %2009 = vmatpush1.msra.mxu0 0.0
    %2010 = vmatprep.subr.mxu0 0.0
    %2011 = vmatpush1.msra.mxu0 0.0
    %2012 = vmatprep.subr.mxu0 0.0
    %2013 = vmatpush1.msra.mxu0 0.0
    %2014 = vmatprep.subr.mxu0 0.0
    %2015 = vmatpush1.msra.mxu0 %v1975
    %2016 = vmatprep.subr.mxu0 0.0
    %2017 = vmatpush1.msra.mxu0 %v1974
    %2018 = vmatprep.subr.mxu0 0.0
    %2019 = vmatpush1.msra.mxu0 %v1973
    %2020 = vmatprep.subr.mxu0 0.0
    %2021 = vmatpush1.msra.mxu0 %v1972
    %2022 = vmatprep.subr.mxu0 0.0
    %2023 = vmatpush2.msra.mxu0 0.0
    %2024 = vmatprep.subr.mxu0 0.0
    %2025 = vmatpush2.msra.mxu0 0.0
    %2026 = vmatprep.subr.mxu0 0.0
    %2027 = vmatpush2.msra.mxu0 0.0
    %2028 = vmatprep.subr.mxu0 0.0
    %2029 = vmatpush2.msra.mxu0 0.0
    %2030 = vmatprep.subr.mxu0 0.0
    %2031 = vmatpush2.msra.mxu0 0.0
    %2032 = vmatprep.subr.mxu0 0.0
    %2033 = vmatpush2.msra.mxu0 0.0
    %2034 = vmatprep.subr.mxu0 0.0
    %2035 = vmatpush2.msra.mxu0 0.0
    %2036 = vmatprep.subr.mxu0 0.0
    %2037 = vmatpush2.msra.mxu0 0.0
    %2038 = vmatprep.subr.mxu0 0.0
    %2039 = vmatpush2.msra.mxu0 0.0
    %2040 = vmatprep.subr.mxu0 0.0
    %2041 = vmatpush2.msra.mxu0 0.0
    %2042 = vmatprep.subr.mxu0 0.0
    %2043 = vmatpush2.msra.mxu0 0.0
    %2044 = vmatprep.subr.mxu0 0.0
    %2045 = vmatpush2.msra.mxu0 0.0
    %2046 = vmatprep.subr.mxu0 0.0
    %2047 = vmatpush2.msra.mxu0 0.0
    %2048 = vmatprep.subr.mxu0 0.0
    %2049 = vmatpush2.msra.mxu0 0.0
    %2050 = vmatprep.subr.mxu0 0.0
    %2051 = vmatpush2.msra.mxu0 0.0
    %2052 = vmatprep.subr.mxu0 0.0
    %2053 = vmatpush2.msra.mxu0 0.0
    %2054 = vmatprep.mubr.f32.mxu0 0.0
    %2055 = vmatmul.mubr.f32.gmra.mxu0 %v1985
    %v2056 = vpop.f32.mrf.mxu0
    %v2057 = vadd.f32 %v1982, %v2056
    %v2058 = vpop.f32.mrf.mxu0
    %2059 = vmatprep.mubr.f32.mxu0 0.0
    %2060 = vmatmul.mubr.f32.gmra.mxu0 %v1988
    %v2061 = vpop.f32.mrf.mxu0
    %v2062 = vadd.f32 %v1982, %v2061
    %v2063 = vpop.f32.mrf.mxu0
    %2064 = vdwg.mxu0
    %s2065 = scalar_lea.vmem %s4, 32
    %v2066 = vld [vmem:[%s2065] sm:$0xff]
    %v2067 = vld [vmem:[%s2065 + $0x8] sm:$0xff]
    %v2068 = vld [vmem:[%s2065 + $0x10] sm:$0xff]
    %v2069 = vld [vmem:[%s2065 + $0x18] sm:$0xff]
    %s2070 = scalar_lea.vmem %s5, 1
    %v2071 = vld [vmem:[%s2070] sm:$0x1]
    %v2073 = vlaneseq
    %v2074 = vshrl.u32 %v2073, 7
    %v2075 = vsub.s32 0, %v2074
    %v2076 = vrot.slane %v2071, %v2075
    %v2079 = vsel %vm84, %v1967, 0
    %v2082 = vsel %vm84, %v1968, 0
    %2084 = vmatprep.subr.mxu0 0.0
    %2085 = vmatpush1.msra.mxu0 0.0
    %2086 = vmatprep.subr.mxu0 0.0
    %2087 = vmatpush1.msra.mxu0 0.0
    %2088 = vmatprep.subr.mxu0 0.0
    %2089 = vmatpush1.msra.mxu0 0.0
    %2090 = vmatprep.subr.mxu0 0.0
    %2091 = vmatpush1.msra.mxu0 0.0
    %2092 = vmatprep.subr.mxu0 0.0
    %2093 = vmatpush1.msra.mxu0 0.0
    %2094 = vmatprep.subr.mxu0 0.0
    %2095 = vmatpush1.msra.mxu0 0.0
    %2096 = vmatprep.subr.mxu0 0.0
    %2097 = vmatpush1.msra.mxu0 0.0
    %2098 = vmatprep.subr.mxu0 0.0
    %2099 = vmatpush1.msra.mxu0 0.0
    %2100 = vmatprep.subr.mxu0 0.0
    %2101 = vmatpush1.msra.mxu0 0.0
    %2102 = vmatprep.subr.mxu0 0.0
    %2103 = vmatpush1.msra.mxu0 0.0
    %2104 = vmatprep.subr.mxu0 0.0
    %2105 = vmatpush1.msra.mxu0 0.0
    %2106 = vmatprep.subr.mxu0 0.0
    %2107 = vmatpush1.msra.mxu0 0.0
    %2108 = vmatprep.subr.mxu0 0.0
    %2109 = vmatpush1.msra.mxu0 %v2069
    %2110 = vmatprep.subr.mxu0 0.0
    %2111 = vmatpush1.msra.mxu0 %v2068
    %2112 = vmatprep.subr.mxu0 0.0
    %2113 = vmatpush1.msra.mxu0 %v2067
    %2114 = vmatprep.subr.mxu0 0.0
    %2115 = vmatpush1.msra.mxu0 %v2066
    %2116 = vmatprep.subr.mxu0 0.0
    %2117 = vmatpush2.msra.mxu0 0.0
    %2118 = vmatprep.subr.mxu0 0.0
    %2119 = vmatpush2.msra.mxu0 0.0
    %2120 = vmatprep.subr.mxu0 0.0
    %2121 = vmatpush2.msra.mxu0 0.0
    %2122 = vmatprep.subr.mxu0 0.0
    %2123 = vmatpush2.msra.mxu0 0.0
    %2124 = vmatprep.subr.mxu0 0.0
    %2125 = vmatpush2.msra.mxu0 0.0
    %2126 = vmatprep.subr.mxu0 0.0
    %2127 = vmatpush2.msra.mxu0 0.0
    %2128 = vmatprep.subr.mxu0 0.0
    %2129 = vmatpush2.msra.mxu0 0.0
    %2130 = vmatprep.subr.mxu0 0.0
    %2131 = vmatpush2.msra.mxu0 0.0
    %2132 = vmatprep.subr.mxu0 0.0
    %2133 = vmatpush2.msra.mxu0 0.0
    %2134 = vmatprep.subr.mxu0 0.0
    %2135 = vmatpush2.msra.mxu0 0.0
    %2136 = vmatprep.subr.mxu0 0.0
    %2137 = vmatpush2.msra.mxu0 0.0
    %2138 = vmatprep.subr.mxu0 0.0
    %2139 = vmatpush2.msra.mxu0 0.0
    %2140 = vmatprep.subr.mxu0 0.0
    %2141 = vmatpush2.msra.mxu0 0.0
    %2142 = vmatprep.subr.mxu0 0.0
    %2143 = vmatpush2.msra.mxu0 0.0
    %2144 = vmatprep.subr.mxu0 0.0
    %2145 = vmatpush2.msra.mxu0 0.0
    %2146 = vmatprep.subr.mxu0 0.0
    %2147 = vmatpush2.msra.mxu0 0.0
    %2148 = vmatprep.mubr.f32.mxu0 0.0
    %2149 = vmatmul.mubr.f32.gmra.mxu0 %v2079
    %v2150 = vpop.f32.mrf.mxu0
    %v2151 = vadd.f32 %v2076, %v2150
    %v2152 = vpop.f32.mrf.mxu0
    %2153 = vmatprep.mubr.f32.mxu0 0.0
    %2154 = vmatmul.mubr.f32.gmra.mxu0 %v2082
    %v2155 = vpop.f32.mrf.mxu0
    %v2156 = vadd.f32 %v2076, %v2155
    %v2157 = vpop.f32.mrf.mxu0
    %2158 = vdwg.mxu0
    %2160 = vrot.lane.b32.xlu0 %v2057, 96
    %v2161 = vpop.permute.xlu0 %2160
    %v2162 = vsel %vm261, %v2057, 0
    %v2164 = vsel %vm261, %v2161, 0
    %2166 = vmatprep.subr.mxu0 0.0
    %2167 = vmatpush1.xpose.msra.mxu0 0.0
    %2168 = vmatprep.subr.mxu0 0.0
    %2169 = vmatpush1.xpose.msra.mxu0 0.0
    %2170 = vmatprep.subr.mxu0 0.0
    %2171 = vmatpush1.xpose.msra.mxu0 0.0
    %2172 = vmatprep.subr.mxu0 0.0
    %2173 = vmatpush1.xpose.msra.mxu0 0.0
    %2174 = vmatprep.subr.mxu0 0.0
    %2175 = vmatpush1.xpose.msra.mxu0 0.0
    %2176 = vmatprep.subr.mxu0 0.0
    %2177 = vmatpush1.xpose.msra.mxu0 0.0
    %2178 = vmatprep.subr.mxu0 0.0
    %2179 = vmatpush1.xpose.msra.mxu0 0.0
    %2180 = vmatprep.subr.mxu0 0.0
    %2181 = vmatpush1.xpose.msra.mxu0 0.0
    %2182 = vmatprep.subr.mxu0 0.0
    %2183 = vmatpush1.xpose.msra.mxu0 0.0
    %2184 = vmatprep.subr.mxu0 0.0
    %2185 = vmatpush1.xpose.msra.mxu0 0.0
    %2186 = vmatprep.subr.mxu0 0.0
    %2187 = vmatpush1.xpose.msra.mxu0 0.0
    %2188 = vmatprep.subr.mxu0 0.0
    %2189 = vmatpush1.xpose.msra.mxu0 0.0
    %2190 = vmatprep.subr.mxu0 0.0
    %2191 = vmatpush1.xpose.msra.mxu0 0.0
    %2192 = vmatprep.subr.mxu0 0.0
    %2193 = vmatpush1.xpose.msra.mxu0 0.0
    %2194 = vmatprep.subr.mxu0 0.0
    %2195 = vmatpush1.xpose.msra.mxu0 0.0
    %2196 = vmatprep.subr.mxu0 0.0
    %2197 = vmatpush1.xpose.msra.mxu0 %v2164
    %2198 = vmatprep.subr.mxu0 0.0
    %2199 = vmatpush2.xpose.msra.mxu0 0.0
    %2200 = vmatprep.subr.mxu0 0.0
    %2201 = vmatpush2.xpose.msra.mxu0 0.0
    %2202 = vmatprep.subr.mxu0 0.0
    %2203 = vmatpush2.xpose.msra.mxu0 0.0
    %2204 = vmatprep.subr.mxu0 0.0
    %2205 = vmatpush2.xpose.msra.mxu0 0.0
    %2206 = vmatprep.subr.mxu0 0.0
    %2207 = vmatpush2.xpose.msra.mxu0 0.0
    %2208 = vmatprep.subr.mxu0 0.0
    %2209 = vmatpush2.xpose.msra.mxu0 0.0
    %2210 = vmatprep.subr.mxu0 0.0
    %2211 = vmatpush2.xpose.msra.mxu0 0.0
    %2212 = vmatprep.subr.mxu0 0.0
    %2213 = vmatpush2.xpose.msra.mxu0 0.0
    %2214 = vmatprep.subr.mxu0 0.0
    %2215 = vmatpush2.xpose.msra.mxu0 0.0
    %2216 = vmatprep.subr.mxu0 0.0
    %2217 = vmatpush2.xpose.msra.mxu0 0.0
    %2218 = vmatprep.subr.mxu0 0.0
    %2219 = vmatpush2.xpose.msra.mxu0 0.0
    %2220 = vmatprep.subr.mxu0 0.0
    %2221 = vmatpush2.xpose.msra.mxu0 0.0
    %2222 = vmatprep.subr.mxu0 0.0
    %2223 = vmatpush2.xpose.msra.mxu0 0.0
    %2224 = vmatprep.subr.mxu0 0.0
    %2225 = vmatpush2.xpose.msra.mxu0 0.0
    %2226 = vmatprep.subr.mxu0 0.0
    %2227 = vmatpush2.xpose.msra.mxu0 0.0
    %2228 = vmatprep.subr.mxu0 0.0
    %2229 = vmatpush2.xpose.msra.mxu0 0.0
    %2230 = vmatprep.mubr.f32.mxu0 0.0
    %2231 = vmatmul.mubr.f32.gmra.mxu0 %v2162
    %v2232 = vpop.f32.mrf.mxu0
    %v2233 = vadd.f32 0.0, %v2232
    %v2234 = vpop.f32.mrf.mxu0
    %2235 = vdwg.mxu0
    %v2236 = vsel %vm261, %v2233, -inf
    %2237 = vmax.xlane.f32.xlu0 %v2236
    %v2238 = vpop.xlane.xlu0 %2237
    %v2239 = vsub.f32 %v2233, %v2238
    %v2240 = vmul.f32 %v2239, 1.442695
    %v2241 = vpow.pop %v2240
    %v2242 = vsel %vm261, %v2241, 0.0
    %2243 = vadd.xlane.f32.xlu0 %v2242
    %v2244 = vpop.xlane.xlu0 %2243
    %v2245 = vrcp.pop %v2244
    %v2246 = vmul.f32 %v2241, %v2245
    %v2248 = vsel %vm261, %v2246, 0
    %2250 = vmatprep.subr.mxu0 0.0
    %2251 = vmatpush1.msra.mxu0 0.0
    %2252 = vmatprep.subr.mxu0 0.0
    %2253 = vmatpush1.msra.mxu0 0.0
    %2254 = vmatprep.subr.mxu0 0.0
    %2255 = vmatpush1.msra.mxu0 0.0
    %2256 = vmatprep.subr.mxu0 0.0
    %2257 = vmatpush1.msra.mxu0 0.0
    %2258 = vmatprep.subr.mxu0 0.0
    %2259 = vmatpush1.msra.mxu0 0.0
    %2260 = vmatprep.subr.mxu0 0.0
    %2261 = vmatpush1.msra.mxu0 0.0
    %2262 = vmatprep.subr.mxu0 0.0
    %2263 = vmatpush1.msra.mxu0 0.0
    %2264 = vmatprep.subr.mxu0 0.0
    %2265 = vmatpush1.msra.mxu0 0.0
    %2266 = vmatprep.subr.mxu0 0.0
    %2267 = vmatpush1.msra.mxu0 0.0
    %2268 = vmatprep.subr.mxu0 0.0
    %2269 = vmatpush1.msra.mxu0 0.0
    %2270 = vmatprep.subr.mxu0 0.0
    %2271 = vmatpush1.msra.mxu0 0.0
    %2272 = vmatprep.subr.mxu0 0.0
    %2273 = vmatpush1.msra.mxu0 0.0
    %2274 = vmatprep.subr.mxu0 0.0
    %2275 = vmatpush1.msra.mxu0 0.0
    %2276 = vmatprep.subr.mxu0 0.0
    %2277 = vmatpush1.msra.mxu0 0.0
    %2278 = vmatprep.subr.mxu0 0.0
    %2279 = vmatpush1.msra.mxu0 0.0
    %2280 = vmatprep.subr.mxu0 0.0
    %2281 = vmatpush1.msra.mxu0 %v2151
    %2282 = vmatprep.subr.mxu0 0.0
    %2283 = vmatpush2.msra.mxu0 0.0
    %2284 = vmatprep.subr.mxu0 0.0
    %2285 = vmatpush2.msra.mxu0 0.0
    %2286 = vmatprep.subr.mxu0 0.0
    %2287 = vmatpush2.msra.mxu0 0.0
    %2288 = vmatprep.subr.mxu0 0.0
    %2289 = vmatpush2.msra.mxu0 0.0
    %2290 = vmatprep.subr.mxu0 0.0
    %2291 = vmatpush2.msra.mxu0 0.0
    %2292 = vmatprep.subr.mxu0 0.0
    %2293 = vmatpush2.msra.mxu0 0.0
    %2294 = vmatprep.subr.mxu0 0.0
    %2295 = vmatpush2.msra.mxu0 0.0
    %2296 = vmatprep.subr.mxu0 0.0
    %2297 = vmatpush2.msra.mxu0 0.0
    %2298 = vmatprep.subr.mxu0 0.0
    %2299 = vmatpush2.msra.mxu0 0.0
    %2300 = vmatprep.subr.mxu0 0.0
    %2301 = vmatpush2.msra.mxu0 0.0
    %2302 = vmatprep.subr.mxu0 0.0
    %2303 = vmatpush2.msra.mxu0 0.0
    %2304 = vmatprep.subr.mxu0 0.0
    %2305 = vmatpush2.msra.mxu0 0.0
    %2306 = vmatprep.subr.mxu0 0.0
    %2307 = vmatpush2.msra.mxu0 0.0
    %2308 = vmatprep.subr.mxu0 0.0
    %2309 = vmatpush2.msra.mxu0 0.0
    %2310 = vmatprep.subr.mxu0 0.0
    %2311 = vmatpush2.msra.mxu0 0.0
    %2312 = vmatprep.subr.mxu0 0.0
    %2313 = vmatpush2.msra.mxu0 0.0
    %2314 = vmatprep.mubr.f32.mxu0 0.0
    %2315 = vmatmul.mubr.f32.gmra.mxu0 %v2248
    %v2316 = vpop.f32.mrf.mxu0
    %v2317 = vadd.f32 0.0, %v2316
    %v2318 = vpop.f32.mrf.mxu0
    %2319 = vdwg.mxu0
    %2320 = vrot.lane.b32.xlu0 %v2057, 120
    %v2321 = vpop.permute.xlu0 %2320
    %2322 = vrot.lane.b32.xlu0 %v2057, 88
    %v2323 = vpop.permute.xlu0 %2322
    %v2324 = vsel %vm261, %v2321, 0
    %v2326 = vsel %vm261, %v2323, 0
    %2328 = vmatprep.subr.mxu0 0.0
    %2329 = vmatpush1.xpose.msra.mxu0 0.0
    %2330 = vmatprep.subr.mxu0 0.0
    %2331 = vmatpush1.xpose.msra.mxu0 0.0
    %2332 = vmatprep.subr.mxu0 0.0
    %2333 = vmatpush1.xpose.msra.mxu0 0.0
    %2334 = vmatprep.subr.mxu0 0.0
    %2335 = vmatpush1.xpose.msra.mxu0 0.0
    %2336 = vmatprep.subr.mxu0 0.0
    %2337 = vmatpush1.xpose.msra.mxu0 0.0
    %2338 = vmatprep.subr.mxu0 0.0
    %2339 = vmatpush1.xpose.msra.mxu0 0.0
    %2340 = vmatprep.subr.mxu0 0.0
    %2341 = vmatpush1.xpose.msra.mxu0 0.0
    %2342 = vmatprep.subr.mxu0 0.0
    %2343 = vmatpush1.xpose.msra.mxu0 0.0
    %2344 = vmatprep.subr.mxu0 0.0
    %2345 = vmatpush1.xpose.msra.mxu0 0.0
    %2346 = vmatprep.subr.mxu0 0.0
    %2347 = vmatpush1.xpose.msra.mxu0 0.0
    %2348 = vmatprep.subr.mxu0 0.0
    %2349 = vmatpush1.xpose.msra.mxu0 0.0
    %2350 = vmatprep.subr.mxu0 0.0
    %2351 = vmatpush1.xpose.msra.mxu0 0.0
    %2352 = vmatprep.subr.mxu0 0.0
    %2353 = vmatpush1.xpose.msra.mxu0 0.0
    %2354 = vmatprep.subr.mxu0 0.0
    %2355 = vmatpush1.xpose.msra.mxu0 0.0
    %2356 = vmatprep.subr.mxu0 0.0
    %2357 = vmatpush1.xpose.msra.mxu0 0.0
    %2358 = vmatprep.subr.mxu0 0.0
    %2359 = vmatpush1.xpose.msra.mxu0 %v2326
    %2360 = vmatprep.subr.mxu0 0.0
    %2361 = vmatpush2.xpose.msra.mxu0 0.0
    %2362 = vmatprep.subr.mxu0 0.0
    %2363 = vmatpush2.xpose.msra.mxu0 0.0
    %2364 = vmatprep.subr.mxu0 0.0
    %2365 = vmatpush2.xpose.msra.mxu0 0.0
    %2366 = vmatprep.subr.mxu0 0.0
    %2367 = vmatpush2.xpose.msra.mxu0 0.0
    %2368 = vmatprep.subr.mxu0 0.0
    %2369 = vmatpush2.xpose.msra.mxu0 0.0
    %2370 = vmatprep.subr.mxu0 0.0
    %2371 = vmatpush2.xpose.msra.mxu0 0.0
    %2372 = vmatprep.subr.mxu0 0.0
    %2373 = vmatpush2.xpose.msra.mxu0 0.0
    %2374 = vmatprep.subr.mxu0 0.0
    %2375 = vmatpush2.xpose.msra.mxu0 0.0
    %2376 = vmatprep.subr.mxu0 0.0
    %2377 = vmatpush2.xpose.msra.mxu0 0.0
    %2378 = vmatprep.subr.mxu0 0.0
    %2379 = vmatpush2.xpose.msra.mxu0 0.0
    %2380 = vmatprep.subr.mxu0 0.0
    %2381 = vmatpush2.xpose.msra.mxu0 0.0
    %2382 = vmatprep.subr.mxu0 0.0
    %2383 = vmatpush2.xpose.msra.mxu0 0.0
    %2384 = vmatprep.subr.mxu0 0.0
    %2385 = vmatpush2.xpose.msra.mxu0 0.0
    %2386 = vmatprep.subr.mxu0 0.0
    %2387 = vmatpush2.xpose.msra.mxu0 0.0
    %2388 = vmatprep.subr.mxu0 0.0
    %2389 = vmatpush2.xpose.msra.mxu0 0.0
    %2390 = vmatprep.subr.mxu0 0.0
    %2391 = vmatpush2.xpose.msra.mxu0 0.0
    %2392 = vmatprep.mubr.f32.mxu0 0.0
    %2393 = vmatmul.mubr.f32.gmra.mxu0 %v2324
    %v2394 = vpop.f32.mrf.mxu0
    %v2395 = vadd.f32 0.0, %v2394
    %v2396 = vpop.f32.mrf.mxu0
    %2397 = vdwg.mxu0
    %v2398 = vsel %vm261, %v2395, -inf
    %2399 = vmax.xlane.f32.xlu0 %v2398
    %v2400 = vpop.xlane.xlu0 %2399
    %v2401 = vsub.f32 %v2395, %v2400
    %v2402 = vmul.f32 %v2401, 1.442695
    %v2403 = vpow.pop %v2402
    %v2404 = vsel %vm261, %v2403, 0.0
    %2405 = vadd.xlane.f32.xlu0 %v2404
    %v2406 = vpop.xlane.xlu0 %2405
    %v2407 = vrcp.pop %v2406
    %v2408 = vmul.f32 %v2403, %v2407
    %2410 = vrot.lane.b32.xlu0 %v2151, 120
    %v2411 = vpop.permute.xlu0 %2410
    %v2414 = vsel %vm261, %v2408, 0
    %2416 = vmatprep.subr.mxu0 0.0
    %2417 = vmatpush1.msra.mxu0 0.0
    %2418 = vmatprep.subr.mxu0 0.0
    %2419 = vmatpush1.msra.mxu0 0.0
    %2420 = vmatprep.subr.mxu0 0.0
    %2421 = vmatpush1.msra.mxu0 0.0
    %2422 = vmatprep.subr.mxu0 0.0
    %2423 = vmatpush1.msra.mxu0 0.0
    %2424 = vmatprep.subr.mxu0 0.0
    %2425 = vmatpush1.msra.mxu0 0.0
    %2426 = vmatprep.subr.mxu0 0.0
    %2427 = vmatpush1.msra.mxu0 0.0
    %2428 = vmatprep.subr.mxu0 0.0
    %2429 = vmatpush1.msra.mxu0 0.0
    %2430 = vmatprep.subr.mxu0 0.0
    %2431 = vmatpush1.msra.mxu0 0.0
    %2432 = vmatprep.subr.mxu0 0.0
    %2433 = vmatpush1.msra.mxu0 0.0
    %2434 = vmatprep.subr.mxu0 0.0
    %2435 = vmatpush1.msra.mxu0 0.0
    %2436 = vmatprep.subr.mxu0 0.0
    %2437 = vmatpush1.msra.mxu0 0.0
    %2438 = vmatprep.subr.mxu0 0.0
    %2439 = vmatpush1.msra.mxu0 0.0
    %2440 = vmatprep.subr.mxu0 0.0
    %2441 = vmatpush1.msra.mxu0 0.0
    %2442 = vmatprep.subr.mxu0 0.0
    %2443 = vmatpush1.msra.mxu0 0.0
    %2444 = vmatprep.subr.mxu0 0.0
    %2445 = vmatpush1.msra.mxu0 0.0
    %2446 = vmatprep.subr.mxu0 0.0
    %2447 = vmatpush1.msra.mxu0 %v2411
    %2448 = vmatprep.subr.mxu0 0.0
    %2449 = vmatpush2.msra.mxu0 0.0
    %2450 = vmatprep.subr.mxu0 0.0
    %2451 = vmatpush2.msra.mxu0 0.0
    %2452 = vmatprep.subr.mxu0 0.0
    %2453 = vmatpush2.msra.mxu0 0.0
    %2454 = vmatprep.subr.mxu0 0.0
    %2455 = vmatpush2.msra.mxu0 0.0
    %2456 = vmatprep.subr.mxu0 0.0
    %2457 = vmatpush2.msra.mxu0 0.0
    %2458 = vmatprep.subr.mxu0 0.0
    %2459 = vmatpush2.msra.mxu0 0.0
    %2460 = vmatprep.subr.mxu0 0.0
    %2461 = vmatpush2.msra.mxu0 0.0
    %2462 = vmatprep.subr.mxu0 0.0
    %2463 = vmatpush2.msra.mxu0 0.0
    %2464 = vmatprep.subr.mxu0 0.0
    %2465 = vmatpush2.msra.mxu0 0.0
    %2466 = vmatprep.subr.mxu0 0.0
    %2467 = vmatpush2.msra.mxu0 0.0
    %2468 = vmatprep.subr.mxu0 0.0
    %2469 = vmatpush2.msra.mxu0 0.0
    %2470 = vmatprep.subr.mxu0 0.0
    %2471 = vmatpush2.msra.mxu0 0.0
    %2472 = vmatprep.subr.mxu0 0.0
    %2473 = vmatpush2.msra.mxu0 0.0
    %2474 = vmatprep.subr.mxu0 0.0
    %2475 = vmatpush2.msra.mxu0 0.0
    %2476 = vmatprep.subr.mxu0 0.0
    %2477 = vmatpush2.msra.mxu0 0.0
    %2478 = vmatprep.subr.mxu0 0.0
    %2479 = vmatpush2.msra.mxu0 0.0
    %2480 = vmatprep.mubr.f32.mxu0 0.0
    %2481 = vmatmul.mubr.f32.gmra.mxu0 %v2414
    %v2482 = vpop.f32.mrf.mxu0
    %v2483 = vadd.f32 0.0, %v2482
    %v2484 = vpop.f32.mrf.mxu0
    %2485 = vdwg.mxu0
    %2486 = vrot.lane.b32.xlu0 %v2057, 112
    %v2487 = vpop.permute.xlu0 %2486
    %2488 = vrot.lane.b32.xlu0 %v2057, 80
    %v2489 = vpop.permute.xlu0 %2488
    %v2490 = vsel %vm261, %v2487, 0
    %v2492 = vsel %vm261, %v2489, 0
    %2494 = vmatprep.subr.mxu0 0.0
    %2495 = vmatpush1.xpose.msra.mxu0 0.0
    %2496 = vmatprep.subr.mxu0 0.0
    %2497 = vmatpush1.xpose.msra.mxu0 0.0
    %2498 = vmatprep.subr.mxu0 0.0
    %2499 = vmatpush1.xpose.msra.mxu0 0.0
    %2500 = vmatprep.subr.mxu0 0.0
    %2501 = vmatpush1.xpose.msra.mxu0 0.0
    %2502 = vmatprep.subr.mxu0 0.0
    %2503 = vmatpush1.xpose.msra.mxu0 0.0
    %2504 = vmatprep.subr.mxu0 0.0
    %2505 = vmatpush1.xpose.msra.mxu0 0.0
    %2506 = vmatprep.subr.mxu0 0.0
    %2507 = vmatpush1.xpose.msra.mxu0 0.0
    %2508 = vmatprep.subr.mxu0 0.0
    %2509 = vmatpush1.xpose.msra.mxu0 0.0
    %2510 = vmatprep.subr.mxu0 0.0
    %2511 = vmatpush1.xpose.msra.mxu0 0.0
    %2512 = vmatprep.subr.mxu0 0.0
    %2513 = vmatpush1.xpose.msra.mxu0 0.0
    %2514 = vmatprep.subr.mxu0 0.0
    %2515 = vmatpush1.xpose.msra.mxu0 0.0
    %2516 = vmatprep.subr.mxu0 0.0
    %2517 = vmatpush1.xpose.msra.mxu0 0.0
    %2518 = vmatprep.subr.mxu0 0.0
    %2519 = vmatpush1.xpose.msra.mxu0 0.0
    %2520 = vmatprep.subr.mxu0 0.0
    %2521 = vmatpush1.xpose.msra.mxu0 0.0
    %2522 = vmatprep.subr.mxu0 0.0
    %2523 = vmatpush1.xpose.msra.mxu0 0.0
    %2524 = vmatprep.subr.mxu0 0.0
    %2525 = vmatpush1.xpose.msra.mxu0 %v2492
    %2526 = vmatprep.subr.mxu0 0.0
    %2527 = vmatpush2.xpose.msra.mxu0 0.0
    %2528 = vmatprep.subr.mxu0 0.0
    %2529 = vmatpush2.xpose.msra.mxu0 0.0
    %2530 = vmatprep.subr.mxu0 0.0
    %2531 = vmatpush2.xpose.msra.mxu0 0.0
    %2532 = vmatprep.subr.mxu0 0.0
    %2533 = vmatpush2.xpose.msra.mxu0 0.0
    %2534 = vmatprep.subr.mxu0 0.0
    %2535 = vmatpush2.xpose.msra.mxu0 0.0
    %2536 = vmatprep.subr.mxu0 0.0
    %2537 = vmatpush2.xpose.msra.mxu0 0.0
    %2538 = vmatprep.subr.mxu0 0.0
    %2539 = vmatpush2.xpose.msra.mxu0 0.0
    %2540 = vmatprep.subr.mxu0 0.0
    %2541 = vmatpush2.xpose.msra.mxu0 0.0
    %2542 = vmatprep.subr.mxu0 0.0
    %2543 = vmatpush2.xpose.msra.mxu0 0.0
    %2544 = vmatprep.subr.mxu0 0.0
    %2545 = vmatpush2.xpose.msra.mxu0 0.0
    %2546 = vmatprep.subr.mxu0 0.0
    %2547 = vmatpush2.xpose.msra.mxu0 0.0
    %2548 = vmatprep.subr.mxu0 0.0
    %2549 = vmatpush2.xpose.msra.mxu0 0.0
    %2550 = vmatprep.subr.mxu0 0.0
    %2551 = vmatpush2.xpose.msra.mxu0 0.0
    %2552 = vmatprep.subr.mxu0 0.0
    %2553 = vmatpush2.xpose.msra.mxu0 0.0
    %2554 = vmatprep.subr.mxu0 0.0
    %2555 = vmatpush2.xpose.msra.mxu0 0.0
    %2556 = vmatprep.subr.mxu0 0.0
    %2557 = vmatpush2.xpose.msra.mxu0 0.0
    %2558 = vmatprep.mubr.f32.mxu0 0.0
    %2559 = vmatmul.mubr.f32.gmra.mxu0 %v2490
    %v2560 = vpop.f32.mrf.mxu0
    %v2561 = vadd.f32 0.0, %v2560
    %v2562 = vpop.f32.mrf.mxu0
    %2563 = vdwg.mxu0
    %v2564 = vsel %vm261, %v2561, -inf
    %2565 = vmax.xlane.f32.xlu0 %v2564
    %v2566 = vpop.xlane.xlu0 %2565
    %v2567 = vsub.f32 %v2561, %v2566
    %v2568 = vmul.f32 %v2567, 1.442695
    %v2569 = vpow.pop %v2568
    %v2570 = vsel %vm261, %v2569, 0.0
    %2571 = vadd.xlane.f32.xlu0 %v2570
    %v2572 = vpop.xlane.xlu0 %2571
    %v2573 = vrcp.pop %v2572
    %v2574 = vmul.f32 %v2569, %v2573
    %2575 = vrot.lane.b32.xlu0 %v2151, 112
    %v2576 = vpop.permute.xlu0 %2575
    %v2579 = vsel %vm261, %v2574, 0
    %2581 = vmatprep.subr.mxu0 0.0
    %2582 = vmatpush1.msra.mxu0 0.0
    %2583 = vmatprep.subr.mxu0 0.0
    %2584 = vmatpush1.msra.mxu0 0.0
    %2585 = vmatprep.subr.mxu0 0.0
    %2586 = vmatpush1.msra.mxu0 0.0
    %2587 = vmatprep.subr.mxu0 0.0
    %2588 = vmatpush1.msra.mxu0 0.0
    %2589 = vmatprep.subr.mxu0 0.0
    %2590 = vmatpush1.msra.mxu0 0.0
    %2591 = vmatprep.subr.mxu0 0.0
    %2592 = vmatpush1.msra.mxu0 0.0
    %2593 = vmatprep.subr.mxu0 0.0
    %2594 = vmatpush1.msra.mxu0 0.0
    %2595 = vmatprep.subr.mxu0 0.0
    %2596 = vmatpush1.msra.mxu0 0.0
    %2597 = vmatprep.subr.mxu0 0.0
    %2598 = vmatpush1.msra.mxu0 0.0
    %2599 = vmatprep.subr.mxu0 0.0
    %2600 = vmatpush1.msra.mxu0 0.0
    %2601 = vmatprep.subr.mxu0 0.0
    %2602 = vmatpush1.msra.mxu0 0.0
    %2603 = vmatprep.subr.mxu0 0.0
    %2604 = vmatpush1.msra.mxu0 0.0
    %2605 = vmatprep.subr.mxu0 0.0
    %2606 = vmatpush1.msra.mxu0 0.0
    %2607 = vmatprep.subr.mxu0 0.0
    %2608 = vmatpush1.msra.mxu0 0.0
    %2609 = vmatprep.subr.mxu0 0.0
    %2610 = vmatpush1.msra.mxu0 0.0
    %2611 = vmatprep.subr.mxu0 0.0
    %2612 = vmatpush1.msra.mxu0 %v2576
    %2613 = vmatprep.subr.mxu0 0.0
    %2614 = vmatpush2.msra.mxu0 0.0
    %2615 = vmatprep.subr.mxu0 0.0
    %2616 = vmatpush2.msra.mxu0 0.0
    %2617 = vmatprep.subr.mxu0 0.0
    %2618 = vmatpush2.msra.mxu0 0.0
    %2619 = vmatprep.subr.mxu0 0.0
    %2620 = vmatpush2.msra.mxu0 0.0
    %2621 = vmatprep.subr.mxu0 0.0
    %2622 = vmatpush2.msra.mxu0 0.0
    %2623 = vmatprep.subr.mxu0 0.0
    %2624 = vmatpush2.msra.mxu0 0.0
    %2625 = vmatprep.subr.mxu0 0.0
    %2626 = vmatpush2.msra.mxu0 0.0
    %2627 = vmatprep.subr.mxu0 0.0
    %2628 = vmatpush2.msra.mxu0 0.0
    %2629 = vmatprep.subr.mxu0 0.0
    %2630 = vmatpush2.msra.mxu0 0.0
    %2631 = vmatprep.subr.mxu0 0.0
    %2632 = vmatpush2.msra.mxu0 0.0
    %2633 = vmatprep.subr.mxu0 0.0
    %2634 = vmatpush2.msra.mxu0 0.0
    %2635 = vmatprep.subr.mxu0 0.0
    %2636 = vmatpush2.msra.mxu0 0.0
    %2637 = vmatprep.subr.mxu0 0.0
    %2638 = vmatpush2.msra.mxu0 0.0
    %2639 = vmatprep.subr.mxu0 0.0
    %2640 = vmatpush2.msra.mxu0 0.0
    %2641 = vmatprep.subr.mxu0 0.0
    %2642 = vmatpush2.msra.mxu0 0.0
    %2643 = vmatprep.subr.mxu0 0.0
    %2644 = vmatpush2.msra.mxu0 0.0
    %2645 = vmatprep.mubr.f32.mxu0 0.0
    %2646 = vmatmul.mubr.f32.gmra.mxu0 %v2579
    %v2647 = vpop.f32.mrf.mxu0
    %v2648 = vadd.f32 0.0, %v2647
    %v2649 = vpop.f32.mrf.mxu0
    %2650 = vdwg.mxu0
    %2651 = vrot.lane.b32.xlu0 %v2057, 104
    %v2652 = vpop.permute.xlu0 %2651
    %2653 = vrot.lane.b32.xlu0 %v2057, 72
    %v2654 = vpop.permute.xlu0 %2653
    %v2655 = vsel %vm261, %v2652, 0
    %v2657 = vsel %vm261, %v2654, 0
    %2659 = vmatprep.subr.mxu0 0.0
    %2660 = vmatpush1.xpose.msra.mxu0 0.0
    %2661 = vmatprep.subr.mxu0 0.0
    %2662 = vmatpush1.xpose.msra.mxu0 0.0
    %2663 = vmatprep.subr.mxu0 0.0
    %2664 = vmatpush1.xpose.msra.mxu0 0.0
    %2665 = vmatprep.subr.mxu0 0.0
    %2666 = vmatpush1.xpose.msra.mxu0 0.0
    %2667 = vmatprep.subr.mxu0 0.0
    %2668 = vmatpush1.xpose.msra.mxu0 0.0
    %2669 = vmatprep.subr.mxu0 0.0
    %2670 = vmatpush1.xpose.msra.mxu0 0.0
    %2671 = vmatprep.subr.mxu0 0.0
    %2672 = vmatpush1.xpose.msra.mxu0 0.0
    %2673 = vmatprep.subr.mxu0 0.0
    %2674 = vmatpush1.xpose.msra.mxu0 0.0
    %2675 = vmatprep.subr.mxu0 0.0
    %2676 = vmatpush1.xpose.msra.mxu0 0.0
    %2677 = vmatprep.subr.mxu0 0.0
    %2678 = vmatpush1.xpose.msra.mxu0 0.0
    %2679 = vmatprep.subr.mxu0 0.0
    %2680 = vmatpush1.xpose.msra.mxu0 0.0
    %2681 = vmatprep.subr.mxu0 0.0
    %2682 = vmatpush1.xpose.msra.mxu0 0.0
    %2683 = vmatprep.subr.mxu0 0.0
    %2684 = vmatpush1.xpose.msra.mxu0 0.0
    %2685 = vmatprep.subr.mxu0 0.0
    %2686 = vmatpush1.xpose.msra.mxu0 0.0
    %2687 = vmatprep.subr.mxu0 0.0
    %2688 = vmatpush1.xpose.msra.mxu0 0.0
    %2689 = vmatprep.subr.mxu0 0.0
    %2690 = vmatpush1.xpose.msra.mxu0 %v2657
    %2691 = vmatprep.subr.mxu0 0.0
    %2692 = vmatpush2.xpose.msra.mxu0 0.0
    %2693 = vmatprep.subr.mxu0 0.0
    %2694 = vmatpush2.xpose.msra.mxu0 0.0
    %2695 = vmatprep.subr.mxu0 0.0
    %2696 = vmatpush2.xpose.msra.mxu0 0.0
    %2697 = vmatprep.subr.mxu0 0.0
    %2698 = vmatpush2.xpose.msra.mxu0 0.0
    %2699 = vmatprep.subr.mxu0 0.0
    %2700 = vmatpush2.xpose.msra.mxu0 0.0
    %2701 = vmatprep.subr.mxu0 0.0
    %2702 = vmatpush2.xpose.msra.mxu0 0.0
    %2703 = vmatprep.subr.mxu0 0.0
    %2704 = vmatpush2.xpose.msra.mxu0 0.0
    %2705 = vmatprep.subr.mxu0 0.0
    %2706 = vmatpush2.xpose.msra.mxu0 0.0
    %2707 = vmatprep.subr.mxu0 0.0
    %2708 = vmatpush2.xpose.msra.mxu0 0.0
    %2709 = vmatprep.subr.mxu0 0.0
    %2710 = vmatpush2.xpose.msra.mxu0 0.0
    %2711 = vmatprep.subr.mxu0 0.0
    %2712 = vmatpush2.xpose.msra.mxu0 0.0
    %2713 = vmatprep.subr.mxu0 0.0
    %2714 = vmatpush2.xpose.msra.mxu0 0.0
    %2715 = vmatprep.subr.mxu0 0.0
    %2716 = vmatpush2.xpose.msra.mxu0 0.0
    %2717 = vmatprep.subr.mxu0 0.0
    %2718 = vmatpush2.xpose.msra.mxu0 0.0
    %2719 = vmatprep.subr.mxu0 0.0
    %2720 = vmatpush2.xpose.msra.mxu0 0.0
    %2721 = vmatprep.subr.mxu0 0.0
    %2722 = vmatpush2.xpose.msra.mxu0 0.0
    %2723 = vmatprep.mubr.f32.mxu0 0.0
    %2724 = vmatmul.mubr.f32.gmra.mxu0 %v2655
    %v2725 = vpop.f32.mrf.mxu0
    %v2726 = vadd.f32 0.0, %v2725
    %v2727 = vpop.f32.mrf.mxu0
    %2728 = vdwg.mxu0
    %v2729 = vsel %vm261, %v2726, -inf
    %2730 = vmax.xlane.f32.xlu0 %v2729
    %v2731 = vpop.xlane.xlu0 %2730
    %v2732 = vsub.f32 %v2726, %v2731
    %v2733 = vmul.f32 %v2732, 1.442695
    %v2734 = vpow.pop %v2733
    %v2735 = vsel %vm261, %v2734, 0.0
    %2736 = vadd.xlane.f32.xlu0 %v2735
    %v2737 = vpop.xlane.xlu0 %2736
    %v2738 = vrcp.pop %v2737
    %v2739 = vmul.f32 %v2734, %v2738
    %2740 = vrot.lane.b32.xlu0 %v2151, 104
    %v2741 = vpop.permute.xlu0 %2740
    %v2744 = vsel %vm261, %v2739, 0
    %2746 = vmatprep.subr.mxu0 0.0
    %2747 = vmatpush1.msra.mxu0 0.0
    %2748 = vmatprep.subr.mxu0 0.0
    %2749 = vmatpush1.msra.mxu0 0.0
    %2750 = vmatprep.subr.mxu0 0.0
    %2751 = vmatpush1.msra.mxu0 0.0
    %2752 = vmatprep.subr.mxu0 0.0
    %2753 = vmatpush1.msra.mxu0 0.0
    %2754 = vmatprep.subr.mxu0 0.0
    %2755 = vmatpush1.msra.mxu0 0.0
    %2756 = vmatprep.subr.mxu0 0.0
    %2757 = vmatpush1.msra.mxu0 0.0
    %2758 = vmatprep.subr.mxu0 0.0
    %2759 = vmatpush1.msra.mxu0 0.0
    %2760 = vmatprep.subr.mxu0 0.0
    %2761 = vmatpush1.msra.mxu0 0.0
    %2762 = vmatprep.subr.mxu0 0.0
    %2763 = vmatpush1.msra.mxu0 0.0
    %2764 = vmatprep.subr.mxu0 0.0
    %2765 = vmatpush1.msra.mxu0 0.0
    %2766 = vmatprep.subr.mxu0 0.0
    %2767 = vmatpush1.msra.mxu0 0.0
    %2768 = vmatprep.subr.mxu0 0.0
    %2769 = vmatpush1.msra.mxu0 0.0
    %2770 = vmatprep.subr.mxu0 0.0
    %2771 = vmatpush1.msra.mxu0 0.0
    %2772 = vmatprep.subr.mxu0 0.0
    %2773 = vmatpush1.msra.mxu0 0.0
    %2774 = vmatprep.subr.mxu0 0.0
    %2775 = vmatpush1.msra.mxu0 0.0
    %2776 = vmatprep.subr.mxu0 0.0
    %2777 = vmatpush1.msra.mxu0 %v2741
    %2778 = vmatprep.subr.mxu0 0.0
    %2779 = vmatpush2.msra.mxu0 0.0
    %2780 = vmatprep.subr.mxu0 0.0
    %2781 = vmatpush2.msra.mxu0 0.0
    %2782 = vmatprep.subr.mxu0 0.0
    %2783 = vmatpush2.msra.mxu0 0.0
    %2784 = vmatprep.subr.mxu0 0.0
    %2785 = vmatpush2.msra.mxu0 0.0
    %2786 = vmatprep.subr.mxu0 0.0
    %2787 = vmatpush2.msra.mxu0 0.0
    %2788 = vmatprep.subr.mxu0 0.0
    %2789 = vmatpush2.msra.mxu0 0.0
    %2790 = vmatprep.subr.mxu0 0.0
    %2791 = vmatpush2.msra.mxu0 0.0
    %2792 = vmatprep.subr.mxu0 0.0
    %2793 = vmatpush2.msra.mxu0 0.0
    %2794 = vmatprep.subr.mxu0 0.0
    %2795 = vmatpush2.msra.mxu0 0.0
    %2796 = vmatprep.subr.mxu0 0.0
    %2797 = vmatpush2.msra.mxu0 0.0
    %2798 = vmatprep.subr.mxu0 0.0
    %2799 = vmatpush2.msra.mxu0 0.0
    %2800 = vmatprep.subr.mxu0 0.0
    %2801 = vmatpush2.msra.mxu0 0.0
    %2802 = vmatprep.subr.mxu0 0.0
    %2803 = vmatpush2.msra.mxu0 0.0
    %2804 = vmatprep.subr.mxu0 0.0
    %2805 = vmatpush2.msra.mxu0 0.0
    %2806 = vmatprep.subr.mxu0 0.0
    %2807 = vmatpush2.msra.mxu0 0.0
    %2808 = vmatprep.subr.mxu0 0.0
    %2809 = vmatpush2.msra.mxu0 0.0
    %2810 = vmatprep.mubr.f32.mxu0 0.0
    %2811 = vmatmul.mubr.f32.gmra.mxu0 %v2744
    %v2812 = vpop.f32.mrf.mxu0
    %v2813 = vadd.f32 0.0, %v2812
    %v2814 = vpop.f32.mrf.mxu0
    %2815 = vdwg.mxu0
    %2817 = vrot.lane.b32.xlu0 %v2483, 8
    %v2818 = vpop.permute.xlu0 %2817
    %2821 = vrot.lane.b32.xlu0 %v2648, 16
    %v2822 = vpop.permute.xlu0 %2821
    %2825 = vrot.lane.b32.xlu0 %v2813, 24
    %v2826 = vpop.permute.xlu0 %2825
    %v2828 = vsel %vm261, %v2317, %v2818
    %v2829 = vsel %vm929, %v2828, %v2822
    %v2830 = vsel %vm931, %v2829, %v2826
    %2832 = vrot.lane.b32.xlu0 %v2062, 96
    %v2833 = vpop.permute.xlu0 %2832
    %v2834 = vsel %vm261, %v2062, 0
    %v2836 = vsel %vm261, %v2833, 0
    %2838 = vmatprep.subr.mxu0 0.0
    %2839 = vmatpush1.xpose.msra.mxu0 0.0
    %2840 = vmatprep.subr.mxu0 0.0
    %2841 = vmatpush1.xpose.msra.mxu0 0.0
    %2842 = vmatprep.subr.mxu0 0.0
    %2843 = vmatpush1.xpose.msra.mxu0 0.0
    %2844 = vmatprep.subr.mxu0 0.0
    %2845 = vmatpush1.xpose.msra.mxu0 0.0
    %2846 = vmatprep.subr.mxu0 0.0
    %2847 = vmatpush1.xpose.msra.mxu0 0.0
    %2848 = vmatprep.subr.mxu0 0.0
    %2849 = vmatpush1.xpose.msra.mxu0 0.0
    %2850 = vmatprep.subr.mxu0 0.0
    %2851 = vmatpush1.xpose.msra.mxu0 0.0
    %2852 = vmatprep.subr.mxu0 0.0
    %2853 = vmatpush1.xpose.msra.mxu0 0.0
    %2854 = vmatprep.subr.mxu0 0.0
    %2855 = vmatpush1.xpose.msra.mxu0 0.0
    %2856 = vmatprep.subr.mxu0 0.0
    %2857 = vmatpush1.xpose.msra.mxu0 0.0
    %2858 = vmatprep.subr.mxu0 0.0
    %2859 = vmatpush1.xpose.msra.mxu0 0.0
    %2860 = vmatprep.subr.mxu0 0.0
    %2861 = vmatpush1.xpose.msra.mxu0 0.0
    %2862 = vmatprep.subr.mxu0 0.0
    %2863 = vmatpush1.xpose.msra.mxu0 0.0
    %2864 = vmatprep.subr.mxu0 0.0
    %2865 = vmatpush1.xpose.msra.mxu0 0.0
    %2866 = vmatprep.subr.mxu0 0.0
    %2867 = vmatpush1.xpose.msra.mxu0 0.0
    %2868 = vmatprep.subr.mxu0 0.0
    %2869 = vmatpush1.xpose.msra.mxu0 %v2836
    %2870 = vmatprep.subr.mxu0 0.0
    %2871 = vmatpush2.xpose.msra.mxu0 0.0
    %2872 = vmatprep.subr.mxu0 0.0
    %2873 = vmatpush2.xpose.msra.mxu0 0.0
    %2874 = vmatprep.subr.mxu0 0.0
    %2875 = vmatpush2.xpose.msra.mxu0 0.0
    %2876 = vmatprep.subr.mxu0 0.0
    %2877 = vmatpush2.xpose.msra.mxu0 0.0
    %2878 = vmatprep.subr.mxu0 0.0
    %2879 = vmatpush2.xpose.msra.mxu0 0.0
    %2880 = vmatprep.subr.mxu0 0.0
    %2881 = vmatpush2.xpose.msra.mxu0 0.0
    %2882 = vmatprep.subr.mxu0 0.0
    %2883 = vmatpush2.xpose.msra.mxu0 0.0
    %2884 = vmatprep.subr.mxu0 0.0
    %2885 = vmatpush2.xpose.msra.mxu0 0.0
    %2886 = vmatprep.subr.mxu0 0.0
    %2887 = vmatpush2.xpose.msra.mxu0 0.0
    %2888 = vmatprep.subr.mxu0 0.0
    %2889 = vmatpush2.xpose.msra.mxu0 0.0
    %2890 = vmatprep.subr.mxu0 0.0
    %2891 = vmatpush2.xpose.msra.mxu0 0.0
    %2892 = vmatprep.subr.mxu0 0.0
    %2893 = vmatpush2.xpose.msra.mxu0 0.0
    %2894 = vmatprep.subr.mxu0 0.0
    %2895 = vmatpush2.xpose.msra.mxu0 0.0
    %2896 = vmatprep.subr.mxu0 0.0
    %2897 = vmatpush2.xpose.msra.mxu0 0.0
    %2898 = vmatprep.subr.mxu0 0.0
    %2899 = vmatpush2.xpose.msra.mxu0 0.0
    %2900 = vmatprep.subr.mxu0 0.0
    %2901 = vmatpush2.xpose.msra.mxu0 0.0
    %2902 = vmatprep.mubr.f32.mxu0 0.0
    %2903 = vmatmul.mubr.f32.gmra.mxu0 %v2834
    %v2904 = vpop.f32.mrf.mxu0
    %v2905 = vadd.f32 0.0, %v2904
    %v2906 = vpop.f32.mrf.mxu0
    %2907 = vdwg.mxu0
    %v2908 = vsel %vm261, %v2905, -inf
    %2909 = vmax.xlane.f32.xlu0 %v2908
    %v2910 = vpop.xlane.xlu0 %2909
    %v2911 = vsub.f32 %v2905, %v2910
    %v2912 = vmul.f32 %v2911, 1.442695
    %v2913 = vpow.pop %v2912
    %v2914 = vsel %vm261, %v2913, 0.0
    %2915 = vadd.xlane.f32.xlu0 %v2914
    %v2916 = vpop.xlane.xlu0 %2915
    %v2917 = vrcp.pop %v2916
    %v2918 = vmul.f32 %v2913, %v2917
    %v2920 = vsel %vm261, %v2918, 0
    %2922 = vmatprep.subr.mxu0 0.0
    %2923 = vmatpush1.msra.mxu0 0.0
    %2924 = vmatprep.subr.mxu0 0.0
    %2925 = vmatpush1.msra.mxu0 0.0
    %2926 = vmatprep.subr.mxu0 0.0
    %2927 = vmatpush1.msra.mxu0 0.0
    %2928 = vmatprep.subr.mxu0 0.0
    %2929 = vmatpush1.msra.mxu0 0.0
    %2930 = vmatprep.subr.mxu0 0.0
    %2931 = vmatpush1.msra.mxu0 0.0
    %2932 = vmatprep.subr.mxu0 0.0
    %2933 = vmatpush1.msra.mxu0 0.0
    %2934 = vmatprep.subr.mxu0 0.0
    %2935 = vmatpush1.msra.mxu0 0.0
    %2936 = vmatprep.subr.mxu0 0.0
    %2937 = vmatpush1.msra.mxu0 0.0
    %2938 = vmatprep.subr.mxu0 0.0
    %2939 = vmatpush1.msra.mxu0 0.0
    %2940 = vmatprep.subr.mxu0 0.0
    %2941 = vmatpush1.msra.mxu0 0.0
    %2942 = vmatprep.subr.mxu0 0.0
    %2943 = vmatpush1.msra.mxu0 0.0
    %2944 = vmatprep.subr.mxu0 0.0
    %2945 = vmatpush1.msra.mxu0 0.0
    %2946 = vmatprep.subr.mxu0 0.0
    %2947 = vmatpush1.msra.mxu0 0.0
    %2948 = vmatprep.subr.mxu0 0.0
    %2949 = vmatpush1.msra.mxu0 0.0
    %2950 = vmatprep.subr.mxu0 0.0
    %2951 = vmatpush1.msra.mxu0 0.0
    %2952 = vmatprep.subr.mxu0 0.0
    %2953 = vmatpush1.msra.mxu0 %v2156
    %2954 = vmatprep.subr.mxu0 0.0
    %2955 = vmatpush2.msra.mxu0 0.0
    %2956 = vmatprep.subr.mxu0 0.0
    %2957 = vmatpush2.msra.mxu0 0.0
    %2958 = vmatprep.subr.mxu0 0.0
    %2959 = vmatpush2.msra.mxu0 0.0
    %2960 = vmatprep.subr.mxu0 0.0
    %2961 = vmatpush2.msra.mxu0 0.0
    %2962 = vmatprep.subr.mxu0 0.0
    %2963 = vmatpush2.msra.mxu0 0.0
    %2964 = vmatprep.subr.mxu0 0.0
    %2965 = vmatpush2.msra.mxu0 0.0
    %2966 = vmatprep.subr.mxu0 0.0
    %2967 = vmatpush2.msra.mxu0 0.0
    %2968 = vmatprep.subr.mxu0 0.0
    %2969 = vmatpush2.msra.mxu0 0.0
    %2970 = vmatprep.subr.mxu0 0.0
    %2971 = vmatpush2.msra.mxu0 0.0
    %2972 = vmatprep.subr.mxu0 0.0
    %2973 = vmatpush2.msra.mxu0 0.0
    %2974 = vmatprep.subr.mxu0 0.0
    %2975 = vmatpush2.msra.mxu0 0.0
    %2976 = vmatprep.subr.mxu0 0.0
    %2977 = vmatpush2.msra.mxu0 0.0
    %2978 = vmatprep.subr.mxu0 0.0
    %2979 = vmatpush2.msra.mxu0 0.0
    %2980 = vmatprep.subr.mxu0 0.0
    %2981 = vmatpush2.msra.mxu0 0.0
    %2982 = vmatprep.subr.mxu0 0.0
    %2983 = vmatpush2.msra.mxu0 0.0
    %2984 = vmatprep.subr.mxu0 0.0
    %2985 = vmatpush2.msra.mxu0 0.0
    %2986 = vmatprep.mubr.f32.mxu0 0.0
    %2987 = vmatmul.mubr.f32.gmra.mxu0 %v2920
    %v2988 = vpop.f32.mrf.mxu0
    %v2989 = vadd.f32 0.0, %v2988
    %v2990 = vpop.f32.mrf.mxu0
    %2991 = vdwg.mxu0
    %2992 = vrot.lane.b32.xlu0 %v2062, 120
    %v2993 = vpop.permute.xlu0 %2992
    %2994 = vrot.lane.b32.xlu0 %v2062, 88
    %v2995 = vpop.permute.xlu0 %2994
    %v2996 = vsel %vm261, %v2993, 0
    %v2998 = vsel %vm261, %v2995, 0
    %3000 = vmatprep.subr.mxu0 0.0
    %3001 = vmatpush1.xpose.msra.mxu0 0.0
    %3002 = vmatprep.subr.mxu0 0.0
    %3003 = vmatpush1.xpose.msra.mxu0 0.0
    %3004 = vmatprep.subr.mxu0 0.0
    %3005 = vmatpush1.xpose.msra.mxu0 0.0
    %3006 = vmatprep.subr.mxu0 0.0
    %3007 = vmatpush1.xpose.msra.mxu0 0.0
    %3008 = vmatprep.subr.mxu0 0.0
    %3009 = vmatpush1.xpose.msra.mxu0 0.0
    %3010 = vmatprep.subr.mxu0 0.0
    %3011 = vmatpush1.xpose.msra.mxu0 0.0
    %3012 = vmatprep.subr.mxu0 0.0
    %3013 = vmatpush1.xpose.msra.mxu0 0.0
    %3014 = vmatprep.subr.mxu0 0.0
    %3015 = vmatpush1.xpose.msra.mxu0 0.0
    %3016 = vmatprep.subr.mxu0 0.0
    %3017 = vmatpush1.xpose.msra.mxu0 0.0
    %3018 = vmatprep.subr.mxu0 0.0
    %3019 = vmatpush1.xpose.msra.mxu0 0.0
    %3020 = vmatprep.subr.mxu0 0.0
    %3021 = vmatpush1.xpose.msra.mxu0 0.0
    %3022 = vmatprep.subr.mxu0 0.0
    %3023 = vmatpush1.xpose.msra.mxu0 0.0
    %3024 = vmatprep.subr.mxu0 0.0
    %3025 = vmatpush1.xpose.msra.mxu0 0.0
    %3026 = vmatprep.subr.mxu0 0.0
    %3027 = vmatpush1.xpose.msra.mxu0 0.0
    %3028 = vmatprep.subr.mxu0 0.0
    %3029 = vmatpush1.xpose.msra.mxu0 0.0
    %3030 = vmatprep.subr.mxu0 0.0
    %3031 = vmatpush1.xpose.msra.mxu0 %v2998
    %3032 = vmatprep.subr.mxu0 0.0
    %3033 = vmatpush2.xpose.msra.mxu0 0.0
    %3034 = vmatprep.subr.mxu0 0.0
    %3035 = vmatpush2.xpose.msra.mxu0 0.0
    %3036 = vmatprep.subr.mxu0 0.0
    %3037 = vmatpush2.xpose.msra.mxu0 0.0
    %3038 = vmatprep.subr.mxu0 0.0
    %3039 = vmatpush2.xpose.msra.mxu0 0.0
    %3040 = vmatprep.subr.mxu0 0.0
    %3041 = vmatpush2.xpose.msra.mxu0 0.0
    %3042 = vmatprep.subr.mxu0 0.0
    %3043 = vmatpush2.xpose.msra.mxu0 0.0
    %3044 = vmatprep.subr.mxu0 0.0
    %3045 = vmatpush2.xpose.msra.mxu0 0.0
    %3046 = vmatprep.subr.mxu0 0.0
    %3047 = vmatpush2.xpose.msra.mxu0 0.0
    %3048 = vmatprep.subr.mxu0 0.0
    %3049 = vmatpush2.xpose.msra.mxu0 0.0
    %3050 = vmatprep.subr.mxu0 0.0
    %3051 = vmatpush2.xpose.msra.mxu0 0.0
    %3052 = vmatprep.subr.mxu0 0.0
    %3053 = vmatpush2.xpose.msra.mxu0 0.0
    %3054 = vmatprep.subr.mxu0 0.0
    %3055 = vmatpush2.xpose.msra.mxu0 0.0
    %3056 = vmatprep.subr.mxu0 0.0
    %3057 = vmatpush2.xpose.msra.mxu0 0.0
    %3058 = vmatprep.subr.mxu0 0.0
    %3059 = vmatpush2.xpose.msra.mxu0 0.0
    %3060 = vmatprep.subr.mxu0 0.0
    %3061 = vmatpush2.xpose.msra.mxu0 0.0
    %3062 = vmatprep.subr.mxu0 0.0
    %3063 = vmatpush2.xpose.msra.mxu0 0.0
    %3064 = vmatprep.mubr.f32.mxu0 0.0
    %3065 = vmatmul.mubr.f32.gmra.mxu0 %v2996
    %v3066 = vpop.f32.mrf.mxu0
    %v3067 = vadd.f32 0.0, %v3066
    %v3068 = vpop.f32.mrf.mxu0
    %3069 = vdwg.mxu0
    %v3070 = vsel %vm261, %v3067, -inf
    %3071 = vmax.xlane.f32.xlu0 %v3070
    %v3072 = vpop.xlane.xlu0 %3071
    %v3073 = vsub.f32 %v3067, %v3072
    %v3074 = vmul.f32 %v3073, 1.442695
    %v3075 = vpow.pop %v3074
    %v3076 = vsel %vm261, %v3075, 0.0
    %3077 = vadd.xlane.f32.xlu0 %v3076
    %v3078 = vpop.xlane.xlu0 %3077
    %v3079 = vrcp.pop %v3078
    %v3080 = vmul.f32 %v3075, %v3079
    %3082 = vrot.lane.b32.xlu0 %v2156, 120
    %v3083 = vpop.permute.xlu0 %3082
    %v3086 = vsel %vm261, %v3080, 0
    %3088 = vmatprep.subr.mxu0 0.0
    %3089 = vmatpush1.msra.mxu0 0.0
    %3090 = vmatprep.subr.mxu0 0.0
    %3091 = vmatpush1.msra.mxu0 0.0
    %3092 = vmatprep.subr.mxu0 0.0
    %3093 = vmatpush1.msra.mxu0 0.0
    %3094 = vmatprep.subr.mxu0 0.0
    %3095 = vmatpush1.msra.mxu0 0.0
    %3096 = vmatprep.subr.mxu0 0.0
    %3097 = vmatpush1.msra.mxu0 0.0
    %3098 = vmatprep.subr.mxu0 0.0
    %3099 = vmatpush1.msra.mxu0 0.0
    %3100 = vmatprep.subr.mxu0 0.0
    %3101 = vmatpush1.msra.mxu0 0.0
    %3102 = vmatprep.subr.mxu0 0.0
    %3103 = vmatpush1.msra.mxu0 0.0
    %3104 = vmatprep.subr.mxu0 0.0
    %3105 = vmatpush1.msra.mxu0 0.0
    %3106 = vmatprep.subr.mxu0 0.0
    %3107 = vmatpush1.msra.mxu0 0.0
    %3108 = vmatprep.subr.mxu0 0.0
    %3109 = vmatpush1.msra.mxu0 0.0
    %3110 = vmatprep.subr.mxu0 0.0
    %3111 = vmatpush1.msra.mxu0 0.0
    %3112 = vmatprep.subr.mxu0 0.0
    %3113 = vmatpush1.msra.mxu0 0.0
    %3114 = vmatprep.subr.mxu0 0.0
    %3115 = vmatpush1.msra.mxu0 0.0
    %3116 = vmatprep.subr.mxu0 0.0
    %3117 = vmatpush1.msra.mxu0 0.0
    %3118 = vmatprep.subr.mxu0 0.0
    %3119 = vmatpush1.msra.mxu0 %v3083
    %3120 = vmatprep.subr.mxu0 0.0
    %3121 = vmatpush2.msra.mxu0 0.0
    %3122 = vmatprep.subr.mxu0 0.0
    %3123 = vmatpush2.msra.mxu0 0.0
    %3124 = vmatprep.subr.mxu0 0.0
    %3125 = vmatpush2.msra.mxu0 0.0
    %3126 = vmatprep.subr.mxu0 0.0
    %3127 = vmatpush2.msra.mxu0 0.0
    %3128 = vmatprep.subr.mxu0 0.0
    %3129 = vmatpush2.msra.mxu0 0.0
    %3130 = vmatprep.subr.mxu0 0.0
    %3131 = vmatpush2.msra.mxu0 0.0
    %3132 = vmatprep.subr.mxu0 0.0
    %3133 = vmatpush2.msra.mxu0 0.0
    %3134 = vmatprep.subr.mxu0 0.0
    %3135 = vmatpush2.msra.mxu0 0.0
    %3136 = vmatprep.subr.mxu0 0.0
    %3137 = vmatpush2.msra.mxu0 0.0
    %3138 = vmatprep.subr.mxu0 0.0
    %3139 = vmatpush2.msra.mxu0 0.0
    %3140 = vmatprep.subr.mxu0 0.0
    %3141 = vmatpush2.msra.mxu0 0.0
    %3142 = vmatprep.subr.mxu0 0.0
    %3143 = vmatpush2.msra.mxu0 0.0
    %3144 = vmatprep.subr.mxu0 0.0
    %3145 = vmatpush2.msra.mxu0 0.0
    %3146 = vmatprep.subr.mxu0 0.0
    %3147 = vmatpush2.msra.mxu0 0.0
    %3148 = vmatprep.subr.mxu0 0.0
    %3149 = vmatpush2.msra.mxu0 0.0
    %3150 = vmatprep.subr.mxu0 0.0
    %3151 = vmatpush2.msra.mxu0 0.0
    %3152 = vmatprep.mubr.f32.mxu0 0.0
    %3153 = vmatmul.mubr.f32.gmra.mxu0 %v3086
    %v3154 = vpop.f32.mrf.mxu0
    %v3155 = vadd.f32 0.0, %v3154
    %v3156 = vpop.f32.mrf.mxu0
    %3157 = vdwg.mxu0
    %3158 = vrot.lane.b32.xlu0 %v2062, 112
    %v3159 = vpop.permute.xlu0 %3158
    %3160 = vrot.lane.b32.xlu0 %v2062, 80
    %v3161 = vpop.permute.xlu0 %3160
    %v3162 = vsel %vm261, %v3159, 0
    %v3164 = vsel %vm261, %v3161, 0
    %3166 = vmatprep.subr.mxu0 0.0
    %3167 = vmatpush1.xpose.msra.mxu0 0.0
    %3168 = vmatprep.subr.mxu0 0.0
    %3169 = vmatpush1.xpose.msra.mxu0 0.0
    %3170 = vmatprep.subr.mxu0 0.0
    %3171 = vmatpush1.xpose.msra.mxu0 0.0
    %3172 = vmatprep.subr.mxu0 0.0
    %3173 = vmatpush1.xpose.msra.mxu0 0.0
    %3174 = vmatprep.subr.mxu0 0.0
    %3175 = vmatpush1.xpose.msra.mxu0 0.0
    %3176 = vmatprep.subr.mxu0 0.0
    %3177 = vmatpush1.xpose.msra.mxu0 0.0
    %3178 = vmatprep.subr.mxu0 0.0
    %3179 = vmatpush1.xpose.msra.mxu0 0.0
    %3180 = vmatprep.subr.mxu0 0.0
    %3181 = vmatpush1.xpose.msra.mxu0 0.0
    %3182 = vmatprep.subr.mxu0 0.0
    %3183 = vmatpush1.xpose.msra.mxu0 0.0
    %3184 = vmatprep.subr.mxu0 0.0
    %3185 = vmatpush1.xpose.msra.mxu0 0.0
    %3186 = vmatprep.subr.mxu0 0.0
    %3187 = vmatpush1.xpose.msra.mxu0 0.0
    %3188 = vmatprep.subr.mxu0 0.0
    %3189 = vmatpush1.xpose.msra.mxu0 0.0
    %3190 = vmatprep.subr.mxu0 0.0
    %3191 = vmatpush1.xpose.msra.mxu0 0.0
    %3192 = vmatprep.subr.mxu0 0.0
    %3193 = vmatpush1.xpose.msra.mxu0 0.0
    %3194 = vmatprep.subr.mxu0 0.0
    %3195 = vmatpush1.xpose.msra.mxu0 0.0
    %3196 = vmatprep.subr.mxu0 0.0
    %3197 = vmatpush1.xpose.msra.mxu0 %v3164
    %3198 = vmatprep.subr.mxu0 0.0
    %3199 = vmatpush2.xpose.msra.mxu0 0.0
    %3200 = vmatprep.subr.mxu0 0.0
    %3201 = vmatpush2.xpose.msra.mxu0 0.0
    %3202 = vmatprep.subr.mxu0 0.0
    %3203 = vmatpush2.xpose.msra.mxu0 0.0
    %3204 = vmatprep.subr.mxu0 0.0
    %3205 = vmatpush2.xpose.msra.mxu0 0.0
    %3206 = vmatprep.subr.mxu0 0.0
    %3207 = vmatpush2.xpose.msra.mxu0 0.0
    %3208 = vmatprep.subr.mxu0 0.0
    %3209 = vmatpush2.xpose.msra.mxu0 0.0
    %3210 = vmatprep.subr.mxu0 0.0
    %3211 = vmatpush2.xpose.msra.mxu0 0.0
    %3212 = vmatprep.subr.mxu0 0.0
    %3213 = vmatpush2.xpose.msra.mxu0 0.0
    %3214 = vmatprep.subr.mxu0 0.0
    %3215 = vmatpush2.xpose.msra.mxu0 0.0
    %3216 = vmatprep.subr.mxu0 0.0
    %3217 = vmatpush2.xpose.msra.mxu0 0.0
    %3218 = vmatprep.subr.mxu0 0.0
    %3219 = vmatpush2.xpose.msra.mxu0 0.0
    %3220 = vmatprep.subr.mxu0 0.0
    %3221 = vmatpush2.xpose.msra.mxu0 0.0
    %3222 = vmatprep.subr.mxu0 0.0
    %3223 = vmatpush2.xpose.msra.mxu0 0.0
    %3224 = vmatprep.subr.mxu0 0.0
    %3225 = vmatpush2.xpose.msra.mxu0 0.0
    %3226 = vmatprep.subr.mxu0 0.0
    %3227 = vmatpush2.xpose.msra.mxu0 0.0
    %3228 = vmatprep.subr.mxu0 0.0
    %3229 = vmatpush2.xpose.msra.mxu0 0.0
    %3230 = vmatprep.mubr.f32.mxu0 0.0
    %3231 = vmatmul.mubr.f32.gmra.mxu0 %v3162
    %v3232 = vpop.f32.mrf.mxu0
    %v3233 = vadd.f32 0.0, %v3232
    %v3234 = vpop.f32.mrf.mxu0
    %3235 = vdwg.mxu0
    %v3236 = vsel %vm261, %v3233, -inf
    %3237 = vmax.xlane.f32.xlu0 %v3236
    %v3238 = vpop.xlane.xlu0 %3237
    %v3239 = vsub.f32 %v3233, %v3238
    %v3240 = vmul.f32 %v3239, 1.442695
    %v3241 = vpow.pop %v3240
    %v3242 = vsel %vm261, %v3241, 0.0
    %3243 = vadd.xlane.f32.xlu0 %v3242
    %v3244 = vpop.xlane.xlu0 %3243
    %v3245 = vrcp.pop %v3244
    %v3246 = vmul.f32 %v3241, %v3245
    %3247 = vrot.lane.b32.xlu0 %v2156, 112
    %v3248 = vpop.permute.xlu0 %3247
    %v3251 = vsel %vm261, %v3246, 0
    %3253 = vmatprep.subr.mxu0 0.0
    %3254 = vmatpush1.msra.mxu0 0.0
    %3255 = vmatprep.subr.mxu0 0.0
    %3256 = vmatpush1.msra.mxu0 0.0
    %3257 = vmatprep.subr.mxu0 0.0
    %3258 = vmatpush1.msra.mxu0 0.0
    %3259 = vmatprep.subr.mxu0 0.0
    %3260 = vmatpush1.msra.mxu0 0.0
    %3261 = vmatprep.subr.mxu0 0.0
    %3262 = vmatpush1.msra.mxu0 0.0
    %3263 = vmatprep.subr.mxu0 0.0
    %3264 = vmatpush1.msra.mxu0 0.0
    %3265 = vmatprep.subr.mxu0 0.0
    %3266 = vmatpush1.msra.mxu0 0.0
    %3267 = vmatprep.subr.mxu0 0.0
    %3268 = vmatpush1.msra.mxu0 0.0
    %3269 = vmatprep.subr.mxu0 0.0
    %3270 = vmatpush1.msra.mxu0 0.0
    %3271 = vmatprep.subr.mxu0 0.0
    %3272 = vmatpush1.msra.mxu0 0.0
    %3273 = vmatprep.subr.mxu0 0.0
    %3274 = vmatpush1.msra.mxu0 0.0
    %3275 = vmatprep.subr.mxu0 0.0
    %3276 = vmatpush1.msra.mxu0 0.0
    %3277 = vmatprep.subr.mxu0 0.0
    %3278 = vmatpush1.msra.mxu0 0.0
    %3279 = vmatprep.subr.mxu0 0.0
    %3280 = vmatpush1.msra.mxu0 0.0
    %3281 = vmatprep.subr.mxu0 0.0
    %3282 = vmatpush1.msra.mxu0 0.0
    %3283 = vmatprep.subr.mxu0 0.0
    %3284 = vmatpush1.msra.mxu0 %v3248
    %3285 = vmatprep.subr.mxu0 0.0
    %3286 = vmatpush2.msra.mxu0 0.0
    %3287 = vmatprep.subr.mxu0 0.0
    %3288 = vmatpush2.msra.mxu0 0.0
    %3289 = vmatprep.subr.mxu0 0.0
    %3290 = vmatpush2.msra.mxu0 0.0
    %3291 = vmatprep.subr.mxu0 0.0
    %3292 = vmatpush2.msra.mxu0 0.0
    %3293 = vmatprep.subr.mxu0 0.0
    %3294 = vmatpush2.msra.mxu0 0.0
    %3295 = vmatprep.subr.mxu0 0.0
    %3296 = vmatpush2.msra.mxu0 0.0
    %3297 = vmatprep.subr.mxu0 0.0
    %3298 = vmatpush2.msra.mxu0 0.0
    %3299 = vmatprep.subr.mxu0 0.0
    %3300 = vmatpush2.msra.mxu0 0.0
    %3301 = vmatprep.subr.mxu0 0.0
    %3302 = vmatpush2.msra.mxu0 0.0
    %3303 = vmatprep.subr.mxu0 0.0
    %3304 = vmatpush2.msra.mxu0 0.0
    %3305 = vmatprep.subr.mxu0 0.0
    %3306 = vmatpush2.msra.mxu0 0.0
    %3307 = vmatprep.subr.mxu0 0.0
    %3308 = vmatpush2.msra.mxu0 0.0
    %3309 = vmatprep.subr.mxu0 0.0
    %3310 = vmatpush2.msra.mxu0 0.0
    %3311 = vmatprep.subr.mxu0 0.0
    %3312 = vmatpush2.msra.mxu0 0.0
    %3313 = vmatprep.subr.mxu0 0.0
    %3314 = vmatpush2.msra.mxu0 0.0
    %3315 = vmatprep.subr.mxu0 0.0
    %3316 = vmatpush2.msra.mxu0 0.0
    %3317 = vmatprep.mubr.f32.mxu0 0.0
    %3318 = vmatmul.mubr.f32.gmra.mxu0 %v3251
    %v3319 = vpop.f32.mrf.mxu0
    %v3320 = vadd.f32 0.0, %v3319
    %v3321 = vpop.f32.mrf.mxu0
    %3322 = vdwg.mxu0
    %3323 = vrot.lane.b32.xlu0 %v2062, 104
    %v3324 = vpop.permute.xlu0 %3323
    %3325 = vrot.lane.b32.xlu0 %v2062, 72
    %v3326 = vpop.permute.xlu0 %3325
    %v3327 = vsel %vm261, %v3324, 0
    %v3329 = vsel %vm261, %v3326, 0
    %3331 = vmatprep.subr.mxu0 0.0
    %3332 = vmatpush1.xpose.msra.mxu0 0.0
    %3333 = vmatprep.subr.mxu0 0.0
    %3334 = vmatpush1.xpose.msra.mxu0 0.0
    %3335 = vmatprep.subr.mxu0 0.0
    %3336 = vmatpush1.xpose.msra.mxu0 0.0
    %3337 = vmatprep.subr.mxu0 0.0
    %3338 = vmatpush1.xpose.msra.mxu0 0.0
    %3339 = vmatprep.subr.mxu0 0.0
    %3340 = vmatpush1.xpose.msra.mxu0 0.0
    %3341 = vmatprep.subr.mxu0 0.0
    %3342 = vmatpush1.xpose.msra.mxu0 0.0
    %3343 = vmatprep.subr.mxu0 0.0
    %3344 = vmatpush1.xpose.msra.mxu0 0.0
    %3345 = vmatprep.subr.mxu0 0.0
    %3346 = vmatpush1.xpose.msra.mxu0 0.0
    %3347 = vmatprep.subr.mxu0 0.0
    %3348 = vmatpush1.xpose.msra.mxu0 0.0
    %3349 = vmatprep.subr.mxu0 0.0
    %3350 = vmatpush1.xpose.msra.mxu0 0.0
    %3351 = vmatprep.subr.mxu0 0.0
    %3352 = vmatpush1.xpose.msra.mxu0 0.0
    %3353 = vmatprep.subr.mxu0 0.0
    %3354 = vmatpush1.xpose.msra.mxu0 0.0
    %3355 = vmatprep.subr.mxu0 0.0
    %3356 = vmatpush1.xpose.msra.mxu0 0.0
    %3357 = vmatprep.subr.mxu0 0.0
    %3358 = vmatpush1.xpose.msra.mxu0 0.0
    %3359 = vmatprep.subr.mxu0 0.0
    %3360 = vmatpush1.xpose.msra.mxu0 0.0
    %3361 = vmatprep.subr.mxu0 0.0
    %3362 = vmatpush1.xpose.msra.mxu0 %v3329
    %3363 = vmatprep.subr.mxu0 0.0
    %3364 = vmatpush2.xpose.msra.mxu0 0.0
    %3365 = vmatprep.subr.mxu0 0.0
    %3366 = vmatpush2.xpose.msra.mxu0 0.0
    %3367 = vmatprep.subr.mxu0 0.0
    %3368 = vmatpush2.xpose.msra.mxu0 0.0
    %3369 = vmatprep.subr.mxu0 0.0
    %3370 = vmatpush2.xpose.msra.mxu0 0.0
    %3371 = vmatprep.subr.mxu0 0.0
    %3372 = vmatpush2.xpose.msra.mxu0 0.0
    %3373 = vmatprep.subr.mxu0 0.0
    %3374 = vmatpush2.xpose.msra.mxu0 0.0
    %3375 = vmatprep.subr.mxu0 0.0
    %3376 = vmatpush2.xpose.msra.mxu0 0.0
    %3377 = vmatprep.subr.mxu0 0.0
    %3378 = vmatpush2.xpose.msra.mxu0 0.0
    %3379 = vmatprep.subr.mxu0 0.0
    %3380 = vmatpush2.xpose.msra.mxu0 0.0
    %3381 = vmatprep.subr.mxu0 0.0
    %3382 = vmatpush2.xpose.msra.mxu0 0.0
    %3383 = vmatprep.subr.mxu0 0.0
    %3384 = vmatpush2.xpose.msra.mxu0 0.0
    %3385 = vmatprep.subr.mxu0 0.0
    %3386 = vmatpush2.xpose.msra.mxu0 0.0
    %3387 = vmatprep.subr.mxu0 0.0
    %3388 = vmatpush2.xpose.msra.mxu0 0.0
    %3389 = vmatprep.subr.mxu0 0.0
    %3390 = vmatpush2.xpose.msra.mxu0 0.0
    %3391 = vmatprep.subr.mxu0 0.0
    %3392 = vmatpush2.xpose.msra.mxu0 0.0
    %3393 = vmatprep.subr.mxu0 0.0
    %3394 = vmatpush2.xpose.msra.mxu0 0.0
    %3395 = vmatprep.mubr.f32.mxu0 0.0
    %3396 = vmatmul.mubr.f32.gmra.mxu0 %v3327
    %v3397 = vpop.f32.mrf.mxu0
    %v3398 = vadd.f32 0.0, %v3397
    %v3399 = vpop.f32.mrf.mxu0
    %3400 = vdwg.mxu0
    %v3401 = vsel %vm261, %v3398, -inf
    %3402 = vmax.xlane.f32.xlu0 %v3401
    %v3403 = vpop.xlane.xlu0 %3402
    %v3404 = vsub.f32 %v3398, %v3403
    %v3405 = vmul.f32 %v3404, 1.442695
    %v3406 = vpow.pop %v3405
    %v3407 = vsel %vm261, %v3406, 0.0
    %3408 = vadd.xlane.f32.xlu0 %v3407
    %v3409 = vpop.xlane.xlu0 %3408
    %v3410 = vrcp.pop %v3409
    %v3411 = vmul.f32 %v3406, %v3410
    %3412 = vrot.lane.b32.xlu0 %v2156, 104
    %v3413 = vpop.permute.xlu0 %3412
    %v3416 = vsel %vm261, %v3411, 0
    %3418 = vmatprep.subr.mxu0 0.0
    %3419 = vmatpush1.msra.mxu0 0.0
    %3420 = vmatprep.subr.mxu0 0.0
    %3421 = vmatpush1.msra.mxu0 0.0
    %3422 = vmatprep.subr.mxu0 0.0
    %3423 = vmatpush1.msra.mxu0 0.0
    %3424 = vmatprep.subr.mxu0 0.0
    %3425 = vmatpush1.msra.mxu0 0.0
    %3426 = vmatprep.subr.mxu0 0.0
    %3427 = vmatpush1.msra.mxu0 0.0
    %3428 = vmatprep.subr.mxu0 0.0
    %3429 = vmatpush1.msra.mxu0 0.0
    %3430 = vmatprep.subr.mxu0 0.0
    %3431 = vmatpush1.msra.mxu0 0.0
    %3432 = vmatprep.subr.mxu0 0.0
    %3433 = vmatpush1.msra.mxu0 0.0
    %3434 = vmatprep.subr.mxu0 0.0
    %3435 = vmatpush1.msra.mxu0 0.0
    %3436 = vmatprep.subr.mxu0 0.0
    %3437 = vmatpush1.msra.mxu0 0.0
    %3438 = vmatprep.subr.mxu0 0.0
    %3439 = vmatpush1.msra.mxu0 0.0
    %3440 = vmatprep.subr.mxu0 0.0
    %3441 = vmatpush1.msra.mxu0 0.0
    %3442 = vmatprep.subr.mxu0 0.0
    %3443 = vmatpush1.msra.mxu0 0.0
    %3444 = vmatprep.subr.mxu0 0.0
    %3445 = vmatpush1.msra.mxu0 0.0
    %3446 = vmatprep.subr.mxu0 0.0
    %3447 = vmatpush1.msra.mxu0 0.0
    %3448 = vmatprep.subr.mxu0 0.0
    %3449 = vmatpush1.msra.mxu0 %v3413
    %3450 = vmatprep.subr.mxu0 0.0
    %3451 = vmatpush2.msra.mxu0 0.0
    %3452 = vmatprep.subr.mxu0 0.0
    %3453 = vmatpush2.msra.mxu0 0.0
    %3454 = vmatprep.subr.mxu0 0.0
    %3455 = vmatpush2.msra.mxu0 0.0
    %3456 = vmatprep.subr.mxu0 0.0
    %3457 = vmatpush2.msra.mxu0 0.0
    %3458 = vmatprep.subr.mxu0 0.0
    %3459 = vmatpush2.msra.mxu0 0.0
    %3460 = vmatprep.subr.mxu0 0.0
    %3461 = vmatpush2.msra.mxu0 0.0
    %3462 = vmatprep.subr.mxu0 0.0
    %3463 = vmatpush2.msra.mxu0 0.0
    %3464 = vmatprep.subr.mxu0 0.0
    %3465 = vmatpush2.msra.mxu0 0.0
    %3466 = vmatprep.subr.mxu0 0.0
    %3467 = vmatpush2.msra.mxu0 0.0
    %3468 = vmatprep.subr.mxu0 0.0
    %3469 = vmatpush2.msra.mxu0 0.0
    %3470 = vmatprep.subr.mxu0 0.0
    %3471 = vmatpush2.msra.mxu0 0.0
    %3472 = vmatprep.subr.mxu0 0.0
    %3473 = vmatpush2.msra.mxu0 0.0
    %3474 = vmatprep.subr.mxu0 0.0
    %3475 = vmatpush2.msra.mxu0 0.0
    %3476 = vmatprep.subr.mxu0 0.0
    %3477 = vmatpush2.msra.mxu0 0.0
    %3478 = vmatprep.subr.mxu0 0.0
    %3479 = vmatpush2.msra.mxu0 0.0
    %3480 = vmatprep.subr.mxu0 0.0
    %3481 = vmatpush2.msra.mxu0 0.0
    %3482 = vmatprep.mubr.f32.mxu0 0.0
    %3483 = vmatmul.mubr.f32.gmra.mxu0 %v3416
    %v3484 = vpop.f32.mrf.mxu0
    %v3485 = vadd.f32 0.0, %v3484
    %v3486 = vpop.f32.mrf.mxu0
    %3487 = vdwg.mxu0
    %3489 = vrot.lane.b32.xlu0 %v3155, 8
    %v3490 = vpop.permute.xlu0 %3489
    %3493 = vrot.lane.b32.xlu0 %v3320, 16
    %v3494 = vpop.permute.xlu0 %3493
    %3497 = vrot.lane.b32.xlu0 %v3485, 24
    %v3498 = vpop.permute.xlu0 %3497
    %v3500 = vsel %vm261, %v2989, %v3490
    %v3501 = vsel %vm929, %v3500, %v3494
    %v3502 = vsel %vm931, %v3501, %v3498
    %s3503 = scalar_lea.vmem %s6, 32
    %v3504 = vld [vmem:[%s3503] sm:$0xff]
    %v3505 = vld [vmem:[%s3503 + $0x8] sm:$0xff]
    %v3506 = vld [vmem:[%s3503 + $0x10] sm:$0xff]
    %v3507 = vld [vmem:[%s3503 + $0x18] sm:$0xff]
    %s3508 = scalar_lea.vmem %s7, 8
    %v3509 = vld [vmem:[%s3508] sm:$0x1]
    %v3510 = vlaneseq
    %v3511 = vshrl.u32 %v3510, 7
    %v3512 = vsub.s32 0, %v3511
    %v3513 = vrot.slane %v3509, %v3512
    %v3515 = vsel %vm84, %v2830, 0
    %v3518 = vsel %vm84, %v3502, 0
    %3520 = vmatprep.subr.mxu0 0.0
    %3521 = vmatpush1.msra.mxu0 0.0
    %3522 = vmatprep.subr.mxu0 0.0
    %3523 = vmatpush1.msra.mxu0 0.0
    %3524 = vmatprep.subr.mxu0 0.0
    %3525 = vmatpush1.msra.mxu0 0.0
    %3526 = vmatprep.subr.mxu0 0.0
    %3527 = vmatpush1.msra.mxu0 0.0
    %3528 = vmatprep.subr.mxu0 0.0
    %3529 = vmatpush1.msra.mxu0 0.0
    %3530 = vmatprep.subr.mxu0 0.0
    %3531 = vmatpush1.msra.mxu0 0.0
    %3532 = vmatprep.subr.mxu0 0.0
    %3533 = vmatpush1.msra.mxu0 0.0
    %3534 = vmatprep.subr.mxu0 0.0
    %3535 = vmatpush1.msra.mxu0 0.0
    %3536 = vmatprep.subr.mxu0 0.0
    %3537 = vmatpush1.msra.mxu0 0.0
    %3538 = vmatprep.subr.mxu0 0.0
    %3539 = vmatpush1.msra.mxu0 0.0
    %3540 = vmatprep.subr.mxu0 0.0
    %3541 = vmatpush1.msra.mxu0 0.0
    %3542 = vmatprep.subr.mxu0 0.0
    %3543 = vmatpush1.msra.mxu0 0.0
    %3544 = vmatprep.subr.mxu0 0.0
    %3545 = vmatpush1.msra.mxu0 %v3507
    %3546 = vmatprep.subr.mxu0 0.0
    %3547 = vmatpush1.msra.mxu0 %v3506
    %3548 = vmatprep.subr.mxu0 0.0
    %3549 = vmatpush1.msra.mxu0 %v3505
    %3550 = vmatprep.subr.mxu0 0.0
    %3551 = vmatpush1.msra.mxu0 %v3504
    %3552 = vmatprep.subr.mxu0 0.0
    %3553 = vmatpush2.msra.mxu0 0.0
    %3554 = vmatprep.subr.mxu0 0.0
    %3555 = vmatpush2.msra.mxu0 0.0
    %3556 = vmatprep.subr.mxu0 0.0
    %3557 = vmatpush2.msra.mxu0 0.0
    %3558 = vmatprep.subr.mxu0 0.0
    %3559 = vmatpush2.msra.mxu0 0.0
    %3560 = vmatprep.subr.mxu0 0.0
    %3561 = vmatpush2.msra.mxu0 0.0
    %3562 = vmatprep.subr.mxu0 0.0
    %3563 = vmatpush2.msra.mxu0 0.0
    %3564 = vmatprep.subr.mxu0 0.0
    %3565 = vmatpush2.msra.mxu0 0.0
    %3566 = vmatprep.subr.mxu0 0.0
    %3567 = vmatpush2.msra.mxu0 0.0
    %3568 = vmatprep.subr.mxu0 0.0
    %3569 = vmatpush2.msra.mxu0 0.0
    %3570 = vmatprep.subr.mxu0 0.0
    %3571 = vmatpush2.msra.mxu0 0.0
    %3572 = vmatprep.subr.mxu0 0.0
    %3573 = vmatpush2.msra.mxu0 0.0
    %3574 = vmatprep.subr.mxu0 0.0
    %3575 = vmatpush2.msra.mxu0 0.0
    %3576 = vmatprep.subr.mxu0 0.0
    %3577 = vmatpush2.msra.mxu0 0.0
    %3578 = vmatprep.subr.mxu0 0.0
    %3579 = vmatpush2.msra.mxu0 0.0
    %3580 = vmatprep.subr.mxu0 0.0
    %3581 = vmatpush2.msra.mxu0 0.0
    %3582 = vmatprep.subr.mxu0 0.0
    %3583 = vmatpush2.msra.mxu0 0.0
    %3584 = vmatprep.mubr.f32.mxu0 0.0
    %3585 = vmatmul.mubr.f32.gmra.mxu0 %v3515
    %v3586 = vpop.f32.mrf.mxu0
    %v3587 = vadd.f32 %v3513, %v3586
    %v3588 = vpop.f32.mrf.mxu0
    %3589 = vmatprep.mubr.f32.mxu0 0.0
    %3590 = vmatmul.mubr.f32.gmra.mxu0 %v3518
    %v3591 = vpop.f32.mrf.mxu0
    %v3592 = vadd.f32 %v3513, %v3591
    %v3593 = vpop.f32.mrf.mxu0
    %3594 = vdwg.mxu0
    %v3595 = vadd.f32 %v1967, %v3587
    %v3596 = vadd.f32 %v1968, %v3592
    %v3597 = vld [vmem:[%s3508 + $0x2] sm:$0x1]
    %v3598 = vld [vmem:[%s3508 + $0x3] sm:$0x1]
    %v3599 = vsel %vm84, %v3595, 0.0
    %3600 = vadd.xlane.f32.xlu0 %v3599
    %v3601 = vpop.xlane.xlu0 %3600
    %v3602 = vsel %vm84, %v3596, 0.0
    %3603 = vadd.xlane.f32.xlu0 %v3602
    %v3604 = vpop.xlane.xlu0 %3603
    %v3605 = vmul.f32 %v3601, %v1705
    %v3606 = vmul.f32 %v3604, %v1705
    %v3607 = vsub.f32 %v3595, %v3605
    %v3608 = vsub.f32 %v3596, %v3606
    %v3609 = vmul.f32 %v3607, %v3607
    %v3610 = vmul.f32 %v3608, %v3608
    %v3611 = vsel %vm84, %v3609, 0.0
    %3612 = vadd.xlane.f32.xlu0 %v3611
    %v3613 = vpop.xlane.xlu0 %3612
    %v3614 = vsel %vm84, %v3610, 0.0
    %3615 = vadd.xlane.f32.xlu0 %v3614
    %v3616 = vpop.xlane.xlu0 %3615
    %v3617 = vmul.f32 %v3613, %v1705
    %v3618 = vmul.f32 %v3616, %v1705
    %v3619 = vadd.f32 %v3617, 1e-05
    %v3620 = vadd.f32 %v3618, 1e-05
    %v3621 = vrsqrt.pop %v3619
    %v3622 = vrsqrt.pop %v3620
    %v3623 = vmul.f32 %v3607, %v3621
    %v3624 = vmul.f32 %v3608, %v3622
    %v3625 = vlaneseq
    %v3626 = vshrl.u32 %v3625, 7
    %v3627 = vsub.s32 0, %v3626
    %v3628 = vrot.slane %v3597, %v3627
    %v3629 = vmul.f32 %v3623, %v3628
    %v3630 = vmul.f32 %v3624, %v3628
    %v3631 = vlaneseq
    %v3632 = vshrl.u32 %v3631, 7
    %v3633 = vsub.s32 0, %v3632
    %v3634 = vrot.slane %v3598, %v3633
    %v3635 = vadd.f32 %v3629, %v3634
    %v3636 = vadd.f32 %v3630, %v3634
    %s3637 = scalar_lea.vmem [#allocation5], 32
    %v3638 = vld [vmem:[%s3637] sm:$0xff]
    %v3639 = vld [vmem:[%s3637 + $0x8] sm:$0xff]
    %v3640 = vld [vmem:[%s3637 + $0x10] sm:$0xff]
    %v3641 = vld [vmem:[%s3637 + $0x18] sm:$0xff]
    %s3642 = scalar_lea.vmem %s9, 1
    %v3643 = vld [vmem:[%s3642] sm:$0x1]
    %v3645 = vlaneseq
    %v3646 = vshrl.u32 %v3645, 7
    %v3647 = vsub.s32 0, %v3646
    %v3648 = vrot.slane %v3643, %v3647
    %v3651 = vsel %vm84, %v3635, 0
    %v3654 = vsel %vm84, %v3636, 0
    %3656 = vmatprep.subr.mxu0 0.0
    %3657 = vmatpush1.msra.mxu0 0.0
    %3658 = vmatprep.subr.mxu0 0.0
    %3659 = vmatpush1.msra.mxu0 0.0
    %3660 = vmatprep.subr.mxu0 0.0
    %3661 = vmatpush1.msra.mxu0 0.0
    %3662 = vmatprep.subr.mxu0 0.0
    %3663 = vmatpush1.msra.mxu0 0.0
    %3664 = vmatprep.subr.mxu0 0.0
    %3665 = vmatpush1.msra.mxu0 0.0
    %3666 = vmatprep.subr.mxu0 0.0
    %3667 = vmatpush1.msra.mxu0 0.0
    %3668 = vmatprep.subr.mxu0 0.0
    %3669 = vmatpush1.msra.mxu0 0.0
    %3670 = vmatprep.subr.mxu0 0.0
    %3671 = vmatpush1.msra.mxu0 0.0
    %3672 = vmatprep.subr.mxu0 0.0
    %3673 = vmatpush1.msra.mxu0 0.0
    %3674 = vmatprep.subr.mxu0 0.0
    %3675 = vmatpush1.msra.mxu0 0.0
    %3676 = vmatprep.subr.mxu0 0.0
    %3677 = vmatpush1.msra.mxu0 0.0
    %3678 = vmatprep.subr.mxu0 0.0
    %3679 = vmatpush1.msra.mxu0 0.0
    %3680 = vmatprep.subr.mxu0 0.0
    %3681 = vmatpush1.msra.mxu0 %v3641
    %3682 = vmatprep.subr.mxu0 0.0
    %3683 = vmatpush1.msra.mxu0 %v3640
    %3684 = vmatprep.subr.mxu0 0.0
    %3685 = vmatpush1.msra.mxu0 %v3639
    %3686 = vmatprep.subr.mxu0 0.0
    %3687 = vmatpush1.msra.mxu0 %v3638
    %3688 = vmatprep.subr.mxu0 0.0
    %3689 = vmatpush2.msra.mxu0 0.0
    %3690 = vmatprep.subr.mxu0 0.0
    %3691 = vmatpush2.msra.mxu0 0.0
    %3692 = vmatprep.subr.mxu0 0.0
    %3693 = vmatpush2.msra.mxu0 0.0
    %3694 = vmatprep.subr.mxu0 0.0
    %3695 = vmatpush2.msra.mxu0 0.0
    %3696 = vmatprep.subr.mxu0 0.0
    %3697 = vmatpush2.msra.mxu0 0.0
    %3698 = vmatprep.subr.mxu0 0.0
    %3699 = vmatpush2.msra.mxu0 0.0
    %3700 = vmatprep.subr.mxu0 0.0
    %3701 = vmatpush2.msra.mxu0 0.0
    %3702 = vmatprep.subr.mxu0 0.0
    %3703 = vmatpush2.msra.mxu0 0.0
    %3704 = vmatprep.subr.mxu0 0.0
    %3705 = vmatpush2.msra.mxu0 0.0
    %3706 = vmatprep.subr.mxu0 0.0
    %3707 = vmatpush2.msra.mxu0 0.0
    %3708 = vmatprep.subr.mxu0 0.0
    %3709 = vmatpush2.msra.mxu0 0.0
    %3710 = vmatprep.subr.mxu0 0.0
    %3711 = vmatpush2.msra.mxu0 0.0
    %3712 = vmatprep.subr.mxu0 0.0
    %3713 = vmatpush2.msra.mxu0 0.0
    %3714 = vmatprep.subr.mxu0 0.0
    %3715 = vmatpush2.msra.mxu0 0.0
    %3716 = vmatprep.subr.mxu0 0.0
    %3717 = vmatpush2.msra.mxu0 0.0
    %3718 = vmatprep.subr.mxu0 0.0
    %3719 = vmatpush2.msra.mxu0 0.0
    %3720 = vmatprep.mubr.f32.mxu0 0.0
    %3721 = vmatmul.mubr.f32.gmra.mxu0 %v3651
    %v3722 = vpop.f32.mrf.mxu0
    %v3723 = vadd.f32 %v3648, %v3722
    %v3724 = vpop.f32.mrf.mxu0
    %3725 = vmatprep.mubr.f32.mxu0 0.0
    %3726 = vmatmul.mubr.f32.gmra.mxu0 %v3654
    %v3727 = vpop.f32.mrf.mxu0
    %v3728 = vadd.f32 %v3648, %v3727
    %v3729 = vpop.f32.mrf.mxu0
    %3730 = vdwg.mxu0
    %v3731 = vmax.f32 %v3723, 0.0
    %v3732 = vmax.f32 %v3728, 0.0
    %s3733 = scalar_lea.vmem %s10, 64
    %v3734 = vld [vmem:[%s3733] sm:$0xff]
    %v3735 = vld [vmem:[%s3733 + $0x8] sm:$0xff]
    %v3736 = vld [vmem:[%s3733 + $0x10] sm:$0xff]
    %v3737 = vld [vmem:[%s3733 + $0x18] sm:$0xff]
    %v3738 = vld [vmem:[%s3733 + $0x20] sm:$0xff]
    %v3739 = vld [vmem:[%s3733 + $0x28] sm:$0xff]
    %v3740 = vld [vmem:[%s3733 + $0x30] sm:$0xff]
    %v3741 = vld [vmem:[%s3733 + $0x38] sm:$0xff]
    %v3742 = vld [vmem:[%s3508 + $0x1] sm:$0x1]
    %v3743 = vlaneseq
    %v3744 = vshrl.u32 %v3743, 7
    %v3745 = vsub.s32 0, %v3744
    %v3746 = vrot.slane %v3742, %v3745
    %v3748 = vsel %vm1845, %v3731, 0
    %v3751 = vsel %vm1845, %v3732, 0
    %3753 = vmatprep.subr.mxu0 0.0
    %3754 = vmatpush1.msra.mxu0 0.0
    %3755 = vmatprep.subr.mxu0 0.0
    %3756 = vmatpush1.msra.mxu0 0.0
    %3757 = vmatprep.subr.mxu0 0.0
    %3758 = vmatpush1.msra.mxu0 0.0
    %3759 = vmatprep.subr.mxu0 0.0
    %3760 = vmatpush1.msra.mxu0 0.0
    %3761 = vmatprep.subr.mxu0 0.0
    %3762 = vmatpush1.msra.mxu0 0.0
    %3763 = vmatprep.subr.mxu0 0.0
    %3764 = vmatpush1.msra.mxu0 0.0
    %3765 = vmatprep.subr.mxu0 0.0
    %3766 = vmatpush1.msra.mxu0 0.0
    %3767 = vmatprep.subr.mxu0 0.0
    %3768 = vmatpush1.msra.mxu0 0.0
    %3769 = vmatprep.subr.mxu0 0.0
    %3770 = vmatpush1.msra.mxu0 %v3741
    %3771 = vmatprep.subr.mxu0 0.0
    %3772 = vmatpush1.msra.mxu0 %v3740
    %3773 = vmatprep.subr.mxu0 0.0
    %3774 = vmatpush1.msra.mxu0 %v3739
    %3775 = vmatprep.subr.mxu0 0.0
    %3776 = vmatpush1.msra.mxu0 %v3738
    %3777 = vmatprep.subr.mxu0 0.0
    %3778 = vmatpush1.msra.mxu0 %v3737
    %3779 = vmatprep.subr.mxu0 0.0
    %3780 = vmatpush1.msra.mxu0 %v3736
    %3781 = vmatprep.subr.mxu0 0.0
    %3782 = vmatpush1.msra.mxu0 %v3735
    %3783 = vmatprep.subr.mxu0 0.0
    %3784 = vmatpush1.msra.mxu0 %v3734
    %3785 = vmatprep.subr.mxu0 0.0
    %3786 = vmatpush2.msra.mxu0 0.0
    %3787 = vmatprep.subr.mxu0 0.0
    %3788 = vmatpush2.msra.mxu0 0.0
    %3789 = vmatprep.subr.mxu0 0.0
    %3790 = vmatpush2.msra.mxu0 0.0
    %3791 = vmatprep.subr.mxu0 0.0
    %3792 = vmatpush2.msra.mxu0 0.0
    %3793 = vmatprep.subr.mxu0 0.0
    %3794 = vmatpush2.msra.mxu0 0.0
    %3795 = vmatprep.subr.mxu0 0.0
    %3796 = vmatpush2.msra.mxu0 0.0
    %3797 = vmatprep.subr.mxu0 0.0
    %3798 = vmatpush2.msra.mxu0 0.0
    %3799 = vmatprep.subr.mxu0 0.0
    %3800 = vmatpush2.msra.mxu0 0.0
    %3801 = vmatprep.subr.mxu0 0.0
    %3802 = vmatpush2.msra.mxu0 0.0
    %3803 = vmatprep.subr.mxu0 0.0
    %3804 = vmatpush2.msra.mxu0 0.0
    %3805 = vmatprep.subr.mxu0 0.0
    %3806 = vmatpush2.msra.mxu0 0.0
    %3807 = vmatprep.subr.mxu0 0.0
    %3808 = vmatpush2.msra.mxu0 0.0
    %3809 = vmatprep.subr.mxu0 0.0
    %3810 = vmatpush2.msra.mxu0 0.0
    %3811 = vmatprep.subr.mxu0 0.0
    %3812 = vmatpush2.msra.mxu0 0.0
    %3813 = vmatprep.subr.mxu0 0.0
    %3814 = vmatpush2.msra.mxu0 0.0
    %3815 = vmatprep.subr.mxu0 0.0
    %3816 = vmatpush2.msra.mxu0 0.0
    %3817 = vmatprep.mubr.f32.mxu0 0.0
    %3818 = vmatmul.mubr.f32.gmra.mxu0 %v3748
    %v3819 = vpop.f32.mrf.mxu0
    %v3820 = vadd.f32 %v3746, %v3819
    %v3821 = vpop.f32.mrf.mxu0
    %3822 = vmatprep.mubr.f32.mxu0 0.0
    %3823 = vmatmul.mubr.f32.gmra.mxu0 %v3751
    %v3824 = vpop.f32.mrf.mxu0
    %v3825 = vadd.f32 %v3746, %v3824
    %v3826 = vpop.f32.mrf.mxu0
    %3827 = vdwg.mxu0
    %v3828 = vadd.f32 %v3635, %v3820
    %v3829 = vadd.f32 %v3636, %v3825
    %v3830 = vld [vmem:[%s3508 + $0x4] sm:$0x1]
    %v3831 = vld [vmem:[%s3508 + $0x5] sm:$0x1]
    %v3832 = vsel %vm84, %v3828, 0.0
    %3833 = vadd.xlane.f32.xlu0 %v3832
    %v3834 = vpop.xlane.xlu0 %3833
    %v3835 = vsel %vm84, %v3829, 0.0
    %3836 = vadd.xlane.f32.xlu0 %v3835
    %v3837 = vpop.xlane.xlu0 %3836
    %v3838 = vmul.f32 %v3834, %v1705
    %v3839 = vmul.f32 %v3837, %v1705
    %v3840 = vsub.f32 %v3828, %v3838
    %v3841 = vsub.f32 %v3829, %v3839
    %v3842 = vmul.f32 %v3840, %v3840
    %v3843 = vmul.f32 %v3841, %v3841
    %v3844 = vsel %vm84, %v3842, 0.0
    %3845 = vadd.xlane.f32.xlu0 %v3844
    %v3846 = vpop.xlane.xlu0 %3845
    %v3847 = vsel %vm84, %v3843, 0.0
    %3848 = vadd.xlane.f32.xlu0 %v3847
    %v3849 = vpop.xlane.xlu0 %3848
    %v3850 = vmul.f32 %v3846, %v1705
    %v3851 = vmul.f32 %v3849, %v1705
    %v3852 = vadd.f32 %v3850, 1e-05
    %v3853 = vadd.f32 %v3851, 1e-05
    %v3854 = vrsqrt.pop %v3852
    %v3855 = vrsqrt.pop %v3853
    %v3856 = vmul.f32 %v3840, %v3854
    %v3857 = vmul.f32 %v3841, %v3855
    %v3858 = vlaneseq
    %v3859 = vshrl.u32 %v3858, 7
    %v3860 = vsub.s32 0, %v3859
    %v3861 = vrot.slane %v3830, %v3860
    %v3862 = vmul.f32 %v3856, %v3861
    %v3863 = vmul.f32 %v3857, %v3861
    %v3864 = vlaneseq
    %v3865 = vshrl.u32 %v3864, 7
    %v3866 = vsub.s32 0, %v3865
    %v3867 = vrot.slane %v3831, %v3866
    %v3868 = vadd.f32 %v3862, %v3867
    %v3869 = vadd.f32 %v3863, %v3867
    %3870 = vst.msk [vmem:[#allocation7] sm:$0xff] %vm84, %v3868
    %3871 = vst.msk [vmem:[#allocation7 + $0x8] sm:$0xff] %vm84, %v3869
    // Predicated region
    $region54: #{tpu_custom_call.1} parent=1 // pred_check
      _
    $region55: #{tpu_custom_call.1} parent=1 // pred_check_branch
      %3873 = sbr.rel (0) target = $region57
    $region56: #{tpu_custom_call.1} parent=1 // pred_region
      %s3875 = ssub.s32 256, 256
      %3876 = vsyncadd [#allocation4], %s3875
      %s3877 = sshll.u32 [#allocation7], 4
      %s3878 = int_to_ptr.vmem [resolvable:$true] %s3877
      %3883 = dma.vmem_to_hbm [thread:$0]  %s3878, 256, %s11, [#allocation4], 128, 128, 8
    $region57: #{tpu_custom_call.1} parent=1 // pred_fallthru
      _
    // Predicated region
    $region58: #{tpu_custom_call.1} parent=1 // pred_check
      _
    $region59: #{tpu_custom_call.1} parent=1 // pred_check_branch
      %3885 = sbr.rel (0) target = $region61
    $region60: #{tpu_custom_call.1} parent=1 // pred_region
      %3886 = dma.done [#allocation4], 256
    $region61: #{tpu_custom_call.1} parent=1 // pred_fallthru
      _
    %3887 = vsyncpa [#allocation3], 1
    %3888 = vsyncpa [#allocation6], 1
    %3889 = vsyncpa [#allocation4], 1

</llo_original>
